<compile_context>
chip_gen: v6e
topology: v6e:2x2x1
jax: 0.10.0
libtpu: 0.0.40
codegen_flags: <defaults>
</compile_context>

<pallas_src>
import functools

import jax
import jax.numpy as jnp
from jax.experimental import pallas as pl
from jax.experimental.pallas import tpu as pltpu


def _round_up(x, m):
    return (x + m - 1) // m * m


# --------------------------------------------------------------------------
# Main kernel: bidirectional LSTM over one (direction, time-tile) grid cell
# --------------------------------------------------------------------------
def bilstm_kernel(
    lens_ref,    # (Bp, 1)              i32   sequence lengths (padded rows = 0)
    x_ref,       # (tile_t*Bp, Dp)      bf16  time-major embedded inputs, this tile
    wih_ref,     # (Dp, 4Hp)            bf16  W_ih^T for this direction (gate-padded)
    whh_ref,     # (Hp, 4Hp)            bf16  W_hh^T for this direction
    b_ref,       # (1, 4Hp)             f32   b_ih + b_hh for this direction
    out_ref,     # (tile_t, Bp, Hp)     bf16  hidden states, lane-offset = direction
    hn_ref,      # (Bp, Hp)             f32   final h for this direction
    cn_ref,      # (Bp, Hp)             f32   final c for this direction
    h_st, c_st,  # scratch (Bp, Hp)     f32   persistent recurrent state
    xg_sc,       # scratch (tile_t*Bp, 4Hp) f32  hoisted x@W_ih + b for the tile
    *, tile_t, Bp, Hp, num_t, unroll, gate_bf16,
):
    d = pl.program_id(0)          # 0 = forward, 1 = backward
    i = pl.program_id(1)          # sequential position along the direction's pass
    blk = i + d * (num_t - 1 - 2 * i)   # global T-tile index handled at this step
    t0 = blk * tile_t

    @pl.when(i == 0)
    def _init():
        h_st[...] = jnp.zeros(h_st.shape, h_st.dtype)
        c_st[...] = jnp.zeros(c_st.shape, c_st.dtype)

    # ---- hoisted input->hidden contribution for the whole tile: one MXU call ----
    xg_sc[...] = (
        jnp.dot(x_ref[...], wih_ref[...], preferred_element_type=jnp.float32)
        + b_ref[...]
    )                                                     # (tile_t*Bp, 4Hp) f32

    whh = whh_ref[...]                                    # (Hp, 4Hp) bf16 (hoisted)
    # hoisted (Bp,1)->(Bp,Hp) broadcast of packed-seq lengths (no per-step bcast)
    lens_b = jnp.broadcast_to(lens_ref[...], (Bp, Hp))    # (Bp, Hp) i32

    def step(s, carry):
        h, c = carry
        lt = s + d * (tile_t - 1 - 2 * s)                 # fwd: s, bwd: tile_t-1-s
        row0 = pl.multiple_of(lt * Bp, Bp)
        gates = xg_sc[pl.ds(row0, Bp), :] + jnp.dot(
            h.astype(whh.dtype), whh, preferred_element_type=jnp.float32)  # (Bp,4Hp)
        g = gates.astype(jnp.bfloat16) if gate_bf16 else gates
        ig = jax.nn.sigmoid(g[:, 0 * Hp:1 * Hp])          # PyTorch gate order i,f,g,o
        fg = jax.nn.sigmoid(g[:, 1 * Hp:2 * Hp])
        gg = jnp.tanh(g[:, 2 * Hp:3 * Hp])
        og = jax.nn.sigmoid(g[:, 3 * Hp:4 * Hp])
        c_new = fg.astype(jnp.float32) * c + (ig * gg).astype(jnp.float32)
        h_new = og.astype(jnp.float32) * jnp.tanh(c_new)

        valid = lens_b > (t0 + lt)                        # (Bp, Hp) packed-seq mask
        h = jnp.where(valid, h_new, h)
        c = jnp.where(valid, c_new, c)
        out_ref[lt] = jnp.where(valid, h_new, 0.0).astype(out_ref.dtype)
        return h, c

    # bounded-unroll fori_loop: LLO visibility without unbounded vreg live ranges
    h, c = jax.lax.fori_loop(0, tile_t, step, (h_st[...], c_st[...]), unroll=unroll)

    h_st[...] = h
    c_st[...] = c

    @pl.when(i == num_t - 1)
    def _final():
        hn_ref[...] = h
        cn_ref[...] = c


# --------------------------------------------------------------------------
# Parameter packing: PyTorch layout -> padded, transposed, gate-padded kernel layout
# --------------------------------------------------------------------------
def _pack_lstm_dir(w_ih, w_hh, b_ih, b_hh, H, Hp, Dp):
    D = w_ih.shape[1]

    def pad_gate_cols(w_t):                       # (R, 4H) -> (R, 4Hp), per-gate pad
        R = w_t.shape[0]
        w4 = jnp.pad(w_t.reshape(R, 4, H), ((0, 0), (0, 0), (0, Hp - H)))
        return w4.reshape(R, 4 * Hp)

    wih_t = jnp.pad(pad_gate_cols(w_ih.T), ((0, Dp - D), (0, 0)))   # (Dp, 4Hp)
    whh_t = jnp.pad(pad_gate_cols(w_hh.T), ((0, Hp - H), (0, 0)))   # (Hp, 4Hp)
    b = (b_ih + b_hh).reshape(4, H)
    b = jnp.pad(b, ((0, 0), (0, Hp - H))).reshape(1, 4 * Hp)        # (1, 4Hp)
    return wih_t, whh_t, b


# --------------------------------------------------------------------------
# JAX wrapper (embedding lookup, padding/layout, pallas_call glue)
# --------------------------------------------------------------------------
def bidirectional_encoder(params, input_word_ids, input_seq_lens, input_seq_mask,
                          input_char_ids, input_word_lens, *, tile_t=None):
    # TODO(synk): wordEmbed is an external module in the reference; only a word-id
    # embedding lookup is modeled here (char ids / word lens accepted but unused).
    embed_wd = jnp.take(params["emb"], input_word_ids, axis=0)      # (B, T, D)
    B, T, D = embed_wd.shape
    H = params["w_hh_f"].shape[1]

    Bp = _round_up(B, 8)
    Hp = _round_up(H, 128)
    Dp = _round_up(D, 128)

    # --- generation-aware knobs: VMEM capacity + bf16 VPU/EUP availability ---
    try:
        vmem_cap = int(getattr(pltpu.get_tpu_info(), "vmem_capacity_bytes",
                               64 * 1024 * 1024))
    except Exception:
        vmem_cap = 64 * 1024 * 1024
    try:
        kind = jax.devices()[0].device_kind.lower()
    except Exception:
        kind = ""
    gate_bf16 = ("v6" in kind) or ("v7" in kind)      # v5e lacks bf16 VPU/EUP

    def vmem_est(tt, nbuf_const):                     # bytes, per-operand accounting
        return (2 * tt * Bp * Dp * 2                  # x tile, double-buffered, bf16
                + 2 * tt * Bp * Hp * 2                # seq-out tile, dbl-buf, bf16
                + tt * Bp * 4 * Hp * 4                # hoisted-gates scratch, f32
                + nbuf_const * (Dp + Hp) * 4 * Hp * 2 # W_ih / W_hh, bf16
                + nbuf_const * (4 * Hp * 4 + Bp * 4)  # bias / lens
                + 2 * Bp * Hp * 4                     # h / c state scratch
                + 4 * Bp * Hp * 4)                    # hn / cn output blocks

    # time-tile sizing: fill MXU M dim (tile_t*Bp >= 256) within the VMEM budget
    if tile_t is None:
        tile_t = max(8, pl.cdiv(256, Bp))
    tile_t = max(1, min(tile_t, T))
    budget = int(0.75 * vmem_cap)                     # headroom on 64 MiB v7x parts
    while tile_t > 1 and vmem_est(tile_t, 2) > int(0.8 * budget):
        tile_t = max(1, tile_t // 2)
    unroll = next((u for u in (8, 4, 2) if tile_t % u == 0), 1)

    Tp = _round_up(T, tile_t)
    num_t = Tp // tile_t
    vmem_limit = int(min(max(int(1.25 * vmem_est(tile_t, 2)) + (2 << 20), 16 << 20),
                         budget))

    # --- pack weights: bf16 matmul operands, f32 biases, per-gate zero padding ---
    wih_f, whh_f, b_f = _pack_lstm_dir(params["w_ih_f"], params["w_hh_f"],
                                       params["b_ih_f"], params["b_hh_f"], H, Hp, Dp)
    wih_b, whh_b, b_b = _pack_lstm_dir(params["w_ih_b"], params["w_hh_b"],
                                       params["b_ih_b"], params["b_hh_b"], H, Hp, Dp)
    wih = jnp.stack([wih_f, wih_b]).astype(jnp.bfloat16)            # (2, Dp, 4Hp)
    whh = jnp.stack([whh_f, whh_b]).astype(jnp.bfloat16)            # (2, Hp, 4Hp)
    bias = jnp.stack([b_f, b_b]).astype(jnp.float32)                # (2, 1, 4Hp)

    # --- time-major, padded, flattened (Tp*Bp, Dp) bf16 input (cast before moving) ---
    x = jnp.transpose(embed_wd.astype(jnp.bfloat16), (1, 0, 2))     # (T, B, D) bf16
    x = jnp.pad(x, ((0, Tp - T), (0, Bp - B), (0, Dp - D)))
    x = x.reshape(Tp * Bp, Dp)

    lens = jnp.pad(input_seq_lens.astype(jnp.int32), (0, Bp - B)).reshape(Bp, 1)

    def blk_idx(dd, ii):   # time-tile handled by (direction dd, step ii)
        return ii + dd * (num_t - 1 - 2 * ii)

    kernel = functools.partial(bilstm_kernel, tile_t=tile_t, Bp=Bp, Hp=Hp,
                               num_t=num_t, unroll=unroll, gate_bf16=gate_bf16)

    out_specs = (
        # concatenated layout: direction selects the Hp-wide lane block of 2*Hp
        pl.BlockSpec((tile_t, Bp, Hp), lambda dd, ii: (blk_idx(dd, ii), 0, dd)),
        pl.BlockSpec((None, Bp, Hp), lambda dd, ii: (dd, 0, 0)),
        pl.BlockSpec((None, Bp, Hp), lambda dd, ii: (dd, 0, 0)),
    )
    out_shape = (
        jax.ShapeDtypeStruct((Tp, Bp, 2 * Hp), jnp.bfloat16),   # hidden sequence
        jax.ShapeDtypeStruct((2, Bp, Hp), jnp.float32),         # h_n per direction
        jax.ShapeDtypeStruct((2, Bp, Hp), jnp.float32),         # c_n per direction
    )
    scratch_shapes = [
        pltpu.VMEM((Bp, Hp), jnp.float32),                      # h state
        pltpu.VMEM((Bp, Hp), jnp.float32),                      # c state
        pltpu.VMEM((tile_t * Bp, 4 * Hp), jnp.float32),         # hoisted x@Wih + b
    ]
    cparams = pltpu.CompilerParams(
        dimension_semantics=("parallel", "arbitrary"),
        vmem_limit_bytes=vmem_limit,
    )

    def make_in_specs(single_buffer_consts):
        kw = {"pipeline_mode": pl.Buffered(1)} if single_buffer_consts else {}
        return [
            pl.BlockSpec((Bp, 1), lambda dd, ii: (0, 0), **kw),
            pl.BlockSpec((tile_t * Bp, Dp), lambda dd, ii: (blk_idx(dd, ii), 0)),
            pl.BlockSpec((None, Dp, 4 * Hp), lambda dd, ii: (dd, 0, 0), **kw),
            pl.BlockSpec((None, Hp, 4 * Hp), lambda dd, ii: (dd, 0, 0), **kw),
            pl.BlockSpec((None, 1, 4 * Hp), lambda dd, ii: (dd, 0, 0), **kw),
        ]

    def run(single_buffer_consts):
        return pl.pallas_call(
            kernel,
            grid=(2, num_t),
            in_specs=make_in_specs(single_buffer_consts),
            out_specs=out_specs,
            out_shape=out_shape,
            scratch_shapes=scratch_shapes,
            compiler_params=cparams,
        )(lens, x, wih, whh, bias)

    try:
        out_p, hn, cn = run(True)      # single-buffer the grid-constant weights
    except Exception:                  # fallback if pipeline_mode is unsupported
        out_p, hn, cn = run(False)

    # --- epilogue: kernel already zeroed padded steps and wrote concat layout ---
    seq = out_p[:T, :B].astype(jnp.float32)                         # (T, B, 2*Hp)
    if Hp == H:
        hidden_out = seq.transpose(1, 0, 2)                         # (B, T, 2H)
    else:
        hidden_out = jnp.concatenate(
            [seq[..., :H], seq[..., Hp:Hp + H]], axis=-1).transpose(1, 0, 2)

    # final-state projections: tiny (B,2H)x(2H,H) GEMMs, left to XLA (fused, cheap)
    h_cat = jnp.concatenate([hn[0, :B, :H], hn[1, :B, :H]], axis=-1)
    c_cat = jnp.concatenate([cn[0, :B, :H], cn[1, :B, :H]], axis=-1)
    final_hidd_proj = h_cat @ params["w_hproj"].T + params["b_hproj"]
    final_cell_proj = c_cat @ params["w_cproj"].T + params["b_cproj"]

    mask = (input_seq_mask == 0)                                    # True on padding
    # TODO(synk): nn.Dropout(p=0.1) is treated as eval-mode identity (deterministic).
    return hidden_out, final_hidd_proj, final_cell_proj, mask


# --------------------------------------------------------------------------
# Deterministic parameter init (PyTorch nn.LSTM / nn.Linear layouts)
# --------------------------------------------------------------------------
def init_params(key, vocab_size, D, H):
    ks = jax.random.split(key, 16)
    k_lstm = 1.0 / jnp.sqrt(jnp.float32(H))
    k_lin = 1.0 / jnp.sqrt(jnp.float32(2 * H))

    def u(kk, shape, k):
        return jax.random.uniform(kk, shape, jnp.float32, -k, k)

    return dict(
        emb=u(ks[0], (vocab_size, D), 1.0),
        # forward LSTM: weight_ih_l0 (4H,D), weight_hh_l0 (4H,H), biases (4H,)
        w_ih_f=u(ks[1], (4 * H, D), k_lstm), w_hh_f=u(ks[2], (4 * H, H), k_lstm),
        b_ih_f=u(ks[3], (4 * H,), k_lstm), b_hh_f=u(ks[4], (4 * H,), k_lstm),
        # backward LSTM
        w_ih_b=u(ks[5], (4 * H, D), k_lstm), w_hh_b=u(ks[6], (4 * H, H), k_lstm),
        b_ih_b=u(ks[7], (4 * H,), k_lstm), b_hh_b=u(ks[8], (4 * H,), k_lstm),
        # output projections: Linear(2H -> H)
        w_hproj=u(ks[9], (H, 2 * H), k_lin), b_hproj=u(ks[10], (H,), k_lin),
        w_cproj=u(ks[11], (H, 2 * H), k_lin), b_cproj=u(ks[12], (H,), k_lin),
    )


if __name__ == "__main__":
    B, T, D, H = 2, 8, 32, 32
    VOCAB, MAX_WORD_LEN = 50, 4

    key = jax.random.PRNGKey(0)
    k_par, k_ids, k_char = jax.random.split(key, 3)

    params = init_params(k_par, VOCAB, D, H)

    input_word_ids = jax.random.randint(k_ids, (B, T), 0, VOCAB, dtype=jnp.int32)
    input_seq_lens = jnp.array([8, 5], dtype=jnp.int32)
    input_seq_mask = (jnp.arange(T)[None, :] < input_seq_lens[:, None]).astype(jnp.int32)
    input_char_ids = jax.random.randint(k_char, (B, T, MAX_WORD_LEN), 0, 26, dtype=jnp.int32)
    input_word_lens = jnp.full((B, T), MAX_WORD_LEN, dtype=jnp.int32)

    hidden_out, final_hidd_proj, final_cell_proj, mask = bidirectional_encoder(
        params, input_word_ids, input_seq_lens, input_seq_mask,
        input_char_ids, input_word_lens)

    jax.block_until_ready((hidden_out, final_hidd_proj, final_cell_proj, mask))

    assert hidden_out.shape == (B, T, 2 * H)
    assert final_hidd_proj.shape == (B, H)
    assert final_cell_proj.shape == (B, H)
    assert mask.shape == (B, T)
    print("KERNEL_OK")
</pallas_src>

<mosaic_0001>
module attributes {stable_mosaic.version = 11 : i64} {
  func.func @bilstm_kernel(%arg0: i32, %arg1: i32, %arg2: memref<8x1xi32, #tpu.memory_space<vmem>>, %arg3: memref<64x128xbf16, #tpu.memory_space<vmem>>, %arg4: memref<1x128x512xbf16, #tpu.memory_space<vmem>>, %arg5: memref<1x128x512xbf16, #tpu.memory_space<vmem>>, %arg6: memref<1x1x512xf32, #tpu.memory_space<vmem>>, %arg7: memref<8x8x128xbf16, #tpu.memory_space<vmem>>, %arg8: memref<1x8x128xf32, #tpu.memory_space<vmem>>, %arg9: memref<1x8x128xf32, #tpu.memory_space<vmem>>, %arg10: memref<8x128xf32, #tpu.memory_space<vmem>>, %arg11: memref<8x128xf32, #tpu.memory_space<vmem>>, %arg12: memref<64x512xf32, #tpu.memory_space<vmem>>) attributes {dimension_semantics = [#tpu.dimension_semantics<parallel>, #tpu.dimension_semantics<arbitrary>], iteration_bounds = array<i64: 2, 1>, scalar_prefetch = 0 : i64, scratch_operands = 3 : i64, tpu.core_type = #tpu.core_type<tc>, window_params = [{pipeline_mode = #tpu.pipeline_mode<synchronous>, transform_indices = @transform_0, window_bounds = array<i64: 8, 1>}, {transform_indices = @transform_1, window_bounds = array<i64: 64, 128>}, {pipeline_mode = #tpu.pipeline_mode<synchronous>, transform_indices = @transform_2, window_bounds = array<i64: 1, 128, 512>}, {pipeline_mode = #tpu.pipeline_mode<synchronous>, transform_indices = @transform_3, window_bounds = array<i64: 1, 128, 512>}, {pipeline_mode = #tpu.pipeline_mode<synchronous>, transform_indices = @transform_4, window_bounds = array<i64: 1, 1, 512>}, {transform_indices = @transform_5, window_bounds = array<i64: 8, 8, 128>}, {transform_indices = @transform_6, window_bounds = array<i64: 1, 8, 128>}, {transform_indices = @transform_7, window_bounds = array<i64: 1, 8, 128>}]} {
    %c2_i32 = arith.constant 2 : i32
    %0 = arith.muli %c2_i32, %arg1 : i32
    %c0_i32 = arith.constant 0 : i32
    %1 = arith.subi %c0_i32, %0 : i32
    %2 = arith.muli %arg0, %1 : i32
    %3 = arith.addi %arg1, %2 : i32
    %c8_i32 = arith.constant 8 : i32
    %4 = arith.muli %3, %c8_i32 : i32
    %c0_i32_0 = arith.constant 0 : i32
    %5 = arith.cmpi eq, %arg1, %c0_i32_0 : i32
    %6 = arith.extui %5 : i1 to i32
    %c0_i32_1 = arith.constant 0 : i32
    %7 = arith.cmpi ne, %6, %c0_i32_1 : i32
    scf.if %7 {
      %cst_117 = arith.constant 0.000000e+00 : f32
      %413 = vector.broadcast %cst_117 : f32 to vector<8x128xf32>
      %c0_118 = arith.constant 0 : index
      %c0_119 = arith.constant 0 : index
      %414 = vector.load %arg10[%c0_118, %c0_119] : memref<8x128xf32, #tpu.memory_space<vmem>>, vector<8x128xf32>
      tpu.vector_store %arg10[%c0_118, %c0_119], %413 {strides = array<i32>} : memref<8x128xf32, #tpu.memory_space<vmem>>, vector<8x128xf32>,
      %cst_120 = arith.constant 0.000000e+00 : f32
      %415 = vector.broadcast %cst_120 : f32 to vector<8x128xf32>
      %c0_121 = arith.constant 0 : index
      %c0_122 = arith.constant 0 : index
      %416 = vector.load %arg11[%c0_121, %c0_122] : memref<8x128xf32, #tpu.memory_space<vmem>>, vector<8x128xf32>
      tpu.vector_store %arg11[%c0_121, %c0_122], %415 {strides = array<i32>} : memref<8x128xf32, #tpu.memory_space<vmem>>, vector<8x128xf32>,
    } else {
    }
    %c0 = arith.constant 0 : index
    %c0_2 = arith.constant 0 : index
    %8 = vector.load %arg3[%c0, %c0_2] : memref<64x128xbf16, #tpu.memory_space<vmem>>, vector<64x128xbf16>
    %c0_3 = arith.constant 0 : index
    %c0_4 = arith.constant 0 : index
    %c0_5 = arith.constant 0 : index
    %9 = vector.load %arg4[%c0_3, %c0_4, %c0_5] : memref<1x128x512xbf16, #tpu.memory_space<vmem>>, vector<1x128x512xbf16>
    %10 = vector.shape_cast %9 : vector<1x128x512xbf16> to vector<128x512xbf16>
    %cst = arith.constant dense<0.000000e+00> : vector<64x512xf32>
    %11 = tpu.matmul %8, %10, %cst {dimension_numbers = #tpu.dot_dimension_numbers<[1], [0], [0], [1], [0, 0, 1, 1], [], []>} : vector<64x128xbf16>, vector<128x512xbf16>, vector<64x512xf32> -> vector<64x512xf32>
    %c0_6 = arith.constant 0 : index
    %c0_7 = arith.constant 0 : index
    %c0_8 = arith.constant 0 : index
    %12 = vector.load %arg6[%c0_6, %c0_7, %c0_8] : memref<1x1x512xf32, #tpu.memory_space<vmem>>, vector<1x1x512xf32>
    %13 = vector.shape_cast %12 : vector<1x1x512xf32> to vector<1x512xf32>
    %14 = vector.broadcast %13 : vector<1x512xf32> to vector<64x512xf32>
    %15 = arith.addf %11, %14 : vector<64x512xf32>
    %c0_9 = arith.constant 0 : index
    %c0_10 = arith.constant 0 : index
    %16 = vector.load %arg12[%c0_9, %c0_10] : memref<64x512xf32, #tpu.memory_space<vmem>>, vector<64x512xf32>
    tpu.vector_store %arg12[%c0_9, %c0_10], %15 {strides = array<i32>} : memref<64x512xf32, #tpu.memory_space<vmem>>, vector<64x512xf32>,
    %c0_11 = arith.constant 0 : index
    %c0_12 = arith.constant 0 : index
    %c0_13 = arith.constant 0 : index
    %17 = vector.load %arg5[%c0_11, %c0_12, %c0_13] : memref<1x128x512xbf16, #tpu.memory_space<vmem>>, vector<1x128x512xbf16>
    %18 = vector.shape_cast %17 : vector<1x128x512xbf16> to vector<128x512xbf16>
    %c0_14 = arith.constant 0 : index
    %c0_15 = arith.constant 0 : index
    %19 = vector.load %arg2[%c0_14, %c0_15] : memref<8x1xi32, #tpu.memory_space<vmem>>, vector<8x1xi32>
    %20 = vector.shape_cast %19 : vector<8x1xi32> to vector<8x1xi32>
    %21 = vector.broadcast %20 : vector<8x1xi32> to vector<8x128xi32>
    %c0_16 = arith.constant 0 : index
    %c0_17 = arith.constant 0 : index
    %22 = vector.load %arg10[%c0_16, %c0_17] : memref<8x128xf32, #tpu.memory_space<vmem>>, vector<8x128xf32>
    %c0_18 = arith.constant 0 : index
    %c0_19 = arith.constant 0 : index
    %23 = vector.load %arg11[%c0_18, %c0_19] : memref<8x128xf32, #tpu.memory_space<vmem>>, vector<8x128xf32>
    %c0_i32_20 = arith.constant 0 : i32
    %c2_i32_21 = arith.constant 2 : i32
    %24 = arith.muli %c2_i32_21, %c0_i32_20 : i32
    %c7_i32 = arith.constant 7 : i32
    %25 = arith.subi %c7_i32, %24 : i32
    %26 = arith.muli %arg0, %25 : i32
    %27 = arith.addi %c0_i32_20, %26 : i32
    %c8_i32_22 = arith.constant 8 : i32
    %28 = arith.muli %27, %c8_i32_22 : i32
    %29 = tpu.assume_multiple %28, 8 : i32
    %30 = arith.index_cast %29 : i32 to index
    %c0_23 = arith.constant 0 : index
    %31 = vector.load %arg12[%30, %c0_23] : memref<64x512xf32, #tpu.memory_space<vmem>>, vector<8x512xf32>
    %32 = arith.truncf %22 : vector<8x128xf32> to vector<8x128xbf16>
    %cst_24 = arith.constant dense<0.000000e+00> : vector<8x512xf32>
    %33 = tpu.matmul %32, %18, %cst_24 {dimension_numbers = #tpu.dot_dimension_numbers<[1], [0], [0], [1], [0, 0, 1, 1], [], []>} : vector<8x128xbf16>, vector<128x512xbf16>, vector<8x512xf32> -> vector<8x512xf32>
    %34 = arith.addf %31, %33 : vector<8x512xf32>
    %35 = vector.extract_strided_slice %34 {offsets = [0, 0], sizes = [8, 128], strides = [1, 1]} : vector<8x512xf32> to vector<8x128xf32>
    %36 = arith.negf %35 : vector<8x128xf32>
    %37 = math.exp %36 : vector<8x128xf32>
    %cst_25 = arith.constant 1.000000e+00 : f32
    %38 = vector.broadcast %cst_25 : f32 to vector<8x128xf32>
    %39 = arith.addf %38, %37 : vector<8x128xf32>
    %40 = arith.divf %38, %39 : vector<8x128xf32>
    %41 = vector.extract_strided_slice %34 {offsets = [0, 128], sizes = [8, 128], strides = [1, 1]} : vector<8x512xf32> to vector<8x128xf32>
    %42 = arith.negf %41 : vector<8x128xf32>
    %43 = math.exp %42 : vector<8x128xf32>
    %cst_26 = arith.constant 1.000000e+00 : f32
    %44 = vector.broadcast %cst_26 : f32 to vector<8x128xf32>
    %45 = arith.addf %44, %43 : vector<8x128xf32>
    %46 = arith.divf %44, %45 : vector<8x128xf32>
    %47 = vector.extract_strided_slice %34 {offsets = [0, 256], sizes = [8, 128], strides = [1, 1]} : vector<8x512xf32> to vector<8x128xf32>
    %48 = math.tanh %47 : vector<8x128xf32>
    %49 = vector.extract_strided_slice %34 {offsets = [0, 384], sizes = [8, 128], strides = [1, 1]} : vector<8x512xf32> to vector<8x128xf32>
    %50 = arith.negf %49 : vector<8x128xf32>
    %51 = math.exp %50 : vector<8x128xf32>
    %cst_27 = arith.constant 1.000000e+00 : f32
    %52 = vector.broadcast %cst_27 : f32 to vector<8x128xf32>
    %53 = arith.addf %52, %51 : vector<8x128xf32>
    %54 = arith.divf %52, %53 : vector<8x128xf32>
    %55 = arith.mulf %46, %23 : vector<8x128xf32>
    %56 = arith.mulf %40, %48 : vector<8x128xf32>
    %57 = arith.addf %55, %56 : vector<8x128xf32>
    %58 = math.tanh %57 : vector<8x128xf32>
    %59 = arith.mulf %54, %58 : vector<8x128xf32>
    %60 = arith.addi %4, %27 : i32
    %61 = vector.broadcast %60 : i32 to vector<8x128xi32>
    %62 = arith.cmpi sgt, %21, %61 : vector<8x128xi32>
    %63 = arith.select %62, %59, %22 : vector<8x128xi1>, vector<8x128xf32>
    %64 = arith.select %62, %57, %23 : vector<8x128xi1>, vector<8x128xf32>
    %cst_28 = arith.constant 0.000000e+00 : f32
    %65 = vector.broadcast %cst_28 : f32 to vector<8x128xf32>
    %66 = arith.select %62, %59, %65 : vector<8x128xi1>, vector<8x128xf32>
    %67 = arith.truncf %66 : vector<8x128xf32> to vector<8x128xbf16>
    %68 = arith.index_cast %27 : i32 to index
    %c0_29 = arith.constant 0 : index
    %c0_30 = arith.constant 0 : index
    %69 = vector.load %arg7[%68, %c0_29, %c0_30] : memref<8x8x128xbf16, #tpu.memory_space<vmem>>, vector<1x8x128xbf16>
    %70 = vector.shape_cast %69 : vector<1x8x128xbf16> to vector<8x128xbf16>
    %71 = vector.shape_cast %67 : vector<8x128xbf16> to vector<1x8x128xbf16>
    tpu.vector_store %arg7[%68, %c0_29, %c0_30], %71 {strides = array<i32>} : memref<8x8x128xbf16, #tpu.memory_space<vmem>>, vector<1x8x128xbf16>,
    %c1_i32 = arith.constant 1 : i32
    %c2_i32_31 = arith.constant 2 : i32
    %72 = arith.muli %c2_i32_31, %c1_i32 : i32
    %c7_i32_32 = arith.constant 7 : i32
    %73 = arith.subi %c7_i32_32, %72 : i32
    %74 = arith.muli %arg0, %73 : i32
    %75 = arith.addi %c1_i32, %74 : i32
    %c8_i32_33 = arith.constant 8 : i32
    %76 = arith.muli %75, %c8_i32_33 : i32
    %77 = tpu.assume_multiple %76, 8 : i32
    %78 = arith.index_cast %77 : i32 to index
    %c0_34 = arith.constant 0 : index
    %79 = vector.load %arg12[%78, %c0_34] : memref<64x512xf32, #tpu.memory_space<vmem>>, vector<8x512xf32>
    %80 = arith.truncf %63 : vector<8x128xf32> to vector<8x128xbf16>
    %cst_35 = arith.constant dense<0.000000e+00> : vector<8x512xf32>
    %81 = tpu.matmul %80, %18, %cst_35 {dimension_numbers = #tpu.dot_dimension_numbers<[1], [0], [0], [1], [0, 0, 1, 1], [], []>} : vector<8x128xbf16>, vector<128x512xbf16>, vector<8x512xf32> -> vector<8x512xf32>
    %82 = arith.addf %79, %81 : vector<8x512xf32>
    %83 = vector.extract_strided_slice %82 {offsets = [0, 0], sizes = [8, 128], strides = [1, 1]} : vector<8x512xf32> to vector<8x128xf32>
    %84 = arith.negf %83 : vector<8x128xf32>
    %85 = math.exp %84 : vector<8x128xf32>
    %cst_36 = arith.constant 1.000000e+00 : f32
    %86 = vector.broadcast %cst_36 : f32 to vector<8x128xf32>
    %87 = arith.addf %86, %85 : vector<8x128xf32>
    %88 = arith.divf %86, %87 : vector<8x128xf32>
    %89 = vector.extract_strided_slice %82 {offsets = [0, 128], sizes = [8, 128], strides = [1, 1]} : vector<8x512xf32> to vector<8x128xf32>
    %90 = arith.negf %89 : vector<8x128xf32>
    %91 = math.exp %90 : vector<8x128xf32>
    %cst_37 = arith.constant 1.000000e+00 : f32
    %92 = vector.broadcast %cst_37 : f32 to vector<8x128xf32>
    %93 = arith.addf %92, %91 : vector<8x128xf32>
    %94 = arith.divf %92, %93 : vector<8x128xf32>
    %95 = vector.extract_strided_slice %82 {offsets = [0, 256], sizes = [8, 128], strides = [1, 1]} : vector<8x512xf32> to vector<8x128xf32>
    %96 = math.tanh %95 : vector<8x128xf32>
    %97 = vector.extract_strided_slice %82 {offsets = [0, 384], sizes = [8, 128], strides = [1, 1]} : vector<8x512xf32> to vector<8x128xf32>
    %98 = arith.negf %97 : vector<8x128xf32>
    %99 = math.exp %98 : vector<8x128xf32>
    %cst_38 = arith.constant 1.000000e+00 : f32
    %100 = vector.broadcast %cst_38 : f32 to vector<8x128xf32>
    %101 = arith.addf %100, %99 : vector<8x128xf32>
    %102 = arith.divf %100, %101 : vector<8x128xf32>
    %103 = arith.mulf %94, %64 : vector<8x128xf32>
    %104 = arith.mulf %88, %96 : vector<8x128xf32>
    %105 = arith.addf %103, %104 : vector<8x128xf32>
    %106 = math.tanh %105 : vector<8x128xf32>
    %107 = arith.mulf %102, %106 : vector<8x128xf32>
    %108 = arith.addi %4, %75 : i32
    %109 = vector.broadcast %108 : i32 to vector<8x128xi32>
    %110 = arith.cmpi sgt, %21, %109 : vector<8x128xi32>
    %111 = arith.select %110, %107, %63 : vector<8x128xi1>, vector<8x128xf32>
    %112 = arith.select %110, %105, %64 : vector<8x128xi1>, vector<8x128xf32>
    %cst_39 = arith.constant 0.000000e+00 : f32
    %113 = vector.broadcast %cst_39 : f32 to vector<8x128xf32>
    %114 = arith.select %110, %107, %113 : vector<8x128xi1>, vector<8x128xf32>
    %115 = arith.truncf %114 : vector<8x128xf32> to vector<8x128xbf16>
    %116 = arith.index_cast %75 : i32 to index
    %c0_40 = arith.constant 0 : index
    %c0_41 = arith.constant 0 : index
    %117 = vector.load %arg7[%116, %c0_40, %c0_41] : memref<8x8x128xbf16, #tpu.memory_space<vmem>>, vector<1x8x128xbf16>
    %118 = vector.shape_cast %117 : vector<1x8x128xbf16> to vector<8x128xbf16>
    %119 = vector.shape_cast %115 : vector<8x128xbf16> to vector<1x8x128xbf16>
    tpu.vector_store %arg7[%116, %c0_40, %c0_41], %119 {strides = array<i32>} : memref<8x8x128xbf16, #tpu.memory_space<vmem>>, vector<1x8x128xbf16>,
    %c2_i32_42 = arith.constant 2 : i32
    %c2_i32_43 = arith.constant 2 : i32
    %120 = arith.muli %c2_i32_43, %c2_i32_42 : i32
    %c7_i32_44 = arith.constant 7 : i32
    %121 = arith.subi %c7_i32_44, %120 : i32
    %122 = arith.muli %arg0, %121 : i32
    %123 = arith.addi %c2_i32_42, %122 : i32
    %c8_i32_45 = arith.constant 8 : i32
    %124 = arith.muli %123, %c8_i32_45 : i32
    %125 = tpu.assume_multiple %124, 8 : i32
    %126 = arith.index_cast %125 : i32 to index
    %c0_46 = arith.constant 0 : index
    %127 = vector.load %arg12[%126, %c0_46] : memref<64x512xf32, #tpu.memory_space<vmem>>, vector<8x512xf32>
    %128 = arith.truncf %111 : vector<8x128xf32> to vector<8x128xbf16>
    %cst_47 = arith.constant dense<0.000000e+00> : vector<8x512xf32>
    %129 = tpu.matmul %128, %18, %cst_47 {dimension_numbers = #tpu.dot_dimension_numbers<[1], [0], [0], [1], [0, 0, 1, 1], [], []>} : vector<8x128xbf16>, vector<128x512xbf16>, vector<8x512xf32> -> vector<8x512xf32>
    %130 = arith.addf %127, %129 : vector<8x512xf32>
    %131 = vector.extract_strided_slice %130 {offsets = [0, 0], sizes = [8, 128], strides = [1, 1]} : vector<8x512xf32> to vector<8x128xf32>
    %132 = arith.negf %131 : vector<8x128xf32>
    %133 = math.exp %132 : vector<8x128xf32>
    %cst_48 = arith.constant 1.000000e+00 : f32
    %134 = vector.broadcast %cst_48 : f32 to vector<8x128xf32>
    %135 = arith.addf %134, %133 : vector<8x128xf32>
    %136 = arith.divf %134, %135 : vector<8x128xf32>
    %137 = vector.extract_strided_slice %130 {offsets = [0, 128], sizes = [8, 128], strides = [1, 1]} : vector<8x512xf32> to vector<8x128xf32>
    %138 = arith.negf %137 : vector<8x128xf32>
    %139 = math.exp %138 : vector<8x128xf32>
    %cst_49 = arith.constant 1.000000e+00 : f32
    %140 = vector.broadcast %cst_49 : f32 to vector<8x128xf32>
    %141 = arith.addf %140, %139 : vector<8x128xf32>
    %142 = arith.divf %140, %141 : vector<8x128xf32>
    %143 = vector.extract_strided_slice %130 {offsets = [0, 256], sizes = [8, 128], strides = [1, 1]} : vector<8x512xf32> to vector<8x128xf32>
    %144 = math.tanh %143 : vector<8x128xf32>
    %145 = vector.extract_strided_slice %130 {offsets = [0, 384], sizes = [8, 128], strides = [1, 1]} : vector<8x512xf32> to vector<8x128xf32>
    %146 = arith.negf %145 : vector<8x128xf32>
    %147 = math.exp %146 : vector<8x128xf32>
    %cst_50 = arith.constant 1.000000e+00 : f32
    %148 = vector.broadcast %cst_50 : f32 to vector<8x128xf32>
    %149 = arith.addf %148, %147 : vector<8x128xf32>
    %150 = arith.divf %148, %149 : vector<8x128xf32>
    %151 = arith.mulf %142, %112 : vector<8x128xf32>
    %152 = arith.mulf %136, %144 : vector<8x128xf32>
    %153 = arith.addf %151, %152 : vector<8x128xf32>
    %154 = math.tanh %153 : vector<8x128xf32>
    %155 = arith.mulf %150, %154 : vector<8x128xf32>
    %156 = arith.addi %4, %123 : i32
    %157 = vector.broadcast %156 : i32 to vector<8x128xi32>
    %158 = arith.cmpi sgt, %21, %157 : vector<8x128xi32>
    %159 = arith.select %158, %155, %111 : vector<8x128xi1>, vector<8x128xf32>
    %160 = arith.select %158, %153, %112 : vector<8x128xi1>, vector<8x128xf32>
    %cst_51 = arith.constant 0.000000e+00 : f32
    %161 = vector.broadcast %cst_51 : f32 to vector<8x128xf32>
    %162 = arith.select %158, %155, %161 : vector<8x128xi1>, vector<8x128xf32>
    %163 = arith.truncf %162 : vector<8x128xf32> to vector<8x128xbf16>
    %164 = arith.index_cast %123 : i32 to index
    %c0_52 = arith.constant 0 : index
    %c0_53 = arith.constant 0 : index
    %165 = vector.load %arg7[%164, %c0_52, %c0_53] : memref<8x8x128xbf16, #tpu.memory_space<vmem>>, vector<1x8x128xbf16>
    %166 = vector.shape_cast %165 : vector<1x8x128xbf16> to vector<8x128xbf16>
    %167 = vector.shape_cast %163 : vector<8x128xbf16> to vector<1x8x128xbf16>
    tpu.vector_store %arg7[%164, %c0_52, %c0_53], %167 {strides = array<i32>} : memref<8x8x128xbf16, #tpu.memory_space<vmem>>, vector<1x8x128xbf16>,
    %c3_i32 = arith.constant 3 : i32
    %c2_i32_54 = arith.constant 2 : i32
    %168 = arith.muli %c2_i32_54, %c3_i32 : i32
    %c7_i32_55 = arith.constant 7 : i32
    %169 = arith.subi %c7_i32_55, %168 : i32
    %170 = arith.muli %arg0, %169 : i32
    %171 = arith.addi %c3_i32, %170 : i32
    %c8_i32_56 = arith.constant 8 : i32
    %172 = arith.muli %171, %c8_i32_56 : i32
    %173 = tpu.assume_multiple %172, 8 : i32
    %174 = arith.index_cast %173 : i32 to index
    %c0_57 = arith.constant 0 : index
    %175 = vector.load %arg12[%174, %c0_57] : memref<64x512xf32, #tpu.memory_space<vmem>>, vector<8x512xf32>
    %176 = arith.truncf %159 : vector<8x128xf32> to vector<8x128xbf16>
    %cst_58 = arith.constant dense<0.000000e+00> : vector<8x512xf32>
    %177 = tpu.matmul %176, %18, %cst_58 {dimension_numbers = #tpu.dot_dimension_numbers<[1], [0], [0], [1], [0, 0, 1, 1], [], []>} : vector<8x128xbf16>, vector<128x512xbf16>, vector<8x512xf32> -> vector<8x512xf32>
    %178 = arith.addf %175, %177 : vector<8x512xf32>
    %179 = vector.extract_strided_slice %178 {offsets = [0, 0], sizes = [8, 128], strides = [1, 1]} : vector<8x512xf32> to vector<8x128xf32>
    %180 = arith.negf %179 : vector<8x128xf32>
    %181 = math.exp %180 : vector<8x128xf32>
    %cst_59 = arith.constant 1.000000e+00 : f32
    %182 = vector.broadcast %cst_59 : f32 to vector<8x128xf32>
    %183 = arith.addf %182, %181 : vector<8x128xf32>
    %184 = arith.divf %182, %183 : vector<8x128xf32>
    %185 = vector.extract_strided_slice %178 {offsets = [0, 128], sizes = [8, 128], strides = [1, 1]} : vector<8x512xf32> to vector<8x128xf32>
    %186 = arith.negf %185 : vector<8x128xf32>
    %187 = math.exp %186 : vector<8x128xf32>
    %cst_60 = arith.constant 1.000000e+00 : f32
    %188 = vector.broadcast %cst_60 : f32 to vector<8x128xf32>
    %189 = arith.addf %188, %187 : vector<8x128xf32>
    %190 = arith.divf %188, %189 : vector<8x128xf32>
    %191 = vector.extract_strided_slice %178 {offsets = [0, 256], sizes = [8, 128], strides = [1, 1]} : vector<8x512xf32> to vector<8x128xf32>
    %192 = math.tanh %191 : vector<8x128xf32>
    %193 = vector.extract_strided_slice %178 {offsets = [0, 384], sizes = [8, 128], strides = [1, 1]} : vector<8x512xf32> to vector<8x128xf32>
    %194 = arith.negf %193 : vector<8x128xf32>
    %195 = math.exp %194 : vector<8x128xf32>
    %cst_61 = arith.constant 1.000000e+00 : f32
    %196 = vector.broadcast %cst_61 : f32 to vector<8x128xf32>
    %197 = arith.addf %196, %195 : vector<8x128xf32>
    %198 = arith.divf %196, %197 : vector<8x128xf32>
    %199 = arith.mulf %190, %160 : vector<8x128xf32>
    %200 = arith.mulf %184, %192 : vector<8x128xf32>
    %201 = arith.addf %199, %200 : vector<8x128xf32>
    %202 = math.tanh %201 : vector<8x128xf32>
    %203 = arith.mulf %198, %202 : vector<8x128xf32>
    %204 = arith.addi %4, %171 : i32
    %205 = vector.broadcast %204 : i32 to vector<8x128xi32>
    %206 = arith.cmpi sgt, %21, %205 : vector<8x128xi32>
    %207 = arith.select %206, %203, %159 : vector<8x128xi1>, vector<8x128xf32>
    %208 = arith.select %206, %201, %160 : vector<8x128xi1>, vector<8x128xf32>
    %cst_62 = arith.constant 0.000000e+00 : f32
    %209 = vector.broadcast %cst_62 : f32 to vector<8x128xf32>
    %210 = arith.select %206, %203, %209 : vector<8x128xi1>, vector<8x128xf32>
    %211 = arith.truncf %210 : vector<8x128xf32> to vector<8x128xbf16>
    %212 = arith.index_cast %171 : i32 to index
    %c0_63 = arith.constant 0 : index
    %c0_64 = arith.constant 0 : index
    %213 = vector.load %arg7[%212, %c0_63, %c0_64] : memref<8x8x128xbf16, #tpu.memory_space<vmem>>, vector<1x8x128xbf16>
    %214 = vector.shape_cast %213 : vector<1x8x128xbf16> to vector<8x128xbf16>
    %215 = vector.shape_cast %211 : vector<8x128xbf16> to vector<1x8x128xbf16>
    tpu.vector_store %arg7[%212, %c0_63, %c0_64], %215 {strides = array<i32>} : memref<8x8x128xbf16, #tpu.memory_space<vmem>>, vector<1x8x128xbf16>,
    %c4_i32 = arith.constant 4 : i32
    %c2_i32_65 = arith.constant 2 : i32
    %216 = arith.muli %c2_i32_65, %c4_i32 : i32
    %c7_i32_66 = arith.constant 7 : i32
    %217 = arith.subi %c7_i32_66, %216 : i32
    %218 = arith.muli %arg0, %217 : i32
    %219 = arith.addi %c4_i32, %218 : i32
    %c8_i32_67 = arith.constant 8 : i32
    %220 = arith.muli %219, %c8_i32_67 : i32
    %221 = tpu.assume_multiple %220, 8 : i32
    %222 = arith.index_cast %221 : i32 to index
    %c0_68 = arith.constant 0 : index
    %223 = vector.load %arg12[%222, %c0_68] : memref<64x512xf32, #tpu.memory_space<vmem>>, vector<8x512xf32>
    %224 = arith.truncf %207 : vector<8x128xf32> to vector<8x128xbf16>
    %cst_69 = arith.constant dense<0.000000e+00> : vector<8x512xf32>
    %225 = tpu.matmul %224, %18, %cst_69 {dimension_numbers = #tpu.dot_dimension_numbers<[1], [0], [0], [1], [0, 0, 1, 1], [], []>} : vector<8x128xbf16>, vector<128x512xbf16>, vector<8x512xf32> -> vector<8x512xf32>
    %226 = arith.addf %223, %225 : vector<8x512xf32>
    %227 = vector.extract_strided_slice %226 {offsets = [0, 0], sizes = [8, 128], strides = [1, 1]} : vector<8x512xf32> to vector<8x128xf32>
    %228 = arith.negf %227 : vector<8x128xf32>
    %229 = math.exp %228 : vector<8x128xf32>
    %cst_70 = arith.constant 1.000000e+00 : f32
    %230 = vector.broadcast %cst_70 : f32 to vector<8x128xf32>
    %231 = arith.addf %230, %229 : vector<8x128xf32>
    %232 = arith.divf %230, %231 : vector<8x128xf32>
    %233 = vector.extract_strided_slice %226 {offsets = [0, 128], sizes = [8, 128], strides = [1, 1]} : vector<8x512xf32> to vector<8x128xf32>
    %234 = arith.negf %233 : vector<8x128xf32>
    %235 = math.exp %234 : vector<8x128xf32>
    %cst_71 = arith.constant 1.000000e+00 : f32
    %236 = vector.broadcast %cst_71 : f32 to vector<8x128xf32>
    %237 = arith.addf %236, %235 : vector<8x128xf32>
    %238 = arith.divf %236, %237 : vector<8x128xf32>
    %239 = vector.extract_strided_slice %226 {offsets = [0, 256], sizes = [8, 128], strides = [1, 1]} : vector<8x512xf32> to vector<8x128xf32>
    %240 = math.tanh %239 : vector<8x128xf32>
    %241 = vector.extract_strided_slice %226 {offsets = [0, 384], sizes = [8, 128], strides = [1, 1]} : vector<8x512xf32> to vector<8x128xf32>
    %242 = arith.negf %241 : vector<8x128xf32>
    %243 = math.exp %242 : vector<8x128xf32>
    %cst_72 = arith.constant 1.000000e+00 : f32
    %244 = vector.broadcast %cst_72 : f32 to vector<8x128xf32>
    %245 = arith.addf %244, %243 : vector<8x128xf32>
    %246 = arith.divf %244, %245 : vector<8x128xf32>
    %247 = arith.mulf %238, %208 : vector<8x128xf32>
    %248 = arith.mulf %232, %240 : vector<8x128xf32>
    %249 = arith.addf %247, %248 : vector<8x128xf32>
    %250 = math.tanh %249 : vector<8x128xf32>
    %251 = arith.mulf %246, %250 : vector<8x128xf32>
    %252 = arith.addi %4, %219 : i32
    %253 = vector.broadcast %252 : i32 to vector<8x128xi32>
    %254 = arith.cmpi sgt, %21, %253 : vector<8x128xi32>
    %255 = arith.select %254, %251, %207 : vector<8x128xi1>, vector<8x128xf32>
    %256 = arith.select %254, %249, %208 : vector<8x128xi1>, vector<8x128xf32>
    %cst_73 = arith.constant 0.000000e+00 : f32
    %257 = vector.broadcast %cst_73 : f32 to vector<8x128xf32>
    %258 = arith.select %254, %251, %257 : vector<8x128xi1>, vector<8x128xf32>
    %259 = arith.truncf %258 : vector<8x128xf32> to vector<8x128xbf16>
    %260 = arith.index_cast %219 : i32 to index
    %c0_74 = arith.constant 0 : index
    %c0_75 = arith.constant 0 : index
    %261 = vector.load %arg7[%260, %c0_74, %c0_75] : memref<8x8x128xbf16, #tpu.memory_space<vmem>>, vector<1x8x128xbf16>
    %262 = vector.shape_cast %261 : vector<1x8x128xbf16> to vector<8x128xbf16>
    %263 = vector.shape_cast %259 : vector<8x128xbf16> to vector<1x8x128xbf16>
    tpu.vector_store %arg7[%260, %c0_74, %c0_75], %263 {strides = array<i32>} : memref<8x8x128xbf16, #tpu.memory_space<vmem>>, vector<1x8x128xbf16>,
    %c5_i32 = arith.constant 5 : i32
    %c2_i32_76 = arith.constant 2 : i32
    %264 = arith.muli %c2_i32_76, %c5_i32 : i32
    %c7_i32_77 = arith.constant 7 : i32
    %265 = arith.subi %c7_i32_77, %264 : i32
    %266 = arith.muli %arg0, %265 : i32
    %267 = arith.addi %c5_i32, %266 : i32
    %c8_i32_78 = arith.constant 8 : i32
    %268 = arith.muli %267, %c8_i32_78 : i32
    %269 = tpu.assume_multiple %268, 8 : i32
    %270 = arith.index_cast %269 : i32 to index
    %c0_79 = arith.constant 0 : index
    %271 = vector.load %arg12[%270, %c0_79] : memref<64x512xf32, #tpu.memory_space<vmem>>, vector<8x512xf32>
    %272 = arith.truncf %255 : vector<8x128xf32> to vector<8x128xbf16>
    %cst_80 = arith.constant dense<0.000000e+00> : vector<8x512xf32>
    %273 = tpu.matmul %272, %18, %cst_80 {dimension_numbers = #tpu.dot_dimension_numbers<[1], [0], [0], [1], [0, 0, 1, 1], [], []>} : vector<8x128xbf16>, vector<128x512xbf16>, vector<8x512xf32> -> vector<8x512xf32>
    %274 = arith.addf %271, %273 : vector<8x512xf32>
    %275 = vector.extract_strided_slice %274 {offsets = [0, 0], sizes = [8, 128], strides = [1, 1]} : vector<8x512xf32> to vector<8x128xf32>
    %276 = arith.negf %275 : vector<8x128xf32>
    %277 = math.exp %276 : vector<8x128xf32>
    %cst_81 = arith.constant 1.000000e+00 : f32
    %278 = vector.broadcast %cst_81 : f32 to vector<8x128xf32>
    %279 = arith.addf %278, %277 : vector<8x128xf32>
    %280 = arith.divf %278, %279 : vector<8x128xf32>
    %281 = vector.extract_strided_slice %274 {offsets = [0, 128], sizes = [8, 128], strides = [1, 1]} : vector<8x512xf32> to vector<8x128xf32>
    %282 = arith.negf %281 : vector<8x128xf32>
    %283 = math.exp %282 : vector<8x128xf32>
    %cst_82 = arith.constant 1.000000e+00 : f32
    %284 = vector.broadcast %cst_82 : f32 to vector<8x128xf32>
    %285 = arith.addf %284, %283 : vector<8x128xf32>
    %286 = arith.divf %284, %285 : vector<8x128xf32>
    %287 = vector.extract_strided_slice %274 {offsets = [0, 256], sizes = [8, 128], strides = [1, 1]} : vector<8x512xf32> to vector<8x128xf32>
    %288 = math.tanh %287 : vector<8x128xf32>
    %289 = vector.extract_strided_slice %274 {offsets = [0, 384], sizes = [8, 128], strides = [1, 1]} : vector<8x512xf32> to vector<8x128xf32>
    %290 = arith.negf %289 : vector<8x128xf32>
    %291 = math.exp %290 : vector<8x128xf32>
    %cst_83 = arith.constant 1.000000e+00 : f32
    %292 = vector.broadcast %cst_83 : f32 to vector<8x128xf32>
    %293 = arith.addf %292, %291 : vector<8x128xf32>
    %294 = arith.divf %292, %293 : vector<8x128xf32>
    %295 = arith.mulf %286, %256 : vector<8x128xf32>
    %296 = arith.mulf %280, %288 : vector<8x128xf32>
    %297 = arith.addf %295, %296 : vector<8x128xf32>
    %298 = math.tanh %297 : vector<8x128xf32>
    %299 = arith.mulf %294, %298 : vector<8x128xf32>
    %300 = arith.addi %4, %267 : i32
    %301 = vector.broadcast %300 : i32 to vector<8x128xi32>
    %302 = arith.cmpi sgt, %21, %301 : vector<8x128xi32>
    %303 = arith.select %302, %299, %255 : vector<8x128xi1>, vector<8x128xf32>
    %304 = arith.select %302, %297, %256 : vector<8x128xi1>, vector<8x128xf32>
    %cst_84 = arith.constant 0.000000e+00 : f32
    %305 = vector.broadcast %cst_84 : f32 to vector<8x128xf32>
    %306 = arith.select %302, %299, %305 : vector<8x128xi1>, vector<8x128xf32>
    %307 = arith.truncf %306 : vector<8x128xf32> to vector<8x128xbf16>
    %308 = arith.index_cast %267 : i32 to index
    %c0_85 = arith.constant 0 : index
    %c0_86 = arith.constant 0 : index
    %309 = vector.load %arg7[%308, %c0_85, %c0_86] : memref<8x8x128xbf16, #tpu.memory_space<vmem>>, vector<1x8x128xbf16>
    %310 = vector.shape_cast %309 : vector<1x8x128xbf16> to vector<8x128xbf16>
    %311 = vector.shape_cast %307 : vector<8x128xbf16> to vector<1x8x128xbf16>
    tpu.vector_store %arg7[%308, %c0_85, %c0_86], %311 {strides = array<i32>} : memref<8x8x128xbf16, #tpu.memory_space<vmem>>, vector<1x8x128xbf16>,
    %c6_i32 = arith.constant 6 : i32
    %c2_i32_87 = arith.constant 2 : i32
    %312 = arith.muli %c2_i32_87, %c6_i32 : i32
    %c7_i32_88 = arith.constant 7 : i32
    %313 = arith.subi %c7_i32_88, %312 : i32
    %314 = arith.muli %arg0, %313 : i32
    %315 = arith.addi %c6_i32, %314 : i32
    %c8_i32_89 = arith.constant 8 : i32
    %316 = arith.muli %315, %c8_i32_89 : i32
    %317 = tpu.assume_multiple %316, 8 : i32
    %318 = arith.index_cast %317 : i32 to index
    %c0_90 = arith.constant 0 : index
    %319 = vector.load %arg12[%318, %c0_90] : memref<64x512xf32, #tpu.memory_space<vmem>>, vector<8x512xf32>
    %320 = arith.truncf %303 : vector<8x128xf32> to vector<8x128xbf16>
    %cst_91 = arith.constant dense<0.000000e+00> : vector<8x512xf32>
    %321 = tpu.matmul %320, %18, %cst_91 {dimension_numbers = #tpu.dot_dimension_numbers<[1], [0], [0], [1], [0, 0, 1, 1], [], []>} : vector<8x128xbf16>, vector<128x512xbf16>, vector<8x512xf32> -> vector<8x512xf32>
    %322 = arith.addf %319, %321 : vector<8x512xf32>
    %323 = vector.extract_strided_slice %322 {offsets = [0, 0], sizes = [8, 128], strides = [1, 1]} : vector<8x512xf32> to vector<8x128xf32>
    %324 = arith.negf %323 : vector<8x128xf32>
    %325 = math.exp %324 : vector<8x128xf32>
    %cst_92 = arith.constant 1.000000e+00 : f32
    %326 = vector.broadcast %cst_92 : f32 to vector<8x128xf32>
    %327 = arith.addf %326, %325 : vector<8x128xf32>
    %328 = arith.divf %326, %327 : vector<8x128xf32>
    %329 = vector.extract_strided_slice %322 {offsets = [0, 128], sizes = [8, 128], strides = [1, 1]} : vector<8x512xf32> to vector<8x128xf32>
    %330 = arith.negf %329 : vector<8x128xf32>
    %331 = math.exp %330 : vector<8x128xf32>
    %cst_93 = arith.constant 1.000000e+00 : f32
    %332 = vector.broadcast %cst_93 : f32 to vector<8x128xf32>
    %333 = arith.addf %332, %331 : vector<8x128xf32>
    %334 = arith.divf %332, %333 : vector<8x128xf32>
    %335 = vector.extract_strided_slice %322 {offsets = [0, 256], sizes = [8, 128], strides = [1, 1]} : vector<8x512xf32> to vector<8x128xf32>
    %336 = math.tanh %335 : vector<8x128xf32>
    %337 = vector.extract_strided_slice %322 {offsets = [0, 384], sizes = [8, 128], strides = [1, 1]} : vector<8x512xf32> to vector<8x128xf32>
    %338 = arith.negf %337 : vector<8x128xf32>
    %339 = math.exp %338 : vector<8x128xf32>
    %cst_94 = arith.constant 1.000000e+00 : f32
    %340 = vector.broadcast %cst_94 : f32 to vector<8x128xf32>
    %341 = arith.addf %340, %339 : vector<8x128xf32>
    %342 = arith.divf %340, %341 : vector<8x128xf32>
    %343 = arith.mulf %334, %304 : vector<8x128xf32>
    %344 = arith.mulf %328, %336 : vector<8x128xf32>
    %345 = arith.addf %343, %344 : vector<8x128xf32>
    %346 = math.tanh %345 : vector<8x128xf32>
    %347 = arith.mulf %342, %346 : vector<8x128xf32>
    %348 = arith.addi %4, %315 : i32
    %349 = vector.broadcast %348 : i32 to vector<8x128xi32>
    %350 = arith.cmpi sgt, %21, %349 : vector<8x128xi32>
    %351 = arith.select %350, %347, %303 : vector<8x128xi1>, vector<8x128xf32>
    %352 = arith.select %350, %345, %304 : vector<8x128xi1>, vector<8x128xf32>
    %cst_95 = arith.constant 0.000000e+00 : f32
    %353 = vector.broadcast %cst_95 : f32 to vector<8x128xf32>
    %354 = arith.select %350, %347, %353 : vector<8x128xi1>, vector<8x128xf32>
    %355 = arith.truncf %354 : vector<8x128xf32> to vector<8x128xbf16>
    %356 = arith.index_cast %315 : i32 to index
    %c0_96 = arith.constant 0 : index
    %c0_97 = arith.constant 0 : index
    %357 = vector.load %arg7[%356, %c0_96, %c0_97] : memref<8x8x128xbf16, #tpu.memory_space<vmem>>, vector<1x8x128xbf16>
    %358 = vector.shape_cast %357 : vector<1x8x128xbf16> to vector<8x128xbf16>
    %359 = vector.shape_cast %355 : vector<8x128xbf16> to vector<1x8x128xbf16>
    tpu.vector_store %arg7[%356, %c0_96, %c0_97], %359 {strides = array<i32>} : memref<8x8x128xbf16, #tpu.memory_space<vmem>>, vector<1x8x128xbf16>,
    %c7_i32_98 = arith.constant 7 : i32
    %c2_i32_99 = arith.constant 2 : i32
    %360 = arith.muli %c2_i32_99, %c7_i32_98 : i32
    %c7_i32_100 = arith.constant 7 : i32
    %361 = arith.subi %c7_i32_100, %360 : i32
    %362 = arith.muli %arg0, %361 : i32
    %363 = arith.addi %c7_i32_98, %362 : i32
    %c8_i32_101 = arith.constant 8 : i32
    %364 = arith.muli %363, %c8_i32_101 : i32
    %365 = tpu.assume_multiple %364, 8 : i32
    %366 = arith.index_cast %365 : i32 to index
    %c0_102 = arith.constant 0 : index
    %367 = vector.load %arg12[%366, %c0_102] : memref<64x512xf32, #tpu.memory_space<vmem>>, vector<8x512xf32>
    %368 = arith.truncf %351 : vector<8x128xf32> to vector<8x128xbf16>
    %cst_103 = arith.constant dense<0.000000e+00> : vector<8x512xf32>
    %369 = tpu.matmul %368, %18, %cst_103 {dimension_numbers = #tpu.dot_dimension_numbers<[1], [0], [0], [1], [0, 0, 1, 1], [], []>} : vector<8x128xbf16>, vector<128x512xbf16>, vector<8x512xf32> -> vector<8x512xf32>
    %370 = arith.addf %367, %369 : vector<8x512xf32>
    %371 = vector.extract_strided_slice %370 {offsets = [0, 0], sizes = [8, 128], strides = [1, 1]} : vector<8x512xf32> to vector<8x128xf32>
    %372 = arith.negf %371 : vector<8x128xf32>
    %373 = math.exp %372 : vector<8x128xf32>
    %cst_104 = arith.constant 1.000000e+00 : f32
    %374 = vector.broadcast %cst_104 : f32 to vector<8x128xf32>
    %375 = arith.addf %374, %373 : vector<8x128xf32>
    %376 = arith.divf %374, %375 : vector<8x128xf32>
    %377 = vector.extract_strided_slice %370 {offsets = [0, 128], sizes = [8, 128], strides = [1, 1]} : vector<8x512xf32> to vector<8x128xf32>
    %378 = arith.negf %377 : vector<8x128xf32>
    %379 = math.exp %378 : vector<8x128xf32>
    %cst_105 = arith.constant 1.000000e+00 : f32
    %380 = vector.broadcast %cst_105 : f32 to vector<8x128xf32>
    %381 = arith.addf %380, %379 : vector<8x128xf32>
    %382 = arith.divf %380, %381 : vector<8x128xf32>
    %383 = vector.extract_strided_slice %370 {offsets = [0, 256], sizes = [8, 128], strides = [1, 1]} : vector<8x512xf32> to vector<8x128xf32>
    %384 = math.tanh %383 : vector<8x128xf32>
    %385 = vector.extract_strided_slice %370 {offsets = [0, 384], sizes = [8, 128], strides = [1, 1]} : vector<8x512xf32> to vector<8x128xf32>
    %386 = arith.negf %385 : vector<8x128xf32>
    %387 = math.exp %386 : vector<8x128xf32>
    %cst_106 = arith.constant 1.000000e+00 : f32
    %388 = vector.broadcast %cst_106 : f32 to vector<8x128xf32>
    %389 = arith.addf %388, %387 : vector<8x128xf32>
    %390 = arith.divf %388, %389 : vector<8x128xf32>
    %391 = arith.mulf %382, %352 : vector<8x128xf32>
    %392 = arith.mulf %376, %384 : vector<8x128xf32>
    %393 = arith.addf %391, %392 : vector<8x128xf32>
    %394 = math.tanh %393 : vector<8x128xf32>
    %395 = arith.mulf %390, %394 : vector<8x128xf32>
    %396 = arith.addi %4, %363 : i32
    %397 = vector.broadcast %396 : i32 to vector<8x128xi32>
    %398 = arith.cmpi sgt, %21, %397 : vector<8x128xi32>
    %399 = arith.select %398, %395, %351 : vector<8x128xi1>, vector<8x128xf32>
    %400 = arith.select %398, %393, %352 : vector<8x128xi1>, vector<8x128xf32>
    %cst_107 = arith.constant 0.000000e+00 : f32
    %401 = vector.broadcast %cst_107 : f32 to vector<8x128xf32>
    %402 = arith.select %398, %395, %401 : vector<8x128xi1>, vector<8x128xf32>
    %403 = arith.truncf %402 : vector<8x128xf32> to vector<8x128xbf16>
    %404 = arith.index_cast %363 : i32 to index
    %c0_108 = arith.constant 0 : index
    %c0_109 = arith.constant 0 : index
    %405 = vector.load %arg7[%404, %c0_108, %c0_109] : memref<8x8x128xbf16, #tpu.memory_space<vmem>>, vector<1x8x128xbf16>
    %406 = vector.shape_cast %405 : vector<1x8x128xbf16> to vector<8x128xbf16>
    %407 = vector.shape_cast %403 : vector<8x128xbf16> to vector<1x8x128xbf16>
    tpu.vector_store %arg7[%404, %c0_108, %c0_109], %407 {strides = array<i32>} : memref<8x8x128xbf16, #tpu.memory_space<vmem>>, vector<1x8x128xbf16>,
    %c8_i32_110 = arith.constant 8 : i32
    %c0_111 = arith.constant 0 : index
    %c0_112 = arith.constant 0 : index
    %408 = vector.load %arg10[%c0_111, %c0_112] : memref<8x128xf32, #tpu.memory_space<vmem>>, vector<8x128xf32>
    tpu.vector_store %arg10[%c0_111, %c0_112], %399 {strides = array<i32>} : memref<8x128xf32, #tpu.memory_space<vmem>>, vector<8x128xf32>,
    %c0_113 = arith.constant 0 : index
    %c0_114 = arith.constant 0 : index
    %409 = vector.load %arg11[%c0_113, %c0_114] : memref<8x128xf32, #tpu.memory_space<vmem>>, vector<8x128xf32>
    tpu.vector_store %arg11[%c0_113, %c0_114], %400 {strides = array<i32>} : memref<8x128xf32, #tpu.memory_space<vmem>>, vector<8x128xf32>,
    %c0_i32_115 = arith.constant 0 : i32
    %410 = arith.cmpi eq, %arg1, %c0_i32_115 : i32
    %411 = arith.extui %410 : i1 to i32
    %c0_i32_116 = arith.constant 0 : i32
    %412 = arith.cmpi ne, %411, %c0_i32_116 : i32
    scf.if %412 {
      %c0_117 = arith.constant 0 : index
      %c0_118 = arith.constant 0 : index
      %c0_119 = arith.constant 0 : index
      %413 = vector.load %arg8[%c0_117, %c0_118, %c0_119] : memref<1x8x128xf32, #tpu.memory_space<vmem>>, vector<1x8x128xf32>
      %414 = vector.shape_cast %413 : vector<1x8x128xf32> to vector<8x128xf32>
      %415 = vector.shape_cast %399 : vector<8x128xf32> to vector<1x8x128xf32>
      tpu.vector_store %arg8[%c0_117, %c0_118, %c0_119], %415 {strides = array<i32>} : memref<1x8x128xf32, #tpu.memory_space<vmem>>, vector<1x8x128xf32>,
      %c0_120 = arith.constant 0 : index
      %c0_121 = arith.constant 0 : index
      %c0_122 = arith.constant 0 : index
      %416 = vector.load %arg9[%c0_120, %c0_121, %c0_122] : memref<1x8x128xf32, #tpu.memory_space<vmem>>, vector<1x8x128xf32>
      %417 = vector.shape_cast %416 : vector<1x8x128xf32> to vector<8x128xf32>
      %418 = vector.shape_cast %400 : vector<8x128xf32> to vector<1x8x128xf32>
      tpu.vector_store %arg9[%c0_120, %c0_121, %c0_122], %418 {strides = array<i32>} : memref<1x8x128xf32, #tpu.memory_space<vmem>>, vector<1x8x128xf32>,
    } else {
    }
    return
  }
  func.func @transform_0(%arg0: i32, %arg1: i32) -> (i32, i32) {
    %c0_i32 = arith.constant 0 : i32
    %c0_i32_0 = arith.constant 0 : i32
    %c0_i32_1 = arith.constant 0 : i32
    return %c0_i32, %c0_i32_0 : i32, i32
  }
  func.func @transform_1(%arg0: i32, %arg1: i32) -> (i32, i32) {
    %c2_i32 = arith.constant 2 : i32
    %0 = arith.muli %c2_i32, %arg1 : i32
    %c0_i32 = arith.constant 0 : i32
    %1 = arith.subi %c0_i32, %0 : i32
    %2 = arith.muli %arg0, %1 : i32
    %3 = arith.addi %arg1, %2 : i32
    %c0_i32_0 = arith.constant 0 : i32
    %c0_i32_1 = arith.constant 0 : i32
    return %3, %c0_i32_0 : i32, i32
  }
  func.func @transform_2(%arg0: i32, %arg1: i32) -> (i32, i32, i32) {
    %c0_i32 = arith.constant 0 : i32
    %c0_i32_0 = arith.constant 0 : i32
    %c0_i32_1 = arith.constant 0 : i32
    return %arg0, %c0_i32, %c0_i32_0 : i32, i32, i32
  }
  func.func @transform_3(%arg0: i32, %arg1: i32) -> (i32, i32, i32) {
    %c0_i32 = arith.constant 0 : i32
    %c0_i32_0 = arith.constant 0 : i32
    %c0_i32_1 = arith.constant 0 : i32
    return %arg0, %c0_i32, %c0_i32_0 : i32, i32, i32
  }
  func.func @transform_4(%arg0: i32, %arg1: i32) -> (i32, i32, i32) {
    %c0_i32 = arith.constant 0 : i32
    %c0_i32_0 = arith.constant 0 : i32
    %c0_i32_1 = arith.constant 0 : i32
    return %arg0, %c0_i32, %c0_i32_0 : i32, i32, i32
  }
  func.func @transform_5(%arg0: i32, %arg1: i32) -> (i32, i32, i32) {
    %c2_i32 = arith.constant 2 : i32
    %0 = arith.muli %c2_i32, %arg1 : i32
    %c0_i32 = arith.constant 0 : i32
    %1 = arith.subi %c0_i32, %0 : i32
    %2 = arith.muli %arg0, %1 : i32
    %3 = arith.addi %arg1, %2 : i32
    %c0_i32_0 = arith.constant 0 : i32
    %c0_i32_1 = arith.constant 0 : i32
    return %3, %c0_i32_0, %arg0 : i32, i32, i32
  }
  func.func @transform_6(%arg0: i32, %arg1: i32) -> (i32, i32, i32) {
    %c0_i32 = arith.constant 0 : i32
    %c0_i32_0 = arith.constant 0 : i32
    %c0_i32_1 = arith.constant 0 : i32
    return %arg0, %c0_i32, %c0_i32_0 : i32, i32, i32
  }
  func.func @transform_7(%arg0: i32, %arg1: i32) -> (i32, i32, i32) {
    %c0_i32 = arith.constant 0 : i32
    %c0_i32_0 = arith.constant 0 : i32
    %c0_i32_1 = arith.constant 0 : i32
    return %arg0, %c0_i32, %c0_i32_0 : i32, i32, i32
  }
}

module attributes {stable_mosaic.version = 11 : i64} {
  func.func @bilstm_kernel(%arg0: i32, %arg1: i32, %arg2: memref<8x1xi32, #tpu.memory_space<vmem>>, %arg3: memref<64x128xbf16, #tpu.memory_space<vmem>>, %arg4: memref<1x128x512xbf16, #tpu.memory_space<vmem>>, %arg5: memref<1x128x512xbf16, #tpu.memory_space<vmem>>, %arg6: memref<1x1x512xf32, #tpu.memory_space<vmem>>, %arg7: memref<8x8x128xbf16, #tpu.memory_space<vmem>>, %arg8: memref<1x8x128xf32, #tpu.memory_space<vmem>>, %arg9: memref<1x8x128xf32, #tpu.memory_space<vmem>>, %arg10: memref<8x128xf32, #tpu.memory_space<vmem>>, %arg11: memref<8x128xf32, #tpu.memory_space<vmem>>, %arg12: memref<64x512xf32, #tpu.memory_space<vmem>>) attributes {dimension_semantics = [#tpu.dimension_semantics<parallel>, #tpu.dimension_semantics<arbitrary>], iteration_bounds = array<i64: 2, 1>, scalar_prefetch = 0 : i64, scratch_operands = 3 : i64, tpu.core_type = #tpu.core_type<tc>, window_params = [{pipeline_mode = #tpu.pipeline_mode<synchronous>, transform_indices = @transform_0, window_bounds = array<i64: 8, 1>}, {transform_indices = @transform_1, window_bounds = array<i64: 64, 128>}, {transform_indices = @transform_2, window_bounds = array<i64: 1, 128, 512>}, {transform_indices = @transform_3, window_bounds = array<i64: 1, 128, 512>}, {transform_indices = @transform_4, window_bounds = array<i64: 1, 1, 512>}, {transform_indices = @transform_5, window_bounds = array<i64: 8, 8, 128>}, {transform_indices = @transform_6, window_bounds = array<i64: 1, 8, 128>}, {transform_indices = @transform_7, window_bounds = array<i64: 1, 8, 128>}]} {
    %c2_i32 = arith.constant 2 : i32
    %0 = arith.muli %c2_i32, %arg1 : i32
    %c0_i32 = arith.constant 0 : i32
    %1 = arith.subi %c0_i32, %0 : i32
    %2 = arith.muli %arg0, %1 : i32
    %3 = arith.addi %arg1, %2 : i32
    %c8_i32 = arith.constant 8 : i32
    %4 = arith.muli %3, %c8_i32 : i32
    %c0_i32_0 = arith.constant 0 : i32
    %5 = arith.cmpi eq, %arg1, %c0_i32_0 : i32
    %6 = arith.extui %5 : i1 to i32
    %c0_i32_1 = arith.constant 0 : i32
    %7 = arith.cmpi ne, %6, %c0_i32_1 : i32
    scf.if %7 {
      %cst_117 = arith.constant 0.000000e+00 : f32
      %413 = vector.broadcast %cst_117 : f32 to vector<8x128xf32>
      %c0_118 = arith.constant 0 : index
      %c0_119 = arith.constant 0 : index
      %414 = vector.load %arg10[%c0_118, %c0_119] : memref<8x128xf32, #tpu.memory_space<vmem>>, vector<8x128xf32>
      tpu.vector_store %arg10[%c0_118, %c0_119], %413 {strides = array<i32>} : memref<8x128xf32, #tpu.memory_space<vmem>>, vector<8x128xf32>,
      %cst_120 = arith.constant 0.000000e+00 : f32
      %415 = vector.broadcast %cst_120 : f32 to vector<8x128xf32>
      %c0_121 = arith.constant 0 : index
      %c0_122 = arith.constant 0 : index
      %416 = vector.load %arg11[%c0_121, %c0_122] : memref<8x128xf32, #tpu.memory_space<vmem>>, vector<8x128xf32>
      tpu.vector_store %arg11[%c0_121, %c0_122], %415 {strides = array<i32>} : memref<8x128xf32, #tpu.memory_space<vmem>>, vector<8x128xf32>,
    } else {
    }
    %c0 = arith.constant 0 : index
    %c0_2 = arith.constant 0 : index
    %8 = vector.load %arg3[%c0, %c0_2] : memref<64x128xbf16, #tpu.memory_space<vmem>>, vector<64x128xbf16>
    %c0_3 = arith.constant 0 : index
    %c0_4 = arith.constant 0 : index
    %c0_5 = arith.constant 0 : index
    %9 = vector.load %arg4[%c0_3, %c0_4, %c0_5] : memref<1x128x512xbf16, #tpu.memory_space<vmem>>, vector<1x128x512xbf16>
    %10 = vector.shape_cast %9 : vector<1x128x512xbf16> to vector<128x512xbf16>
    %cst = arith.constant dense<0.000000e+00> : vector<64x512xf32>
    %11 = tpu.matmul %8, %10, %cst {dimension_numbers = #tpu.dot_dimension_numbers<[1], [0], [0], [1], [0, 0, 1, 1], [], []>} : vector<64x128xbf16>, vector<128x512xbf16>, vector<64x512xf32> -> vector<64x512xf32>
    %c0_6 = arith.constant 0 : index
    %c0_7 = arith.constant 0 : index
    %c0_8 = arith.constant 0 : index
    %12 = vector.load %arg6[%c0_6, %c0_7, %c0_8] : memref<1x1x512xf32, #tpu.memory_space<vmem>>, vector<1x1x512xf32>
    %13 = vector.shape_cast %12 : vector<1x1x512xf32> to vector<1x512xf32>
    %14 = vector.broadcast %13 : vector<1x512xf32> to vector<64x512xf32>
    %15 = arith.addf %11, %14 : vector<64x512xf32>
    %c0_9 = arith.constant 0 : index
    %c0_10 = arith.constant 0 : index
    %16 = vector.load %arg12[%c0_9, %c0_10] : memref<64x512xf32, #tpu.memory_space<vmem>>, vector<64x512xf32>
    tpu.vector_store %arg12[%c0_9, %c0_10], %15 {strides = array<i32>} : memref<64x512xf32, #tpu.memory_space<vmem>>, vector<64x512xf32>,
    %c0_11 = arith.constant 0 : index
    %c0_12 = arith.constant 0 : index
    %c0_13 = arith.constant 0 : index
    %17 = vector.load %arg5[%c0_11, %c0_12, %c0_13] : memref<1x128x512xbf16, #tpu.memory_space<vmem>>, vector<1x128x512xbf16>
    %18 = vector.shape_cast %17 : vector<1x128x512xbf16> to vector<128x512xbf16>
    %c0_14 = arith.constant 0 : index
    %c0_15 = arith.constant 0 : index
    %19 = vector.load %arg2[%c0_14, %c0_15] : memref<8x1xi32, #tpu.memory_space<vmem>>, vector<8x1xi32>
    %20 = vector.shape_cast %19 : vector<8x1xi32> to vector<8x1xi32>
    %21 = vector.broadcast %20 : vector<8x1xi32> to vector<8x128xi32>
    %c0_16 = arith.constant 0 : index
    %c0_17 = arith.constant 0 : index
    %22 = vector.load %arg10[%c0_16, %c0_17] : memref<8x128xf32, #tpu.memory_space<vmem>>, vector<8x128xf32>
    %c0_18 = arith.constant 0 : index
    %c0_19 = arith.constant 0 : index
    %23 = vector.load %arg11[%c0_18, %c0_19] : memref<8x128xf32, #tpu.memory_space<vmem>>, vector<8x128xf32>
    %c0_i32_20 = arith.constant 0 : i32
    %c2_i32_21 = arith.constant 2 : i32
    %24 = arith.muli %c2_i32_21, %c0_i32_20 : i32
    %c7_i32 = arith.constant 7 : i32
    %25 = arith.subi %c7_i32, %24 : i32
    %26 = arith.muli %arg0, %25 : i32
    %27 = arith.addi %c0_i32_20, %26 : i32
    %c8_i32_22 = arith.constant 8 : i32
    %28 = arith.muli %27, %c8_i32_22 : i32
    %29 = tpu.assume_multiple %28, 8 : i32
    %30 = arith.index_cast %29 : i32 to index
    %c0_23 = arith.constant 0 : index
    %31 = vector.load %arg12[%30, %c0_23] : memref<64x512xf32, #tpu.memory_space<vmem>>, vector<8x512xf32>
    %32 = arith.truncf %22 : vector<8x128xf32> to vector<8x128xbf16>
    %cst_24 = arith.constant dense<0.000000e+00> : vector<8x512xf32>
    %33 = tpu.matmul %32, %18, %cst_24 {dimension_numbers = #tpu.dot_dimension_numbers<[1], [0], [0], [1], [0, 0, 1, 1], [], []>} : vector<8x128xbf16>, vector<128x512xbf16>, vector<8x512xf32> -> vector<8x512xf32>
    %34 = arith.addf %31, %33 : vector<8x512xf32>
    %35 = vector.extract_strided_slice %34 {offsets = [0, 0], sizes = [8, 128], strides = [1, 1]} : vector<8x512xf32> to vector<8x128xf32>
    %36 = arith.negf %35 : vector<8x128xf32>
    %37 = math.exp %36 : vector<8x128xf32>
    %cst_25 = arith.constant 1.000000e+00 : f32
    %38 = vector.broadcast %cst_25 : f32 to vector<8x128xf32>
    %39 = arith.addf %38, %37 : vector<8x128xf32>
    %40 = arith.divf %38, %39 : vector<8x128xf32>
    %41 = vector.extract_strided_slice %34 {offsets = [0, 128], sizes = [8, 128], strides = [1, 1]} : vector<8x512xf32> to vector<8x128xf32>
    %42 = arith.negf %41 : vector<8x128xf32>
    %43 = math.exp %42 : vector<8x128xf32>
    %cst_26 = arith.constant 1.000000e+00 : f32
    %44 = vector.broadcast %cst_26 : f32 to vector<8x128xf32>
    %45 = arith.addf %44, %43 : vector<8x128xf32>
    %46 = arith.divf %44, %45 : vector<8x128xf32>
    %47 = vector.extract_strided_slice %34 {offsets = [0, 256], sizes = [8, 128], strides = [1, 1]} : vector<8x512xf32> to vector<8x128xf32>
    %48 = math.tanh %47 : vector<8x128xf32>
    %49 = vector.extract_strided_slice %34 {offsets = [0, 384], sizes = [8, 128], strides = [1, 1]} : vector<8x512xf32> to vector<8x128xf32>
    %50 = arith.negf %49 : vector<8x128xf32>
    %51 = math.exp %50 : vector<8x128xf32>
    %cst_27 = arith.constant 1.000000e+00 : f32
    %52 = vector.broadcast %cst_27 : f32 to vector<8x128xf32>
    %53 = arith.addf %52, %51 : vector<8x128xf32>
    %54 = arith.divf %52, %53 : vector<8x128xf32>
    %55 = arith.mulf %46, %23 : vector<8x128xf32>
    %56 = arith.mulf %40, %48 : vector<8x128xf32>
    %57 = arith.addf %55, %56 : vector<8x128xf32>
    %58 = math.tanh %57 : vector<8x128xf32>
    %59 = arith.mulf %54, %58 : vector<8x128xf32>
    %60 = arith.addi %4, %27 : i32
    %61 = vector.broadcast %60 : i32 to vector<8x128xi32>
    %62 = arith.cmpi sgt, %21, %61 : vector<8x128xi32>
    %63 = arith.select %62, %59, %22 : vector<8x128xi1>, vector<8x128xf32>
    %64 = arith.select %62, %57, %23 : vector<8x128xi1>, vector<8x128xf32>
    %cst_28 = arith.constant 0.000000e+00 : f32
    %65 = vector.broadcast %cst_28 : f32 to vector<8x128xf32>
    %66 = arith.select %62, %59, %65 : vector<8x128xi1>, vector<8x128xf32>
    %67 = arith.truncf %66 : vector<8x128xf32> to vector<8x128xbf16>
    %68 = arith.index_cast %27 : i32 to index
    %c0_29 = arith.constant 0 : index
    %c0_30 = arith.constant 0 : index
    %69 = vector.load %arg7[%68, %c0_29, %c0_30] : memref<8x8x128xbf16, #tpu.memory_space<vmem>>, vector<1x8x128xbf16>
    %70 = vector.shape_cast %69 : vector<1x8x128xbf16> to vector<8x128xbf16>
    %71 = vector.shape_cast %67 : vector<8x128xbf16> to vector<1x8x128xbf16>
    tpu.vector_store %arg7[%68, %c0_29, %c0_30], %71 {strides = array<i32>} : memref<8x8x128xbf16, #tpu.memory_space<vmem>>, vector<1x8x128xbf16>,
    %c1_i32 = arith.constant 1 : i32
    %c2_i32_31 = arith.constant 2 : i32
    %72 = arith.muli %c2_i32_31, %c1_i32 : i32
    %c7_i32_32 = arith.constant 7 : i32
    %73 = arith.subi %c7_i32_32, %72 : i32
    %74 = arith.muli %arg0, %73 : i32
    %75 = arith.addi %c1_i32, %74 : i32
    %c8_i32_33 = arith.constant 8 : i32
    %76 = arith.muli %75, %c8_i32_33 : i32
    %77 = tpu.assume_multiple %76, 8 : i32
    %78 = arith.index_cast %77 : i32 to index
    %c0_34 = arith.constant 0 : index
    %79 = vector.load %arg12[%78, %c0_34] : memref<64x512xf32, #tpu.memory_space<vmem>>, vector<8x512xf32>
    %80 = arith.truncf %63 : vector<8x128xf32> to vector<8x128xbf16>
    %cst_35 = arith.constant dense<0.000000e+00> : vector<8x512xf32>
    %81 = tpu.matmul %80, %18, %cst_35 {dimension_numbers = #tpu.dot_dimension_numbers<[1], [0], [0], [1], [0, 0, 1, 1], [], []>} : vector<8x128xbf16>, vector<128x512xbf16>, vector<8x512xf32> -> vector<8x512xf32>
    %82 = arith.addf %79, %81 : vector<8x512xf32>
    %83 = vector.extract_strided_slice %82 {offsets = [0, 0], sizes = [8, 128], strides = [1, 1]} : vector<8x512xf32> to vector<8x128xf32>
    %84 = arith.negf %83 : vector<8x128xf32>
    %85 = math.exp %84 : vector<8x128xf32>
    %cst_36 = arith.constant 1.000000e+00 : f32
    %86 = vector.broadcast %cst_36 : f32 to vector<8x128xf32>
    %87 = arith.addf %86, %85 : vector<8x128xf32>
    %88 = arith.divf %86, %87 : vector<8x128xf32>
    %89 = vector.extract_strided_slice %82 {offsets = [0, 128], sizes = [8, 128], strides = [1, 1]} : vector<8x512xf32> to vector<8x128xf32>
    %90 = arith.negf %89 : vector<8x128xf32>
    %91 = math.exp %90 : vector<8x128xf32>
    %cst_37 = arith.constant 1.000000e+00 : f32
    %92 = vector.broadcast %cst_37 : f32 to vector<8x128xf32>
    %93 = arith.addf %92, %91 : vector<8x128xf32>
    %94 = arith.divf %92, %93 : vector<8x128xf32>
    %95 = vector.extract_strided_slice %82 {offsets = [0, 256], sizes = [8, 128], strides = [1, 1]} : vector<8x512xf32> to vector<8x128xf32>
    %96 = math.tanh %95 : vector<8x128xf32>
    %97 = vector.extract_strided_slice %82 {offsets = [0, 384], sizes = [8, 128], strides = [1, 1]} : vector<8x512xf32> to vector<8x128xf32>
    %98 = arith.negf %97 : vector<8x128xf32>
    %99 = math.exp %98 : vector<8x128xf32>
    %cst_38 = arith.constant 1.000000e+00 : f32
    %100 = vector.broadcast %cst_38 : f32 to vector<8x128xf32>
    %101 = arith.addf %100, %99 : vector<8x128xf32>
    %102 = arith.divf %100, %101 : vector<8x128xf32>
    %103 = arith.mulf %94, %64 : vector<8x128xf32>
    %104 = arith.mulf %88, %96 : vector<8x128xf32>
    %105 = arith.addf %103, %104 : vector<8x128xf32>
    %106 = math.tanh %105 : vector<8x128xf32>
    %107 = arith.mulf %102, %106 : vector<8x128xf32>
    %108 = arith.addi %4, %75 : i32
    %109 = vector.broadcast %108 : i32 to vector<8x128xi32>
    %110 = arith.cmpi sgt, %21, %109 : vector<8x128xi32>
    %111 = arith.select %110, %107, %63 : vector<8x128xi1>, vector<8x128xf32>
    %112 = arith.select %110, %105, %64 : vector<8x128xi1>, vector<8x128xf32>
    %cst_39 = arith.constant 0.000000e+00 : f32
    %113 = vector.broadcast %cst_39 : f32 to vector<8x128xf32>
    %114 = arith.select %110, %107, %113 : vector<8x128xi1>, vector<8x128xf32>
    %115 = arith.truncf %114 : vector<8x128xf32> to vector<8x128xbf16>
    %116 = arith.index_cast %75 : i32 to index
    %c0_40 = arith.constant 0 : index
    %c0_41 = arith.constant 0 : index
    %117 = vector.load %arg7[%116, %c0_40, %c0_41] : memref<8x8x128xbf16, #tpu.memory_space<vmem>>, vector<1x8x128xbf16>
    %118 = vector.shape_cast %117 : vector<1x8x128xbf16> to vector<8x128xbf16>
    %119 = vector.shape_cast %115 : vector<8x128xbf16> to vector<1x8x128xbf16>
    tpu.vector_store %arg7[%116, %c0_40, %c0_41], %119 {strides = array<i32>} : memref<8x8x128xbf16, #tpu.memory_space<vmem>>, vector<1x8x128xbf16>,
    %c2_i32_42 = arith.constant 2 : i32
    %c2_i32_43 = arith.constant 2 : i32
    %120 = arith.muli %c2_i32_43, %c2_i32_42 : i32
    %c7_i32_44 = arith.constant 7 : i32
    %121 = arith.subi %c7_i32_44, %120 : i32
    %122 = arith.muli %arg0, %121 : i32
    %123 = arith.addi %c2_i32_42, %122 : i32
    %c8_i32_45 = arith.constant 8 : i32
    %124 = arith.muli %123, %c8_i32_45 : i32
    %125 = tpu.assume_multiple %124, 8 : i32
    %126 = arith.index_cast %125 : i32 to index
    %c0_46 = arith.constant 0 : index
    %127 = vector.load %arg12[%126, %c0_46] : memref<64x512xf32, #tpu.memory_space<vmem>>, vector<8x512xf32>
    %128 = arith.truncf %111 : vector<8x128xf32> to vector<8x128xbf16>
    %cst_47 = arith.constant dense<0.000000e+00> : vector<8x512xf32>
    %129 = tpu.matmul %128, %18, %cst_47 {dimension_numbers = #tpu.dot_dimension_numbers<[1], [0], [0], [1], [0, 0, 1, 1], [], []>} : vector<8x128xbf16>, vector<128x512xbf16>, vector<8x512xf32> -> vector<8x512xf32>
    %130 = arith.addf %127, %129 : vector<8x512xf32>
    %131 = vector.extract_strided_slice %130 {offsets = [0, 0], sizes = [8, 128], strides = [1, 1]} : vector<8x512xf32> to vector<8x128xf32>
    %132 = arith.negf %131 : vector<8x128xf32>
    %133 = math.exp %132 : vector<8x128xf32>
    %cst_48 = arith.constant 1.000000e+00 : f32
    %134 = vector.broadcast %cst_48 : f32 to vector<8x128xf32>
    %135 = arith.addf %134, %133 : vector<8x128xf32>
    %136 = arith.divf %134, %135 : vector<8x128xf32>
    %137 = vector.extract_strided_slice %130 {offsets = [0, 128], sizes = [8, 128], strides = [1, 1]} : vector<8x512xf32> to vector<8x128xf32>
    %138 = arith.negf %137 : vector<8x128xf32>
    %139 = math.exp %138 : vector<8x128xf32>
    %cst_49 = arith.constant 1.000000e+00 : f32
    %140 = vector.broadcast %cst_49 : f32 to vector<8x128xf32>
    %141 = arith.addf %140, %139 : vector<8x128xf32>
    %142 = arith.divf %140, %141 : vector<8x128xf32>
    %143 = vector.extract_strided_slice %130 {offsets = [0, 256], sizes = [8, 128], strides = [1, 1]} : vector<8x512xf32> to vector<8x128xf32>
    %144 = math.tanh %143 : vector<8x128xf32>
    %145 = vector.extract_strided_slice %130 {offsets = [0, 384], sizes = [8, 128], strides = [1, 1]} : vector<8x512xf32> to vector<8x128xf32>
    %146 = arith.negf %145 : vector<8x128xf32>
    %147 = math.exp %146 : vector<8x128xf32>
    %cst_50 = arith.constant 1.000000e+00 : f32
    %148 = vector.broadcast %cst_50 : f32 to vector<8x128xf32>
    %149 = arith.addf %148, %147 : vector<8x128xf32>
    %150 = arith.divf %148, %149 : vector<8x128xf32>
    %151 = arith.mulf %142, %112 : vector<8x128xf32>
    %152 = arith.mulf %136, %144 : vector<8x128xf32>
    %153 = arith.addf %151, %152 : vector<8x128xf32>
    %154 = math.tanh %153 : vector<8x128xf32>
    %155 = arith.mulf %150, %154 : vector<8x128xf32>
    %156 = arith.addi %4, %123 : i32
    %157 = vector.broadcast %156 : i32 to vector<8x128xi32>
    %158 = arith.cmpi sgt, %21, %157 : vector<8x128xi32>
    %159 = arith.select %158, %155, %111 : vector<8x128xi1>, vector<8x128xf32>
    %160 = arith.select %158, %153, %112 : vector<8x128xi1>, vector<8x128xf32>
    %cst_51 = arith.constant 0.000000e+00 : f32
    %161 = vector.broadcast %cst_51 : f32 to vector<8x128xf32>
    %162 = arith.select %158, %155, %161 : vector<8x128xi1>, vector<8x128xf32>
    %163 = arith.truncf %162 : vector<8x128xf32> to vector<8x128xbf16>
    %164 = arith.index_cast %123 : i32 to index
    %c0_52 = arith.constant 0 : index
    %c0_53 = arith.constant 0 : index
    %165 = vector.load %arg7[%164, %c0_52, %c0_53] : memref<8x8x128xbf16, #tpu.memory_space<vmem>>, vector<1x8x128xbf16>
    %166 = vector.shape_cast %165 : vector<1x8x128xbf16> to vector<8x128xbf16>
    %167 = vector.shape_cast %163 : vector<8x128xbf16> to vector<1x8x128xbf16>
    tpu.vector_store %arg7[%164, %c0_52, %c0_53], %167 {strides = array<i32>} : memref<8x8x128xbf16, #tpu.memory_space<vmem>>, vector<1x8x128xbf16>,
    %c3_i32 = arith.constant 3 : i32
    %c2_i32_54 = arith.constant 2 : i32
    %168 = arith.muli %c2_i32_54, %c3_i32 : i32
    %c7_i32_55 = arith.constant 7 : i32
    %169 = arith.subi %c7_i32_55, %168 : i32
    %170 = arith.muli %arg0, %169 : i32
    %171 = arith.addi %c3_i32, %170 : i32
    %c8_i32_56 = arith.constant 8 : i32
    %172 = arith.muli %171, %c8_i32_56 : i32
    %173 = tpu.assume_multiple %172, 8 : i32
    %174 = arith.index_cast %173 : i32 to index
    %c0_57 = arith.constant 0 : index
    %175 = vector.load %arg12[%174, %c0_57] : memref<64x512xf32, #tpu.memory_space<vmem>>, vector<8x512xf32>
    %176 = arith.truncf %159 : vector<8x128xf32> to vector<8x128xbf16>
    %cst_58 = arith.constant dense<0.000000e+00> : vector<8x512xf32>
    %177 = tpu.matmul %176, %18, %cst_58 {dimension_numbers = #tpu.dot_dimension_numbers<[1], [0], [0], [1], [0, 0, 1, 1], [], []>} : vector<8x128xbf16>, vector<128x512xbf16>, vector<8x512xf32> -> vector<8x512xf32>
    %178 = arith.addf %175, %177 : vector<8x512xf32>
    %179 = vector.extract_strided_slice %178 {offsets = [0, 0], sizes = [8, 128], strides = [1, 1]} : vector<8x512xf32> to vector<8x128xf32>
    %180 = arith.negf %179 : vector<8x128xf32>
    %181 = math.exp %180 : vector<8x128xf32>
    %cst_59 = arith.constant 1.000000e+00 : f32
    %182 = vector.broadcast %cst_59 : f32 to vector<8x128xf32>
    %183 = arith.addf %182, %181 : vector<8x128xf32>
    %184 = arith.divf %182, %183 : vector<8x128xf32>
    %185 = vector.extract_strided_slice %178 {offsets = [0, 128], sizes = [8, 128], strides = [1, 1]} : vector<8x512xf32> to vector<8x128xf32>
    %186 = arith.negf %185 : vector<8x128xf32>
    %187 = math.exp %186 : vector<8x128xf32>
    %cst_60 = arith.constant 1.000000e+00 : f32
    %188 = vector.broadcast %cst_60 : f32 to vector<8x128xf32>
    %189 = arith.addf %188, %187 : vector<8x128xf32>
    %190 = arith.divf %188, %189 : vector<8x128xf32>
    %191 = vector.extract_strided_slice %178 {offsets = [0, 256], sizes = [8, 128], strides = [1, 1]} : vector<8x512xf32> to vector<8x128xf32>
    %192 = math.tanh %191 : vector<8x128xf32>
    %193 = vector.extract_strided_slice %178 {offsets = [0, 384], sizes = [8, 128], strides = [1, 1]} : vector<8x512xf32> to vector<8x128xf32>
    %194 = arith.negf %193 : vector<8x128xf32>
    %195 = math.exp %194 : vector<8x128xf32>
    %cst_61 = arith.constant 1.000000e+00 : f32
    %196 = vector.broadcast %cst_61 : f32 to vector<8x128xf32>
    %197 = arith.addf %196, %195 : vector<8x128xf32>
    %198 = arith.divf %196, %197 : vector<8x128xf32>
    %199 = arith.mulf %190, %160 : vector<8x128xf32>
    %200 = arith.mulf %184, %192 : vector<8x128xf32>
    %201 = arith.addf %199, %200 : vector<8x128xf32>
    %202 = math.tanh %201 : vector<8x128xf32>
    %203 = arith.mulf %198, %202 : vector<8x128xf32>
    %204 = arith.addi %4, %171 : i32
    %205 = vector.broadcast %204 : i32 to vector<8x128xi32>
    %206 = arith.cmpi sgt, %21, %205 : vector<8x128xi32>
    %207 = arith.select %206, %203, %159 : vector<8x128xi1>, vector<8x128xf32>
    %208 = arith.select %206, %201, %160 : vector<8x128xi1>, vector<8x128xf32>
    %cst_62 = arith.constant 0.000000e+00 : f32
    %209 = vector.broadcast %cst_62 : f32 to vector<8x128xf32>
    %210 = arith.select %206, %203, %209 : vector<8x128xi1>, vector<8x128xf32>
    %211 = arith.truncf %210 : vector<8x128xf32> to vector<8x128xbf16>
    %212 = arith.index_cast %171 : i32 to index
    %c0_63 = arith.constant 0 : index
    %c0_64 = arith.constant 0 : index
    %213 = vector.load %arg7[%212, %c0_63, %c0_64] : memref<8x8x128xbf16, #tpu.memory_space<vmem>>, vector<1x8x128xbf16>
    %214 = vector.shape_cast %213 : vector<1x8x128xbf16> to vector<8x128xbf16>
    %215 = vector.shape_cast %211 : vector<8x128xbf16> to vector<1x8x128xbf16>
    tpu.vector_store %arg7[%212, %c0_63, %c0_64], %215 {strides = array<i32>} : memref<8x8x128xbf16, #tpu.memory_space<vmem>>, vector<1x8x128xbf16>,
    %c4_i32 = arith.constant 4 : i32
    %c2_i32_65 = arith.constant 2 : i32
    %216 = arith.muli %c2_i32_65, %c4_i32 : i32
    %c7_i32_66 = arith.constant 7 : i32
    %217 = arith.subi %c7_i32_66, %216 : i32
    %218 = arith.muli %arg0, %217 : i32
    %219 = arith.addi %c4_i32, %218 : i32
    %c8_i32_67 = arith.constant 8 : i32
    %220 = arith.muli %219, %c8_i32_67 : i32
    %221 = tpu.assume_multiple %220, 8 : i32
    %222 = arith.index_cast %221 : i32 to index
    %c0_68 = arith.constant 0 : index
    %223 = vector.load %arg12[%222, %c0_68] : memref<64x512xf32, #tpu.memory_space<vmem>>, vector<8x512xf32>
    %224 = arith.truncf %207 : vector<8x128xf32> to vector<8x128xbf16>
    %cst_69 = arith.constant dense<0.000000e+00> : vector<8x512xf32>
    %225 = tpu.matmul %224, %18, %cst_69 {dimension_numbers = #tpu.dot_dimension_numbers<[1], [0], [0], [1], [0, 0, 1, 1], [], []>} : vector<8x128xbf16>, vector<128x512xbf16>, vector<8x512xf32> -> vector<8x512xf32>
    %226 = arith.addf %223, %225 : vector<8x512xf32>
    %227 = vector.extract_strided_slice %226 {offsets = [0, 0], sizes = [8, 128], strides = [1, 1]} : vector<8x512xf32> to vector<8x128xf32>
    %228 = arith.negf %227 : vector<8x128xf32>
    %229 = math.exp %228 : vector<8x128xf32>
    %cst_70 = arith.constant 1.000000e+00 : f32
    %230 = vector.broadcast %cst_70 : f32 to vector<8x128xf32>
    %231 = arith.addf %230, %229 : vector<8x128xf32>
    %232 = arith.divf %230, %231 : vector<8x128xf32>
    %233 = vector.extract_strided_slice %226 {offsets = [0, 128], sizes = [8, 128], strides = [1, 1]} : vector<8x512xf32> to vector<8x128xf32>
    %234 = arith.negf %233 : vector<8x128xf32>
    %235 = math.exp %234 : vector<8x128xf32>
    %cst_71 = arith.constant 1.000000e+00 : f32
    %236 = vector.broadcast %cst_71 : f32 to vector<8x128xf32>
    %237 = arith.addf %236, %235 : vector<8x128xf32>
    %238 = arith.divf %236, %237 : vector<8x128xf32>
    %239 = vector.extract_strided_slice %226 {offsets = [0, 256], sizes = [8, 128], strides = [1, 1]} : vector<8x512xf32> to vector<8x128xf32>
    %240 = math.tanh %239 : vector<8x128xf32>
    %241 = vector.extract_strided_slice %226 {offsets = [0, 384], sizes = [8, 128], strides = [1, 1]} : vector<8x512xf32> to vector<8x128xf32>
    %242 = arith.negf %241 : vector<8x128xf32>
    %243 = math.exp %242 : vector<8x128xf32>
    %cst_72 = arith.constant 1.000000e+00 : f32
    %244 = vector.broadcast %cst_72 : f32 to vector<8x128xf32>
    %245 = arith.addf %244, %243 : vector<8x128xf32>
    %246 = arith.divf %244, %245 : vector<8x128xf32>
    %247 = arith.mulf %238, %208 : vector<8x128xf32>
    %248 = arith.mulf %232, %240 : vector<8x128xf32>
    %249 = arith.addf %247, %248 : vector<8x128xf32>
    %250 = math.tanh %249 : vector<8x128xf32>
    %251 = arith.mulf %246, %250 : vector<8x128xf32>
    %252 = arith.addi %4, %219 : i32
    %253 = vector.broadcast %252 : i32 to vector<8x128xi32>
    %254 = arith.cmpi sgt, %21, %253 : vector<8x128xi32>
    %255 = arith.select %254, %251, %207 : vector<8x128xi1>, vector<8x128xf32>
    %256 = arith.select %254, %249, %208 : vector<8x128xi1>, vector<8x128xf32>
    %cst_73 = arith.constant 0.000000e+00 : f32
    %257 = vector.broadcast %cst_73 : f32 to vector<8x128xf32>
    %258 = arith.select %254, %251, %257 : vector<8x128xi1>, vector<8x128xf32>
    %259 = arith.truncf %258 : vector<8x128xf32> to vector<8x128xbf16>
    %260 = arith.index_cast %219 : i32 to index
    %c0_74 = arith.constant 0 : index
    %c0_75 = arith.constant 0 : index
    %261 = vector.load %arg7[%260, %c0_74, %c0_75] : memref<8x8x128xbf16, #tpu.memory_space<vmem>>, vector<1x8x128xbf16>
    %262 = vector.shape_cast %261 : vector<1x8x128xbf16> to vector<8x128xbf16>
    %263 = vector.shape_cast %259 : vector<8x128xbf16> to vector<1x8x128xbf16>
    tpu.vector_store %arg7[%260, %c0_74, %c0_75], %263 {strides = array<i32>} : memref<8x8x128xbf16, #tpu.memory_space<vmem>>, vector<1x8x128xbf16>,
    %c5_i32 = arith.constant 5 : i32
    %c2_i32_76 = arith.constant 2 : i32
    %264 = arith.muli %c2_i32_76, %c5_i32 : i32
    %c7_i32_77 = arith.constant 7 : i32
    %265 = arith.subi %c7_i32_77, %264 : i32
    %266 = arith.muli %arg0, %265 : i32
    %267 = arith.addi %c5_i32, %266 : i32
    %c8_i32_78 = arith.constant 8 : i32
    %268 = arith.muli %267, %c8_i32_78 : i32
    %269 = tpu.assume_multiple %268, 8 : i32
    %270 = arith.index_cast %269 : i32 to index
    %c0_79 = arith.constant 0 : index
    %271 = vector.load %arg12[%270, %c0_79] : memref<64x512xf32, #tpu.memory_space<vmem>>, vector<8x512xf32>
    %272 = arith.truncf %255 : vector<8x128xf32> to vector<8x128xbf16>
    %cst_80 = arith.constant dense<0.000000e+00> : vector<8x512xf32>
    %273 = tpu.matmul %272, %18, %cst_80 {dimension_numbers = #tpu.dot_dimension_numbers<[1], [0], [0], [1], [0, 0, 1, 1], [], []>} : vector<8x128xbf16>, vector<128x512xbf16>, vector<8x512xf32> -> vector<8x512xf32>
    %274 = arith.addf %271, %273 : vector<8x512xf32>
    %275 = vector.extract_strided_slice %274 {offsets = [0, 0], sizes = [8, 128], strides = [1, 1]} : vector<8x512xf32> to vector<8x128xf32>
    %276 = arith.negf %275 : vector<8x128xf32>
    %277 = math.exp %276 : vector<8x128xf32>
    %cst_81 = arith.constant 1.000000e+00 : f32
    %278 = vector.broadcast %cst_81 : f32 to vector<8x128xf32>
    %279 = arith.addf %278, %277 : vector<8x128xf32>
    %280 = arith.divf %278, %279 : vector<8x128xf32>
    %281 = vector.extract_strided_slice %274 {offsets = [0, 128], sizes = [8, 128], strides = [1, 1]} : vector<8x512xf32> to vector<8x128xf32>
    %282 = arith.negf %281 : vector<8x128xf32>
    %283 = math.exp %282 : vector<8x128xf32>
    %cst_82 = arith.constant 1.000000e+00 : f32
    %284 = vector.broadcast %cst_82 : f32 to vector<8x128xf32>
    %285 = arith.addf %284, %283 : vector<8x128xf32>
    %286 = arith.divf %284, %285 : vector<8x128xf32>
    %287 = vector.extract_strided_slice %274 {offsets = [0, 256], sizes = [8, 128], strides = [1, 1]} : vector<8x512xf32> to vector<8x128xf32>
    %288 = math.tanh %287 : vector<8x128xf32>
    %289 = vector.extract_strided_slice %274 {offsets = [0, 384], sizes = [8, 128], strides = [1, 1]} : vector<8x512xf32> to vector<8x128xf32>
    %290 = arith.negf %289 : vector<8x128xf32>
    %291 = math.exp %290 : vector<8x128xf32>
    %cst_83 = arith.constant 1.000000e+00 : f32
    %292 = vector.broadcast %cst_83 : f32 to vector<8x128xf32>
    %293 = arith.addf %292, %291 : vector<8x128xf32>
    %294 = arith.divf %292, %293 : vector<8x128xf32>
    %295 = arith.mulf %286, %256 : vector<8x128xf32>
    %296 = arith.mulf %280, %288 : vector<8x128xf32>
    %297 = arith.addf %295, %296 : vector<8x128xf32>
    %298 = math.tanh %297 : vector<8x128xf32>
    %299 = arith.mulf %294, %298 : vector<8x128xf32>
    %300 = arith.addi %4, %267 : i32
    %301 = vector.broadcast %300 : i32 to vector<8x128xi32>
    %302 = arith.cmpi sgt, %21, %301 : vector<8x128xi32>
    %303 = arith.select %302, %299, %255 : vector<8x128xi1>, vector<8x128xf32>
    %304 = arith.select %302, %297, %256 : vector<8x128xi1>, vector<8x128xf32>
    %cst_84 = arith.constant 0.000000e+00 : f32
    %305 = vector.broadcast %cst_84 : f32 to vector<8x128xf32>
    %306 = arith.select %302, %299, %305 : vector<8x128xi1>, vector<8x128xf32>
    %307 = arith.truncf %306 : vector<8x128xf32> to vector<8x128xbf16>
    %308 = arith.index_cast %267 : i32 to index
    %c0_85 = arith.constant 0 : index
    %c0_86 = arith.constant 0 : index
    %309 = vector.load %arg7[%308, %c0_85, %c0_86] : memref<8x8x128xbf16, #tpu.memory_space<vmem>>, vector<1x8x128xbf16>
    %310 = vector.shape_cast %309 : vector<1x8x128xbf16> to vector<8x128xbf16>
    %311 = vector.shape_cast %307 : vector<8x128xbf16> to vector<1x8x128xbf16>
    tpu.vector_store %arg7[%308, %c0_85, %c0_86], %311 {strides = array<i32>} : memref<8x8x128xbf16, #tpu.memory_space<vmem>>, vector<1x8x128xbf16>,
    %c6_i32 = arith.constant 6 : i32
    %c2_i32_87 = arith.constant 2 : i32
    %312 = arith.muli %c2_i32_87, %c6_i32 : i32
    %c7_i32_88 = arith.constant 7 : i32
    %313 = arith.subi %c7_i32_88, %312 : i32
    %314 = arith.muli %arg0, %313 : i32
    %315 = arith.addi %c6_i32, %314 : i32
    %c8_i32_89 = arith.constant 8 : i32
    %316 = arith.muli %315, %c8_i32_89 : i32
    %317 = tpu.assume_multiple %316, 8 : i32
    %318 = arith.index_cast %317 : i32 to index
    %c0_90 = arith.constant 0 : index
    %319 = vector.load %arg12[%318, %c0_90] : memref<64x512xf32, #tpu.memory_space<vmem>>, vector<8x512xf32>
    %320 = arith.truncf %303 : vector<8x128xf32> to vector<8x128xbf16>
    %cst_91 = arith.constant dense<0.000000e+00> : vector<8x512xf32>
    %321 = tpu.matmul %320, %18, %cst_91 {dimension_numbers = #tpu.dot_dimension_numbers<[1], [0], [0], [1], [0, 0, 1, 1], [], []>} : vector<8x128xbf16>, vector<128x512xbf16>, vector<8x512xf32> -> vector<8x512xf32>
    %322 = arith.addf %319, %321 : vector<8x512xf32>
    %323 = vector.extract_strided_slice %322 {offsets = [0, 0], sizes = [8, 128], strides = [1, 1]} : vector<8x512xf32> to vector<8x128xf32>
    %324 = arith.negf %323 : vector<8x128xf32>
    %325 = math.exp %324 : vector<8x128xf32>
    %cst_92 = arith.constant 1.000000e+00 : f32
    %326 = vector.broadcast %cst_92 : f32 to vector<8x128xf32>
    %327 = arith.addf %326, %325 : vector<8x128xf32>
    %328 = arith.divf %326, %327 : vector<8x128xf32>
    %329 = vector.extract_strided_slice %322 {offsets = [0, 128], sizes = [8, 128], strides = [1, 1]} : vector<8x512xf32> to vector<8x128xf32>
    %330 = arith.negf %329 : vector<8x128xf32>
    %331 = math.exp %330 : vector<8x128xf32>
    %cst_93 = arith.constant 1.000000e+00 : f32
    %332 = vector.broadcast %cst_93 : f32 to vector<8x128xf32>
    %333 = arith.addf %332, %331 : vector<8x128xf32>
    %334 = arith.divf %332, %333 : vector<8x128xf32>
    %335 = vector.extract_strided_slice %322 {offsets = [0, 256], sizes = [8, 128], strides = [1, 1]} : vector<8x512xf32> to vector<8x128xf32>
    %336 = math.tanh %335 : vector<8x128xf32>
    %337 = vector.extract_strided_slice %322 {offsets = [0, 384], sizes = [8, 128], strides = [1, 1]} : vector<8x512xf32> to vector<8x128xf32>
    %338 = arith.negf %337 : vector<8x128xf32>
    %339 = math.exp %338 : vector<8x128xf32>
    %cst_94 = arith.constant 1.000000e+00 : f32
    %340 = vector.broadcast %cst_94 : f32 to vector<8x128xf32>
    %341 = arith.addf %340, %339 : vector<8x128xf32>
    %342 = arith.divf %340, %341 : vector<8x128xf32>
    %343 = arith.mulf %334, %304 : vector<8x128xf32>
    %344 = arith.mulf %328, %336 : vector<8x128xf32>
    %345 = arith.addf %343, %344 : vector<8x128xf32>
    %346 = math.tanh %345 : vector<8x128xf32>
    %347 = arith.mulf %342, %346 : vector<8x128xf32>
    %348 = arith.addi %4, %315 : i32
    %349 = vector.broadcast %348 : i32 to vector<8x128xi32>
    %350 = arith.cmpi sgt, %21, %349 : vector<8x128xi32>
    %351 = arith.select %350, %347, %303 : vector<8x128xi1>, vector<8x128xf32>
    %352 = arith.select %350, %345, %304 : vector<8x128xi1>, vector<8x128xf32>
    %cst_95 = arith.constant 0.000000e+00 : f32
    %353 = vector.broadcast %cst_95 : f32 to vector<8x128xf32>
    %354 = arith.select %350, %347, %353 : vector<8x128xi1>, vector<8x128xf32>
    %355 = arith.truncf %354 : vector<8x128xf32> to vector<8x128xbf16>
    %356 = arith.index_cast %315 : i32 to index
    %c0_96 = arith.constant 0 : index
    %c0_97 = arith.constant 0 : index
    %357 = vector.load %arg7[%356, %c0_96, %c0_97] : memref<8x8x128xbf16, #tpu.memory_space<vmem>>, vector<1x8x128xbf16>
    %358 = vector.shape_cast %357 : vector<1x8x128xbf16> to vector<8x128xbf16>
    %359 = vector.shape_cast %355 : vector<8x128xbf16> to vector<1x8x128xbf16>
    tpu.vector_store %arg7[%356, %c0_96, %c0_97], %359 {strides = array<i32>} : memref<8x8x128xbf16, #tpu.memory_space<vmem>>, vector<1x8x128xbf16>,
    %c7_i32_98 = arith.constant 7 : i32
    %c2_i32_99 = arith.constant 2 : i32
    %360 = arith.muli %c2_i32_99, %c7_i32_98 : i32
    %c7_i32_100 = arith.constant 7 : i32
    %361 = arith.subi %c7_i32_100, %360 : i32
    %362 = arith.muli %arg0, %361 : i32
    %363 = arith.addi %c7_i32_98, %362 : i32
    %c8_i32_101 = arith.constant 8 : i32
    %364 = arith.muli %363, %c8_i32_101 : i32
    %365 = tpu.assume_multiple %364, 8 : i32
    %366 = arith.index_cast %365 : i32 to index
    %c0_102 = arith.constant 0 : index
    %367 = vector.load %arg12[%366, %c0_102] : memref<64x512xf32, #tpu.memory_space<vmem>>, vector<8x512xf32>
    %368 = arith.truncf %351 : vector<8x128xf32> to vector<8x128xbf16>
    %cst_103 = arith.constant dense<0.000000e+00> : vector<8x512xf32>
    %369 = tpu.matmul %368, %18, %cst_103 {dimension_numbers = #tpu.dot_dimension_numbers<[1], [0], [0], [1], [0, 0, 1, 1], [], []>} : vector<8x128xbf16>, vector<128x512xbf16>, vector<8x512xf32> -> vector<8x512xf32>
    %370 = arith.addf %367, %369 : vector<8x512xf32>
    %371 = vector.extract_strided_slice %370 {offsets = [0, 0], sizes = [8, 128], strides = [1, 1]} : vector<8x512xf32> to vector<8x128xf32>
    %372 = arith.negf %371 : vector<8x128xf32>
    %373 = math.exp %372 : vector<8x128xf32>
    %cst_104 = arith.constant 1.000000e+00 : f32
    %374 = vector.broadcast %cst_104 : f32 to vector<8x128xf32>
    %375 = arith.addf %374, %373 : vector<8x128xf32>
    %376 = arith.divf %374, %375 : vector<8x128xf32>
    %377 = vector.extract_strided_slice %370 {offsets = [0, 128], sizes = [8, 128], strides = [1, 1]} : vector<8x512xf32> to vector<8x128xf32>
    %378 = arith.negf %377 : vector<8x128xf32>
    %379 = math.exp %378 : vector<8x128xf32>
    %cst_105 = arith.constant 1.000000e+00 : f32
    %380 = vector.broadcast %cst_105 : f32 to vector<8x128xf32>
    %381 = arith.addf %380, %379 : vector<8x128xf32>
    %382 = arith.divf %380, %381 : vector<8x128xf32>
    %383 = vector.extract_strided_slice %370 {offsets = [0, 256], sizes = [8, 128], strides = [1, 1]} : vector<8x512xf32> to vector<8x128xf32>
    %384 = math.tanh %383 : vector<8x128xf32>
    %385 = vector.extract_strided_slice %370 {offsets = [0, 384], sizes = [8, 128], strides = [1, 1]} : vector<8x512xf32> to vector<8x128xf32>
    %386 = arith.negf %385 : vector<8x128xf32>
    %387 = math.exp %386 : vector<8x128xf32>
    %cst_106 = arith.constant 1.000000e+00 : f32
    %388 = vector.broadcast %cst_106 : f32 to vector<8x128xf32>
    %389 = arith.addf %388, %387 : vector<8x128xf32>
    %390 = arith.divf %388, %389 : vector<8x128xf32>
    %391 = arith.mulf %382, %352 : vector<8x128xf32>
    %392 = arith.mulf %376, %384 : vector<8x128xf32>
    %393 = arith.addf %391, %392 : vector<8x128xf32>
    %394 = math.tanh %393 : vector<8x128xf32>
    %395 = arith.mulf %390, %394 : vector<8x128xf32>
    %396 = arith.addi %4, %363 : i32
    %397 = vector.broadcast %396 : i32 to vector<8x128xi32>
    %398 = arith.cmpi sgt, %21, %397 : vector<8x128xi32>
    %399 = arith.select %398, %395, %351 : vector<8x128xi1>, vector<8x128xf32>
    %400 = arith.select %398, %393, %352 : vector<8x128xi1>, vector<8x128xf32>
    %cst_107 = arith.constant 0.000000e+00 : f32
    %401 = vector.broadcast %cst_107 : f32 to vector<8x128xf32>
    %402 = arith.select %398, %395, %401 : vector<8x128xi1>, vector<8x128xf32>
    %403 = arith.truncf %402 : vector<8x128xf32> to vector<8x128xbf16>
    %404 = arith.index_cast %363 : i32 to index
    %c0_108 = arith.constant 0 : index
    %c0_109 = arith.constant 0 : index
    %405 = vector.load %arg7[%404, %c0_108, %c0_109] : memref<8x8x128xbf16, #tpu.memory_space<vmem>>, vector<1x8x128xbf16>
    %406 = vector.shape_cast %405 : vector<1x8x128xbf16> to vector<8x128xbf16>
    %407 = vector.shape_cast %403 : vector<8x128xbf16> to vector<1x8x128xbf16>
    tpu.vector_store %arg7[%404, %c0_108, %c0_109], %407 {strides = array<i32>} : memref<8x8x128xbf16, #tpu.memory_space<vmem>>, vector<1x8x128xbf16>,
    %c8_i32_110 = arith.constant 8 : i32
    %c0_111 = arith.constant 0 : index
    %c0_112 = arith.constant 0 : index
    %408 = vector.load %arg10[%c0_111, %c0_112] : memref<8x128xf32, #tpu.memory_space<vmem>>, vector<8x128xf32>
    tpu.vector_store %arg10[%c0_111, %c0_112], %399 {strides = array<i32>} : memref<8x128xf32, #tpu.memory_space<vmem>>, vector<8x128xf32>,
    %c0_113 = arith.constant 0 : index
    %c0_114 = arith.constant 0 : index
    %409 = vector.load %arg11[%c0_113, %c0_114] : memref<8x128xf32, #tpu.memory_space<vmem>>, vector<8x128xf32>
    tpu.vector_store %arg11[%c0_113, %c0_114], %400 {strides = array<i32>} : memref<8x128xf32, #tpu.memory_space<vmem>>, vector<8x128xf32>,
    %c0_i32_115 = arith.constant 0 : i32
    %410 = arith.cmpi eq, %arg1, %c0_i32_115 : i32
    %411 = arith.extui %410 : i1 to i32
    %c0_i32_116 = arith.constant 0 : i32
    %412 = arith.cmpi ne, %411, %c0_i32_116 : i32
    scf.if %412 {
      %c0_117 = arith.constant 0 : index
      %c0_118 = arith.constant 0 : index
      %c0_119 = arith.constant 0 : index
      %413 = vector.load %arg8[%c0_117, %c0_118, %c0_119] : memref<1x8x128xf32, #tpu.memory_space<vmem>>, vector<1x8x128xf32>
      %414 = vector.shape_cast %413 : vector<1x8x128xf32> to vector<8x128xf32>
      %415 = vector.shape_cast %399 : vector<8x128xf32> to vector<1x8x128xf32>
      tpu.vector_store %arg8[%c0_117, %c0_118, %c0_119], %415 {strides = array<i32>} : memref<1x8x128xf32, #tpu.memory_space<vmem>>, vector<1x8x128xf32>,
      %c0_120 = arith.constant 0 : index
      %c0_121 = arith.constant 0 : index
      %c0_122 = arith.constant 0 : index
      %416 = vector.load %arg9[%c0_120, %c0_121, %c0_122] : memref<1x8x128xf32, #tpu.memory_space<vmem>>, vector<1x8x128xf32>
      %417 = vector.shape_cast %416 : vector<1x8x128xf32> to vector<8x128xf32>
      %418 = vector.shape_cast %400 : vector<8x128xf32> to vector<1x8x128xf32>
      tpu.vector_store %arg9[%c0_120, %c0_121, %c0_122], %418 {strides = array<i32>} : memref<1x8x128xf32, #tpu.memory_space<vmem>>, vector<1x8x128xf32>,
    } else {
    }
    return
  }
  func.func @transform_0(%arg0: i32, %arg1: i32) -> (i32, i32) {
    %c0_i32 = arith.constant 0 : i32
    %c0_i32_0 = arith.constant 0 : i32
    %c0_i32_1 = arith.constant 0 : i32
    return %c0_i32, %c0_i32_0 : i32, i32
  }
  func.func @transform_1(%arg0: i32, %arg1: i32) -> (i32, i32) {
    %c2_i32 = arith.constant 2 : i32
    %0 = arith.muli %c2_i32, %arg1 : i32
    %c0_i32 = arith.constant 0 : i32
    %1 = arith.subi %c0_i32, %0 : i32
    %2 = arith.muli %arg0, %1 : i32
    %3 = arith.addi %arg1, %2 : i32
    %c0_i32_0 = arith.constant 0 : i32
    %c0_i32_1 = arith.constant 0 : i32
    return %3, %c0_i32_0 : i32, i32
  }
  func.func @transform_2(%arg0: i32, %arg1: i32) -> (i32, i32, i32) {
    %c0_i32 = arith.constant 0 : i32
    %c0_i32_0 = arith.constant 0 : i32
    %c0_i32_1 = arith.constant 0 : i32
    return %arg0, %c0_i32, %c0_i32_0 : i32, i32, i32
  }
  func.func @transform_3(%arg0: i32, %arg1: i32) -> (i32, i32, i32) {
    %c0_i32 = arith.constant 0 : i32
    %c0_i32_0 = arith.constant 0 : i32
    %c0_i32_1 = arith.constant 0 : i32
    return %arg0, %c0_i32, %c0_i32_0 : i32, i32, i32
  }
  func.func @transform_4(%arg0: i32, %arg1: i32) -> (i32, i32, i32) {
    %c0_i32 = arith.constant 0 : i32
    %c0_i32_0 = arith.constant 0 : i32
    %c0_i32_1 = arith.constant 0 : i32
    return %arg0, %c0_i32, %c0_i32_0 : i32, i32, i32
  }
  func.func @transform_5(%arg0: i32, %arg1: i32) -> (i32, i32, i32) {
    %c2_i32 = arith.constant 2 : i32
    %0 = arith.muli %c2_i32, %arg1 : i32
    %c0_i32 = arith.constant 0 : i32
    %1 = arith.subi %c0_i32, %0 : i32
    %2 = arith.muli %arg0, %1 : i32
    %3 = arith.addi %arg1, %2 : i32
    %c0_i32_0 = arith.constant 0 : i32
    %c0_i32_1 = arith.constant 0 : i32
    return %3, %c0_i32_0, %arg0 : i32, i32, i32
  }
  func.func @transform_6(%arg0: i32, %arg1: i32) -> (i32, i32, i32) {
    %c0_i32 = arith.constant 0 : i32
    %c0_i32_0 = arith.constant 0 : i32
    %c0_i32_1 = arith.constant 0 : i32
    return %arg0, %c0_i32, %c0_i32_0 : i32, i32, i32
  }
  func.func @transform_7(%arg0: i32, %arg1: i32) -> (i32, i32, i32) {
    %c0_i32 = arith.constant 0 : i32
    %c0_i32_0 = arith.constant 0 : i32
    %c0_i32_1 = arith.constant 0 : i32
    return %arg0, %c0_i32, %c0_i32_0 : i32, i32, i32
  }
}

</mosaic_0001>

<llo_original>
// kernel: tpu_custom_call.1
$region0: #{tpu_custom_call.1}
  #allocation0 [shape = 'u32[]', space=smem, size = 0x4, offset = 0x4, fixed_abs, tag = 'smem constant byte address 0x4 - core index']
  #allocation1 [shape = 'u32[144,128]{1,0:T(1,128)}', space=vmem, size = 0x12000, scoped, tag = 'internal scratch']
  #allocation2 [shape = 'f32[8,128]{1,0:T(8,128)}', space=vmem, size = 0x1000, scoped, tag = 'scratch operand']
  #allocation3 [shape = 'f32[8,128]{1,0:T(8,128)}', space=vmem, size = 0x1000, scoped, tag = 'scratch operand']
  #allocation4 [shape = 'f32[64,512]{1,0:T(8,128)}', space=vmem, size = 0x20000, scoped, tag = 'scratch operand']
  %s0 = inlined_call_operand.vmem [shape: s32[8,1], index: 0, kind: input, shape index: {}]
  %s1 = inlined_call_operand.hbm [shape: bf16[64,128], index: 1, kind: input, shape index: {}]
  %s2 = inlined_call_operand.hbm [shape: bf16[2,128,512], index: 2, kind: input, shape index: {}]
  %s3 = inlined_call_operand.hbm [shape: bf16[2,128,512], index: 3, kind: input, shape index: {}]
  %s4 = inlined_call_operand.vmem [shape: f32[2,1,512], index: 4, kind: input, shape index: {}]
  %s5 = inlined_call_operand.hbm [shape: bf16[8,8,256], index: 5, kind: output, shape index: {0}]
  %s6 = inlined_call_operand.hbm [shape: f32[2,8,128], index: 6, kind: output, shape index: {1}]
  %s7 = inlined_call_operand.hbm [shape: f32[2,8,128], index: 7, kind: output, shape index: {2}]
  %8 = xla_tuple %s5, %s6, %s7
  %s9 = sld [smem:[#allocation0]]
  $region89: #{tpu_custom_call.1} parent=0
    _
  %s11 = ssub.s32 1, %s9
  %s12 = scalar_select 0, %s11, %s9
  $region1: #{tpu_custom_call.1} parent=0
    #allocation5 [shape = 'u8[32768]{0}', space=vmem, size = 0x8000, scoped, tag = 'input window, operand 1']
    #allocation6 [shape = 's32[2]{0}', space=sflag, size = 0x8, scoped, tag = 'scoped memory for tpu_custom_call.1']
    #allocation7 [shape = 's32[2]{0}', space=sflag, size = 0x8, scoped, tag = 'scoped memory for tpu_custom_call.1']
    #allocation8 [shape = 'u8[131072]{0}', space=vmem, size = 0x20000, scoped, tag = 'input window, operand 2, single buffered']
    #allocation9 [shape = 's32[1]{0}', space=sflag, size = 0x4, scoped, tag = 'scoped memory for tpu_custom_call.1']
    #allocation10 [shape = 'u8[131072]{0}', space=vmem, size = 0x20000, scoped, tag = 'input window, operand 3, single buffered']
    #allocation11 [shape = 'u8[32768]{0}', space=vmem, size = 0x8000, scoped, tag = 'output window, operand 0']
    #allocation12 [shape = 'u8[8192]{0}', space=vmem, size = 0x2000, scoped, tag = 'output window, operand 1']
    #allocation13 [shape = 's32[2]{0}', space=sflag, size = 0x8, scoped, tag = 'scoped memory for tpu_custom_call.1']
    #allocation14 [shape = 'u8[8192]{0}', space=vmem, size = 0x2000, scoped, tag = 'output window, operand 2']
    %13 = vsyncpa [#allocation6], 0
    %s14 = scalar_lea.sflag [#allocation6], 1
    %15 = vsyncpa %s14, 0
    %16 = vsyncpa [#allocation9], 0
    %17 = vsyncpa [#allocation7], 0
    %s18 = scalar_lea.sflag [#allocation7], 1
    %19 = vsyncpa %s18, 0
    %20 = vsyncpa [#allocation13], 0
    %s21 = scalar_lea.sflag [#allocation13], 1
    %22 = vsyncpa %s21, 0
    loop: start=0, step=1, limit=4
    $region2: #{tpu_custom_call.1} parent=1 // loop_pre_header
      _
    $region3: #{tpu_custom_call.1} parent=1 // loop_header
      %s24 = sphi 0, %s28
      %p25 = scmp.ge.s32.totalorder %s24, 4
      %s31 = sphi 0, %s43
      %s32 = sphi 0, %s39
      %s33 = sphi 0, %s31
      %s34 = sphi 0, %s32
      %s35 = sphi 0, %s33
      %s36 = sphi 0, %s34
      %s44 = sphi 0, %s44
      %s46 = sphi 0, %s44
      %s47 = sphi 0, %s46
      %s61 = sphi 0, %s47
      %s75 = sphi 0, %s77
      %s78 = sphi 0, %s75
      %s79 = sphi 0, %s78
      %s95 = sphi 0, %s79
      %s101 = sphi 0, %s103
      %s104 = sphi 0, %s101
      %s105 = sphi 0, %s104
      %s121 = sphi 0, %s105
      %s127 = sphi 0, %s129
      %s130 = sphi 0, %s127
      %s131 = sphi 0, %s130
      %s147 = sphi 0, %s131
      %s153 = sphi 0, %s155
      %s156 = sphi 0, %s153
      %s157 = sphi 0, %s156
      %s173 = sphi 0, %s157
      %s189 = sphi 0, %s191
      %s192 = sphi 0, %s189
      %s193 = sphi 0, %s192
      %s209 = sphi 0, %s193
      %s215 = sphi 0, %s217
      %s218 = sphi 0, %s215
      %s219 = sphi 0, %s218
      %s235 = sphi 0, %s219
      %s241 = sphi 0, %s243
      %s244 = sphi 0, %s241
      %s245 = sphi 0, %s244
      %s261 = sphi 0, %s245
    $region4: #{tpu_custom_call.1} parent=1 // loop_header_branch
      %27 = sbr.rel (%p25) target = $region8
    $region5: #{tpu_custom_call.1} parent=1 // loop_body
      %s29 = ssub.s32 %s24, 1
      %s30 = ssub.s32 %s24, 2
      %s37 = sadd.s32 1, %s32
      %p38 = scmp.ge.s32.totalorder %s37, 1
      %s39 = scalar_select %p38, 0, %s37
      %s40 = sadd.s32 1, %s31
      %s41 = scalar_select %p38, %s40, %s31
      %p42 = scmp.ge.s32.totalorder %s41, 2
      %s43 = scalar_select %p42, 0, %s41
      %s45 = sadd.s32 %s44, 1
      %p48 = scmp.eq.s32.totalorder %s24, 1
      %p49 = scmp.ne.s32.totalorder %s44, %s46
      %p50 = scmp.eq.s32.totalorder %s24, 0
      %p51 = por %p49, %p50
      %p52 = scmp.ne.s32.totalorder %s44, %s46
      %p53 = scmp.eq.s32.totalorder %s29, 1
      %p54 = por %p52, %p53
      %p55 = scmp.ne.s32.totalorder %s46, %s47
      %p56 = scmp.eq.s32.totalorder %s29, 0
      %p57 = por %p55, %p56
      %p58 = scmp.ne.s32.totalorder %s46, %s47
      %p59 = scmp.eq.s32.totalorder %s30, 1
      %p60 = por %p58, %p59
      %p62 = scmp.ne.s32.totalorder %s47, %s61
      %p63 = scmp.eq.s32.totalorder %s30, 0
      %p64 = por %p62, %p63
      %s65 = smul.u32 %s32, 2
      %s66 = ssub.s32 0, %s65
      %s67 = smul.u32 %s31, %s66
      %s68 = sadd.s32 %s32, %s67
      %s69 = smul.u32 %s39, 2
      %s70 = ssub.s32 0, %s69
      %s71 = smul.u32 %s43, %s70
      %s72 = sadd.s32 %s39, %s71
      %s73 = ssub.s32 %s68, %s72
      %p74 = scmp.eq.s32.totalorder %s73, 0
      %s76 = sadd.s32 %s75, 1
      %s77 = scalar_select %p74, %s75, %s76
      %p80 = pneg %p74
      %p81 = scmp.eq.s32.totalorder %s24, 1
      %p82 = por %p80, %p81
      %p83 = scmp.ne.s32.totalorder %s75, %s78
      %p84 = scmp.eq.s32.totalorder %s24, 0
      %p85 = por %p83, %p84
      %p86 = scmp.ne.s32.totalorder %s75, %s78
      %p87 = scmp.eq.s32.totalorder %s29, 1
      %p88 = por %p86, %p87
      %p89 = scmp.ne.s32.totalorder %s78, %s79
      %p90 = scmp.eq.s32.totalorder %s29, 0
      %p91 = por %p89, %p90
      %p92 = scmp.ne.s32.totalorder %s78, %s79
      %p93 = scmp.eq.s32.totalorder %s30, 1
      %p94 = por %p92, %p93
      %p96 = scmp.ne.s32.totalorder %s79, %s95
      %p97 = scmp.eq.s32.totalorder %s30, 0
      %p98 = por %p96, %p97
      %s99 = ssub.s32 %s31, %s43
      %p100 = scmp.eq.s32.totalorder %s99, 0
      %s102 = sadd.s32 %s101, 1
      %s103 = scalar_select %p100, %s101, %s102
      %p106 = pneg %p100
      %p107 = scmp.eq.s32.totalorder %s24, 1
      %p108 = por %p106, %p107
      %p109 = scmp.ne.s32.totalorder %s101, %s104
      %p110 = scmp.eq.s32.totalorder %s24, 0
      %p111 = por %p109, %p110
      %p112 = scmp.ne.s32.totalorder %s101, %s104
      %p113 = scmp.eq.s32.totalorder %s29, 1
      %p114 = por %p112, %p113
      %p115 = scmp.ne.s32.totalorder %s104, %s105
      %p116 = scmp.eq.s32.totalorder %s29, 0
      %p117 = por %p115, %p116
      %p118 = scmp.ne.s32.totalorder %s104, %s105
      %p119 = scmp.eq.s32.totalorder %s30, 1
      %p120 = por %p118, %p119
      %p122 = scmp.ne.s32.totalorder %s105, %s121
      %p123 = scmp.eq.s32.totalorder %s30, 0
      %p124 = por %p122, %p123
      %s125 = ssub.s32 %s31, %s43
      %p126 = scmp.eq.s32.totalorder %s125, 0
      %s128 = sadd.s32 %s127, 1
      %s129 = scalar_select %p126, %s127, %s128
      %p132 = pneg %p126
      %p133 = scmp.eq.s32.totalorder %s24, 1
      %p134 = por %p132, %p133
      %p135 = scmp.ne.s32.totalorder %s127, %s130
      %p136 = scmp.eq.s32.totalorder %s24, 0
      %p137 = por %p135, %p136
      %p138 = scmp.ne.s32.totalorder %s127, %s130
      %p139 = scmp.eq.s32.totalorder %s29, 1
      %p140 = por %p138, %p139
      %p141 = scmp.ne.s32.totalorder %s130, %s131
      %p142 = scmp.eq.s32.totalorder %s29, 0
      %p143 = por %p141, %p142
      %p144 = scmp.ne.s32.totalorder %s130, %s131
      %p145 = scmp.eq.s32.totalorder %s30, 1
      %p146 = por %p144, %p145
      %p148 = scmp.ne.s32.totalorder %s131, %s147
      %p149 = scmp.eq.s32.totalorder %s30, 0
      %p150 = por %p148, %p149
      %s151 = ssub.s32 %s31, %s43
      %p152 = scmp.eq.s32.totalorder %s151, 0
      %s154 = sadd.s32 %s153, 1
      %s155 = scalar_select %p152, %s153, %s154
      %p158 = pneg %p152
      %p159 = scmp.eq.s32.totalorder %s24, 1
      %p160 = por %p158, %p159
      %p161 = scmp.ne.s32.totalorder %s153, %s156
      %p162 = scmp.eq.s32.totalorder %s24, 0
      %p163 = por %p161, %p162
      %p164 = scmp.ne.s32.totalorder %s153, %s156
      %p165 = scmp.eq.s32.totalorder %s29, 1
      %p166 = por %p164, %p165
      %p167 = scmp.ne.s32.totalorder %s156, %s157
      %p168 = scmp.eq.s32.totalorder %s29, 0
      %p169 = por %p167, %p168
      %p170 = scmp.ne.s32.totalorder %s156, %s157
      %p171 = scmp.eq.s32.totalorder %s30, 1
      %p172 = por %p170, %p171
      %p174 = scmp.ne.s32.totalorder %s157, %s173
      %p175 = scmp.eq.s32.totalorder %s30, 0
      %p176 = por %p174, %p175
      %s177 = smul.u32 %s32, 2
      %s178 = ssub.s32 0, %s177
      %s179 = smul.u32 %s31, %s178
      %s180 = sadd.s32 %s32, %s179
      %s181 = smul.u32 %s39, 2
      %s182 = ssub.s32 0, %s181
      %s183 = smul.u32 %s43, %s182
      %s184 = sadd.s32 %s39, %s183
      %s185 = ssub.s32 %s180, %s184
      %s186 = ssub.s32 %s31, %s43
      %s187 = sor.u32 %s185, %s186
      %p188 = scmp.eq.s32.totalorder %s187, 0
      %s190 = sadd.s32 %s189, 1
      %s191 = scalar_select %p188, %s189, %s190
      %p194 = pneg %p188
      %p195 = scmp.eq.s32.totalorder %s24, 1
      %p196 = por %p194, %p195
      %p197 = scmp.ne.s32.totalorder %s189, %s192
      %p198 = scmp.eq.s32.totalorder %s24, 0
      %p199 = por %p197, %p198
      %p200 = scmp.ne.s32.totalorder %s189, %s192
      %p201 = scmp.eq.s32.totalorder %s29, 1
      %p202 = por %p200, %p201
      %p203 = scmp.ne.s32.totalorder %s192, %s193
      %p204 = scmp.eq.s32.totalorder %s29, 0
      %p205 = por %p203, %p204
      %p206 = scmp.ne.s32.totalorder %s192, %s193
      %p207 = scmp.eq.s32.totalorder %s30, 1
      %p208 = por %p206, %p207
      %p210 = scmp.ne.s32.totalorder %s193, %s209
      %p211 = scmp.eq.s32.totalorder %s30, 0
      %p212 = por %p210, %p211
      %s213 = ssub.s32 %s31, %s43
      %p214 = scmp.eq.s32.totalorder %s213, 0
      %s216 = sadd.s32 %s215, 1
      %s217 = scalar_select %p214, %s215, %s216
      %p220 = pneg %p214
      %p221 = scmp.eq.s32.totalorder %s24, 1
      %p222 = por %p220, %p221
      %p223 = scmp.ne.s32.totalorder %s215, %s218
      %p224 = scmp.eq.s32.totalorder %s24, 0
      %p225 = por %p223, %p224
      %p226 = scmp.ne.s32.totalorder %s215, %s218
      %p227 = scmp.eq.s32.totalorder %s29, 1
      %p228 = por %p226, %p227
      %p229 = scmp.ne.s32.totalorder %s218, %s219
      %p230 = scmp.eq.s32.totalorder %s29, 0
      %p231 = por %p229, %p230
      %p232 = scmp.ne.s32.totalorder %s218, %s219
      %p233 = scmp.eq.s32.totalorder %s30, 1
      %p234 = por %p232, %p233
      %p236 = scmp.ne.s32.totalorder %s219, %s235
      %p237 = scmp.eq.s32.totalorder %s30, 0
      %p238 = por %p236, %p237
      %s239 = ssub.s32 %s31, %s43
      %p240 = scmp.eq.s32.totalorder %s239, 0
      %s242 = sadd.s32 %s241, 1
      %s243 = scalar_select %p240, %s241, %s242
      %p246 = pneg %p240
      %p247 = scmp.eq.s32.totalorder %s24, 1
      %p248 = por %p246, %p247
      %p249 = scmp.ne.s32.totalorder %s241, %s244
      %p250 = scmp.eq.s32.totalorder %s24, 0
      %p251 = por %p249, %p250
      %p252 = scmp.ne.s32.totalorder %s241, %s244
      %p253 = scmp.eq.s32.totalorder %s29, 1
      %p254 = por %p252, %p253
      %p255 = scmp.ne.s32.totalorder %s244, %s245
      %p256 = scmp.eq.s32.totalorder %s29, 0
      %p257 = por %p255, %p256
      %p258 = scmp.ne.s32.totalorder %s244, %s245
      %p259 = scmp.eq.s32.totalorder %s30, 1
      %p260 = por %p258, %p259
      %p262 = scmp.ne.s32.totalorder %s245, %s261
      %p263 = scmp.eq.s32.totalorder %s30, 0
      %p264 = por %p262, %p263
      %p265 = scmp.le.s32.totalorder 1, %s24
      %p266 = scmp.lt.s32.totalorder %s24, 3
      %p267 = pnand %p265, %p266
      %p268 = pneg %p267
      // Predicated region
      $region9: #{tpu_custom_call.1} parent=5 // pred_check
        _
      $region10: #{tpu_custom_call.1} parent=5 // pred_check_branch
        %270 = sbr.rel (%p267) target = $region12
      $region11: #{tpu_custom_call.1} parent=5 // pred_region
        %s271 = ssub.s32 %s24, 1
        // Predicated region
        $region13: #{tpu_custom_call.1} parent=11 // pred_check
          %p272 = pneg %p57
        $region14: #{tpu_custom_call.1} parent=11 // pred_check_branch
          %274 = sbr.rel (%p272) target = $region16
        $region15: #{tpu_custom_call.1} parent=11 // pred_region
          _
        $region16: #{tpu_custom_call.1} parent=11 // pred_fallthru
          _
        // Predicated region
        $region17: #{tpu_custom_call.1} parent=11 // pred_check
          %p275 = pneg %p117
        $region18: #{tpu_custom_call.1} parent=11 // pred_check_branch
          %277 = sbr.rel (%p275) target = $region20
        $region19: #{tpu_custom_call.1} parent=11 // pred_region
          %s279 = ssub.s32 4096, 4096
          %280 = vsyncadd [#allocation9], %s279
          %s281 = smul.addr %s33, 64
          %s282 = smul.addr %s281, 64
          %s283 = scalar_lea.hbm %s2, %s282
          %s284 = sshll.u32 [#allocation8], 4
          %s285 = int_to_ptr.vmem [resolvable:$true] %s284
          %290 = dma.hbm_to_vmem [thread:$0]  %s283, 4096, %s285, [#allocation9], 256, 256, 16
        $region20: #{tpu_custom_call.1} parent=11 // pred_fallthru
          _
        // Predicated region
        $region21: #{tpu_custom_call.1} parent=11 // pred_check
          %p291 = pneg %p143
        $region22: #{tpu_custom_call.1} parent=11 // pred_check_branch
          %293 = sbr.rel (%p291) target = $region24
        $region23: #{tpu_custom_call.1} parent=11 // pred_region
          %s295 = ssub.s32 4096, 4096
          %296 = vsyncadd [#allocation9], %s295
          %s297 = smul.addr %s33, 64
          %s298 = smul.addr %s297, 64
          %s299 = scalar_lea.hbm %s3, %s298
          %s300 = sshll.u32 [#allocation10], 4
          %s301 = int_to_ptr.vmem [resolvable:$true] %s300
          %306 = dma.hbm_to_vmem [thread:$0]  %s299, 4096, %s301, [#allocation9], 256, 256, 16
        $region24: #{tpu_custom_call.1} parent=11 // pred_fallthru
          _
        // Predicated region
        $region25: #{tpu_custom_call.1} parent=11 // pred_check
          %p307 = pneg %p169
        $region26: #{tpu_custom_call.1} parent=11 // pred_check_branch
          %309 = sbr.rel (%p307) target = $region28
        $region27: #{tpu_custom_call.1} parent=11 // pred_region
          %p310 = scmp.lt.s32.totalorder %s33, 1
          %s311 = scalar_select %p310, %s33, 1
          %s312 = smul.addr %s311, 4
          %s313 = scalar_lea.vmem %s4, %s312
        $region28: #{tpu_custom_call.1} parent=11 // pred_fallthru
          _
      $region12: #{tpu_custom_call.1} parent=5 // pred_fallthru
        _
      %p314 = scmp.lt.s32.totalorder %s24, 2
      // Predicated region
      $region29: #{tpu_custom_call.1} parent=5 // pred_check
        %p315 = pneg %p314
      $region30: #{tpu_custom_call.1} parent=5 // pred_check_branch
        %317 = sbr.rel (%p315) target = $region32
      $region31: #{tpu_custom_call.1} parent=5 // pred_region
        // Predicated region
        $region33: #{tpu_custom_call.1} parent=31 // pred_check
          %p318 = pneg %p85
        $region34: #{tpu_custom_call.1} parent=31 // pred_check_branch
          %320 = sbr.rel (%p318) target = $region36
        $region35: #{tpu_custom_call.1} parent=31 // pred_region
          %s321 = sand.u32 %s75, 1
          %s322 = scalar_lea.sflag [#allocation6], %s321
          %s323 = sand.u32 %s75, 1
          %s324 = smul.addr %s323, 32
          %s325 = scalar_lea.vmem [#allocation5], %s324
          %s326 = smul.u32 %s32, 2
          %s327 = ssub.s32 0, %s326
          %s328 = smul.u32 %s31, %s327
          %s329 = sadd.s32 %s32, %s328
          %s330 = smul.u32 8, %s329
          %s332 = ssub.s32 512, 512
          %333 = vsyncadd %s322, %s332
          %s334 = smul.addr %s330, 64
          %s335 = scalar_lea.hbm %s1, %s334
          %s336 = sshll.u32 %s325, 4
          %s337 = int_to_ptr.vmem [resolvable:$true] %s336
          %342 = dma.hbm_to_vmem [thread:$0]  %s335, 512, %s337, %s322, 64, 64, 4
        $region36: #{tpu_custom_call.1} parent=31 // pred_fallthru
          _
      $region32: #{tpu_custom_call.1} parent=5 // pred_fallthru
        _
      %p343 = scmp.le.s32.totalorder 1, %s24
      %p344 = scmp.lt.s32.totalorder %s24, 3
      %p345 = pnand %p343, %p344
      %p346 = pneg %p345
      // Predicated region
      $region37: #{tpu_custom_call.1} parent=5 // pred_check
        _
      $region38: #{tpu_custom_call.1} parent=5 // pred_check_branch
        %348 = sbr.rel (%p345) target = $region40
      $region39: #{tpu_custom_call.1} parent=5 // pred_region
        %s349 = ssub.s32 %s24, 1
        %s350 = sand.u32 %s78, 1
        %s351 = scalar_lea.sflag [#allocation6], %s350
        %s352 = sand.u32 %s78, 1
        %s353 = smul.addr %s352, 32
        %s354 = scalar_lea.vmem [#allocation5], %s353
        // Predicated region
        $region41: #{tpu_custom_call.1} parent=39 // pred_check
          %p355 = pneg %p91
        $region42: #{tpu_custom_call.1} parent=39 // pred_check_branch
          %357 = sbr.rel (%p355) target = $region44
        $region43: #{tpu_custom_call.1} parent=39 // pred_region
          %358 = dma.done %s351, 512
        $region44: #{tpu_custom_call.1} parent=39 // pred_fallthru
          _
        // Predicated region
        $region45: #{tpu_custom_call.1} parent=39 // pred_check
          %p359 = pneg %p117
        $region46: #{tpu_custom_call.1} parent=39 // pred_check_branch
          %361 = sbr.rel (%p359) target = $region48
        $region47: #{tpu_custom_call.1} parent=39 // pred_region
          %362 = dma.done [#allocation9], 4096
        $region48: #{tpu_custom_call.1} parent=39 // pred_fallthru
          _
        // Predicated region
        $region49: #{tpu_custom_call.1} parent=39 // pred_check
          %p363 = pneg %p143
        $region50: #{tpu_custom_call.1} parent=39 // pred_check_branch
          %365 = sbr.rel (%p363) target = $region52
        $region51: #{tpu_custom_call.1} parent=39 // pred_region
          %366 = dma.done [#allocation9], 4096
        $region52: #{tpu_custom_call.1} parent=39 // pred_fallthru
          _
        %p367 = pneg %p57
        %p368 = pneg %p54
        %s369 = sand.u32 %s78, 1
        %s370 = scalar_lea.sflag [#allocation6], %s369
        %s371 = sand.u32 %s78, 1
        %s372 = smul.addr %s371, 32
        %s373 = scalar_lea.vmem [#allocation5], %s372
        %p374 = pneg %p91
        %p375 = pneg %p88
        %p376 = pneg %p117
        %p377 = pneg %p114
        %p378 = pneg %p143
        %p379 = pneg %p140
        %p380 = scmp.lt.s32.totalorder %s33, 1
        %s381 = scalar_select %p380, %s33, 1
        %s382 = smul.addr %s381, 4
        %s383 = scalar_lea.vmem %s4, %s382
        %p384 = pneg %p169
        %p385 = pneg %p166
        %p386 = pneg %p205
        %p387 = pneg %p202
        %s388 = sand.u32 %s192, 1
        %s389 = scalar_lea.sflag [#allocation7], %s388
        %s390 = sand.u32 %s192, 1
        %s391 = smul.addr %s390, 32
        %s392 = scalar_lea.vmem [#allocation11], %s391
        %p393 = pneg %p231
        %p394 = pneg %p228
        %s395 = sand.u32 %s29, 1
        %s396 = scalar_lea.sflag [#allocation13], %s395
        %s397 = sand.u32 %s218, 1
        %s398 = smul.addr %s397, 8
        %s399 = scalar_lea.vmem [#allocation12], %s398
        %p400 = pneg %p257
        %p401 = pneg %p254
        %s402 = sand.u32 %s29, 1
        %s403 = scalar_lea.sflag [#allocation13], %s402
        %s404 = sand.u32 %s244, 1
        %s405 = smul.addr %s404, 8
        %s406 = scalar_lea.vmem [#allocation14], %s405
        %s407 = smul.u32 %s34, 2
        %s408 = ssub.s32 0, %s407
        %s409 = smul.u32 %s33, %s408
        %s410 = sadd.s32 %s34, %s409
        %s411 = smul.u32 8, %s410
        %p412 = scmp.lt.s32.totalorder %s33, 1
        %s413 = scalar_select %p412, %s33, 1
        %s414 = smul.addr %s413, 4
        %s415 = scalar_lea.vmem %s4, %s414
        %s416 = smul.u32 %s34, 2
        %s417 = ssub.s32 0, %s416
        %s418 = smul.u32 %s33, %s417
        %s419 = sadd.s32 %s34, %s418
        %s420 = smul.u32 8, %s419
        %s422 = smul.u32 %s34, 2
        %s423 = ssub.s32 0, %s422
        %s424 = smul.u32 %s33, %s423
        %s425 = sadd.s32 %s34, %s424
        %s426 = smul.u32 %s425, 8
        %p427 = scmp.eq.s32.totalorder %s34, 0
        // Predicated region
        $region53: #{tpu_custom_call.1} parent=39 // pred_check
          %p428 = pneg %p427
        $region54: #{tpu_custom_call.1} parent=39 // pred_check_branch
          %430 = sbr.rel (%p428) target = $region56
        $region55: #{tpu_custom_call.1} parent=39 // pred_region
          %431 = vst [vmem:[#allocation2] sm:$0xff] 0.0
          %432 = vst [vmem:[#allocation3] sm:$0xff] 0.0
        $region56: #{tpu_custom_call.1} parent=39 // pred_fallthru
          _
        %v433 = vld [vmem:[%s354] sm:$0xf]
        %v434 = vld [vmem:[%s354 + $0x4] sm:$0xf]
        %v435 = vld [vmem:[%s354 + $0x8] sm:$0xf]
        %v436 = vld [vmem:[%s354 + $0xc] sm:$0xf]
        %v437 = vld [vmem:[%s354 + $0x10] sm:$0xf]
        %v438 = vld [vmem:[%s354 + $0x14] sm:$0xf]
        %v439 = vld [vmem:[%s354 + $0x18] sm:$0xf]
        %v440 = vld [vmem:[%s354 + $0x1c] sm:$0xf]
        %v441 = vld [vmem:[#allocation8] sm:$0xff]
        %v442 = vld [vmem:[#allocation8 + $0x8] sm:$0xff]
        %v443 = vld [vmem:[#allocation8 + $0x10] sm:$0xff]
        %v444 = vld [vmem:[#allocation8 + $0x18] sm:$0xff]
        %v445 = vld [vmem:[#allocation8 + $0x20] sm:$0xff]
        %v446 = vld [vmem:[#allocation8 + $0x28] sm:$0xff]
        %v447 = vld [vmem:[#allocation8 + $0x30] sm:$0xff]
        %v448 = vld [vmem:[#allocation8 + $0x38] sm:$0xff]
        %v449 = vld [vmem:[#allocation8 + $0x40] sm:$0xff]
        %v450 = vld [vmem:[#allocation8 + $0x48] sm:$0xff]
        %v451 = vld [vmem:[#allocation8 + $0x50] sm:$0xff]
        %v452 = vld [vmem:[#allocation8 + $0x58] sm:$0xff]
        %v453 = vld [vmem:[#allocation8 + $0x60] sm:$0xff]
        %v454 = vld [vmem:[#allocation8 + $0x68] sm:$0xff]
        %v455 = vld [vmem:[#allocation8 + $0x70] sm:$0xff]
        %v456 = vld [vmem:[#allocation8 + $0x78] sm:$0xff]
        %v457 = vld [vmem:[#allocation8 + $0x80] sm:$0xff]
        %v458 = vld [vmem:[#allocation8 + $0x88] sm:$0xff]
        %v459 = vld [vmem:[#allocation8 + $0x90] sm:$0xff]
        %v460 = vld [vmem:[#allocation8 + $0x98] sm:$0xff]
        %v461 = vld [vmem:[#allocation8 + $0xa0] sm:$0xff]
        %v462 = vld [vmem:[#allocation8 + $0xa8] sm:$0xff]
        %v463 = vld [vmem:[#allocation8 + $0xb0] sm:$0xff]
        %v464 = vld [vmem:[#allocation8 + $0xb8] sm:$0xff]
        %v465 = vld [vmem:[#allocation8 + $0xc0] sm:$0xff]
        %v466 = vld [vmem:[#allocation8 + $0xc8] sm:$0xff]
        %v467 = vld [vmem:[#allocation8 + $0xd0] sm:$0xff]
        %v468 = vld [vmem:[#allocation8 + $0xd8] sm:$0xff]
        %v469 = vld [vmem:[#allocation8 + $0xe0] sm:$0xff]
        %v470 = vld [vmem:[#allocation8 + $0xe8] sm:$0xff]
        %v471 = vld [vmem:[#allocation8 + $0xf0] sm:$0xff]
        %v472 = vld [vmem:[#allocation8 + $0xf8] sm:$0xff]
        %v473 = vld [vmem:[%s415] sm:$0xf]
        %v475 = vlaneseq
        %v476 = vshrl.u32 %v475, 7
        %v477 = vsub.s32 0, %v476
        %v478 = vrot.slane %v473, %v477
        %v479 = vlaneseq
        %v480 = vshrl.u32 %v479, 7
        %v481 = vsub.s32 1, %v480
        %v482 = vrot.slane %v473, %v481
        %v483 = vlaneseq
        %v484 = vshrl.u32 %v483, 7
        %v485 = vsub.s32 2, %v484
        %v486 = vrot.slane %v473, %v485
        %v487 = vlaneseq
        %v488 = vshrl.u32 %v487, 7
        %v489 = vsub.s32 3, %v488
        %v490 = vrot.slane %v473, %v489
        %v503 = vunpack.c.l.b16 %v433
        %v504 = vunpack.c.l.b16 %v434
        %v505 = vunpack.c.l.b16 %v435
        %v506 = vunpack.c.l.b16 %v436
        %v507 = vunpack.c.l.b16 %v437
        %v508 = vunpack.c.l.b16 %v438
        %v509 = vunpack.c.l.b16 %v439
        %v510 = vunpack.c.l.b16 %v440
        %v511 = vpack.c.b16 %v504, %v503
        %v512 = vpack.c.b16 %v506, %v505
        %v513 = vpack.c.b16 %v508, %v507
        %v514 = vpack.c.b16 %v510, %v509
        %v551 = vunpack.c.l.b16 %v441
        %v552 = vunpack.c.h.b16 %v441
        %v553 = vunpack.c.l.b16 %v442
        %v554 = vunpack.c.h.b16 %v442
        %v555 = vunpack.c.l.b16 %v443
        %v556 = vunpack.c.h.b16 %v443
        %v557 = vunpack.c.l.b16 %v444
        %v558 = vunpack.c.h.b16 %v444
        %v559 = vunpack.c.l.b16 %v445
        %v560 = vunpack.c.h.b16 %v445
        %v561 = vunpack.c.l.b16 %v446
        %v562 = vunpack.c.h.b16 %v446
        %v563 = vunpack.c.l.b16 %v447
        %v564 = vunpack.c.h.b16 %v447
        %v565 = vunpack.c.l.b16 %v448
        %v566 = vunpack.c.h.b16 %v448
        %v567 = vunpack.c.l.b16 %v449
        %v568 = vunpack.c.h.b16 %v449
        %v569 = vunpack.c.l.b16 %v450
        %v570 = vunpack.c.h.b16 %v450
        %v571 = vunpack.c.l.b16 %v451
        %v572 = vunpack.c.h.b16 %v451
        %v573 = vunpack.c.l.b16 %v452
        %v574 = vunpack.c.h.b16 %v452
        %v575 = vunpack.c.l.b16 %v453
        %v576 = vunpack.c.h.b16 %v453
        %v577 = vunpack.c.l.b16 %v454
        %v578 = vunpack.c.h.b16 %v454
        %v579 = vunpack.c.l.b16 %v455
        %v580 = vunpack.c.h.b16 %v455
        %v581 = vunpack.c.l.b16 %v456
        %v582 = vunpack.c.h.b16 %v456
        %v583 = vunpack.c.l.b16 %v457
        %v584 = vunpack.c.h.b16 %v457
        %v585 = vunpack.c.l.b16 %v458
        %v586 = vunpack.c.h.b16 %v458
        %v587 = vunpack.c.l.b16 %v459
        %v588 = vunpack.c.h.b16 %v459
        %v589 = vunpack.c.l.b16 %v460
        %v590 = vunpack.c.h.b16 %v460
        %v591 = vunpack.c.l.b16 %v461
        %v592 = vunpack.c.h.b16 %v461
        %v593 = vunpack.c.l.b16 %v462
        %v594 = vunpack.c.h.b16 %v462
        %v595 = vunpack.c.l.b16 %v463
        %v596 = vunpack.c.h.b16 %v463
        %v597 = vunpack.c.l.b16 %v464
        %v598 = vunpack.c.h.b16 %v464
        %v599 = vunpack.c.l.b16 %v465
        %v600 = vunpack.c.h.b16 %v465
        %v601 = vunpack.c.l.b16 %v466
        %v602 = vunpack.c.h.b16 %v466
        %v603 = vunpack.c.l.b16 %v467
        %v604 = vunpack.c.h.b16 %v467
        %v605 = vunpack.c.l.b16 %v468
        %v606 = vunpack.c.h.b16 %v468
        %v607 = vunpack.c.l.b16 %v469
        %v608 = vunpack.c.h.b16 %v469
        %v609 = vunpack.c.l.b16 %v470
        %v610 = vunpack.c.h.b16 %v470
        %v611 = vunpack.c.l.b16 %v471
        %v612 = vunpack.c.h.b16 %v471
        %v613 = vunpack.c.l.b16 %v472
        %v614 = vunpack.c.h.b16 %v472
        %v615 = vpack.c.b16 %v555, %v551
        %v616 = vpack.c.b16 %v556, %v552
        %v617 = vpack.c.b16 %v557, %v553
        %v618 = vpack.c.b16 %v558, %v554
        %v619 = vpack.c.b16 %v563, %v559
        %v620 = vpack.c.b16 %v564, %v560
        %v621 = vpack.c.b16 %v565, %v561
        %v622 = vpack.c.b16 %v566, %v562
        %v623 = vpack.c.b16 %v571, %v567
        %v624 = vpack.c.b16 %v572, %v568
        %v625 = vpack.c.b16 %v573, %v569
        %v626 = vpack.c.b16 %v574, %v570
        %v627 = vpack.c.b16 %v579, %v575
        %v628 = vpack.c.b16 %v580, %v576
        %v629 = vpack.c.b16 %v581, %v577
        %v630 = vpack.c.b16 %v582, %v578
        %v631 = vpack.c.b16 %v587, %v583
        %v632 = vpack.c.b16 %v588, %v584
        %v633 = vpack.c.b16 %v589, %v585
        %v634 = vpack.c.b16 %v590, %v586
        %v635 = vpack.c.b16 %v595, %v591
        %v636 = vpack.c.b16 %v596, %v592
        %v637 = vpack.c.b16 %v597, %v593
        %v638 = vpack.c.b16 %v598, %v594
        %v639 = vpack.c.b16 %v603, %v599
        %v640 = vpack.c.b16 %v604, %v600
        %v641 = vpack.c.b16 %v605, %v601
        %v642 = vpack.c.b16 %v606, %v602
        %v643 = vpack.c.b16 %v611, %v607
        %v644 = vpack.c.b16 %v612, %v608
        %v645 = vpack.c.b16 %v613, %v609
        %v646 = vpack.c.b16 %v614, %v610
        %679 = vmatprep.subr.bf16.mxu0 %v644
        %680 = vmatpush1.bf16.msra.mxu0 %v643
        %681 = vmatprep.subr.bf16.mxu0 %v640
        %682 = vmatpush1.bf16.msra.mxu0 %v639
        %683 = vmatprep.subr.bf16.mxu0 %v636
        %684 = vmatpush1.bf16.msra.mxu0 %v635
        %685 = vmatprep.subr.bf16.mxu0 %v632
        %686 = vmatpush1.bf16.msra.mxu0 %v631
        %687 = vmatprep.subr.bf16.mxu0 %v628
        %688 = vmatpush1.bf16.msra.mxu0 %v627
        %689 = vmatprep.subr.bf16.mxu0 %v624
        %690 = vmatpush1.bf16.msra.mxu0 %v623
        %691 = vmatprep.subr.bf16.mxu0 %v620
        %692 = vmatpush1.bf16.msra.mxu0 %v619
        %693 = vmatprep.subr.bf16.mxu0 %v616
        %694 = vmatpush1.bf16.msra.mxu0 %v615
        %695 = vmatprep.subr.bf16.mxu0 0
        %696 = vmatpush2.bf16.msra.mxu0 0
        %697 = vmatprep.subr.bf16.mxu0 0
        %698 = vmatpush2.bf16.msra.mxu0 0
        %699 = vmatprep.subr.bf16.mxu0 0
        %700 = vmatpush2.bf16.msra.mxu0 0
        %701 = vmatprep.subr.bf16.mxu0 0
        %702 = vmatpush2.bf16.msra.mxu0 0
        %703 = vmatprep.subr.bf16.mxu0 0
        %704 = vmatpush2.bf16.msra.mxu0 0
        %705 = vmatprep.subr.bf16.mxu0 0
        %706 = vmatpush2.bf16.msra.mxu0 0
        %707 = vmatprep.subr.bf16.mxu0 0
        %708 = vmatpush2.bf16.msra.mxu0 0
        %709 = vmatprep.subr.bf16.mxu0 0
        %710 = vmatpush2.bf16.msra.mxu0 0
        %711 = vmatprep.mubr.bf16.mxu0 0
        %712 = vmatmul.mubr.bf16.gmra.mxu0 %v511
        %v713 = vpop.f32.mrf.mxu0
        %v714 = vadd.f32 %v478, %v713
        %v715 = vpop.f32.mrf.mxu0
        %v716 = vadd.f32 %v482, %v715
        %v717 = vpop.f32.mrf.mxu0
        %v718 = vadd.f32 %v478, %v717
        %v719 = vpop.f32.mrf.mxu0
        %v720 = vadd.f32 %v482, %v719
        %721 = vmatprep.mubr.bf16.mxu0 0
        %722 = vmatmul.mubr.bf16.gmra.mxu0 %v512
        %v723 = vpop.f32.mrf.mxu0
        %v724 = vadd.f32 %v478, %v723
        %v725 = vpop.f32.mrf.mxu0
        %v726 = vadd.f32 %v482, %v725
        %v727 = vpop.f32.mrf.mxu0
        %v728 = vadd.f32 %v478, %v727
        %v729 = vpop.f32.mrf.mxu0
        %v730 = vadd.f32 %v482, %v729
        %731 = vmatprep.mubr.bf16.mxu0 0
        %732 = vmatmul.mubr.bf16.gmra.mxu0 %v513
        %v733 = vpop.f32.mrf.mxu0
        %v734 = vadd.f32 %v478, %v733
        %v735 = vpop.f32.mrf.mxu0
        %v736 = vadd.f32 %v482, %v735
        %v737 = vpop.f32.mrf.mxu0
        %v738 = vadd.f32 %v478, %v737
        %v739 = vpop.f32.mrf.mxu0
        %v740 = vadd.f32 %v482, %v739
        %741 = vmatprep.mubr.bf16.mxu0 0
        %742 = vmatmul.mubr.bf16.gmra.mxu0 %v514
        %v743 = vpop.f32.mrf.mxu0
        %v744 = vadd.f32 %v478, %v743
        %v745 = vpop.f32.mrf.mxu0
        %v746 = vadd.f32 %v482, %v745
        %v747 = vpop.f32.mrf.mxu0
        %v748 = vadd.f32 %v478, %v747
        %v749 = vpop.f32.mrf.mxu0
        %v750 = vadd.f32 %v482, %v749
        %751 = vdwg.mxu0
        %752 = vmatprep.subr.bf16.mxu0 %v646
        %753 = vmatpush1.bf16.msra.mxu0 %v645
        %754 = vmatprep.subr.bf16.mxu0 %v642
        %755 = vmatpush1.bf16.msra.mxu0 %v641
        %756 = vmatprep.subr.bf16.mxu0 %v638
        %757 = vmatpush1.bf16.msra.mxu0 %v637
        %758 = vmatprep.subr.bf16.mxu0 %v634
        %759 = vmatpush1.bf16.msra.mxu0 %v633
        %760 = vmatprep.subr.bf16.mxu0 %v630
        %761 = vmatpush1.bf16.msra.mxu0 %v629
        %762 = vmatprep.subr.bf16.mxu0 %v626
        %763 = vmatpush1.bf16.msra.mxu0 %v625
        %764 = vmatprep.subr.bf16.mxu0 %v622
        %765 = vmatpush1.bf16.msra.mxu0 %v621
        %766 = vmatprep.subr.bf16.mxu0 %v618
        %767 = vmatpush1.bf16.msra.mxu0 %v617
        %768 = vmatprep.subr.bf16.mxu0 0
        %769 = vmatpush2.bf16.msra.mxu0 0
        %770 = vmatprep.subr.bf16.mxu0 0
        %771 = vmatpush2.bf16.msra.mxu0 0
        %772 = vmatprep.subr.bf16.mxu0 0
        %773 = vmatpush2.bf16.msra.mxu0 0
        %774 = vmatprep.subr.bf16.mxu0 0
        %775 = vmatpush2.bf16.msra.mxu0 0
        %776 = vmatprep.subr.bf16.mxu0 0
        %777 = vmatpush2.bf16.msra.mxu0 0
        %778 = vmatprep.subr.bf16.mxu0 0
        %779 = vmatpush2.bf16.msra.mxu0 0
        %780 = vmatprep.subr.bf16.mxu0 0
        %781 = vmatpush2.bf16.msra.mxu0 0
        %782 = vmatprep.subr.bf16.mxu0 0
        %783 = vmatpush2.bf16.msra.mxu0 0
        %784 = vmatprep.mubr.bf16.mxu0 0
        %785 = vmatmul.mubr.bf16.gmra.mxu0 %v511
        %v786 = vpop.f32.mrf.mxu0
        %v787 = vadd.f32 %v486, %v786
        %v788 = vpop.f32.mrf.mxu0
        %v789 = vadd.f32 %v490, %v788
        %v790 = vpop.f32.mrf.mxu0
        %v791 = vadd.f32 %v486, %v790
        %v792 = vpop.f32.mrf.mxu0
        %v793 = vadd.f32 %v490, %v792
        %794 = vmatprep.mubr.bf16.mxu0 0
        %795 = vmatmul.mubr.bf16.gmra.mxu0 %v512
        %v796 = vpop.f32.mrf.mxu0
        %v797 = vadd.f32 %v486, %v796
        %v798 = vpop.f32.mrf.mxu0
        %v799 = vadd.f32 %v490, %v798
        %v800 = vpop.f32.mrf.mxu0
        %v801 = vadd.f32 %v486, %v800
        %v802 = vpop.f32.mrf.mxu0
        %v803 = vadd.f32 %v490, %v802
        %804 = vmatprep.mubr.bf16.mxu0 0
        %805 = vmatmul.mubr.bf16.gmra.mxu0 %v513
        %v806 = vpop.f32.mrf.mxu0
        %v807 = vadd.f32 %v486, %v806
        %v808 = vpop.f32.mrf.mxu0
        %v809 = vadd.f32 %v490, %v808
        %v810 = vpop.f32.mrf.mxu0
        %v811 = vadd.f32 %v486, %v810
        %v812 = vpop.f32.mrf.mxu0
        %v813 = vadd.f32 %v490, %v812
        %814 = vmatprep.mubr.bf16.mxu0 0
        %815 = vmatmul.mubr.bf16.gmra.mxu0 %v514
        %v816 = vpop.f32.mrf.mxu0
        %v817 = vadd.f32 %v486, %v816
        %v818 = vpop.f32.mrf.mxu0
        %v819 = vadd.f32 %v490, %v818
        %v820 = vpop.f32.mrf.mxu0
        %v821 = vadd.f32 %v486, %v820
        %v822 = vpop.f32.mrf.mxu0
        %v823 = vadd.f32 %v490, %v822
        %824 = vdwg.mxu0
        %825 = vst [vmem:[#allocation4] sm:$0xff] %v714
        %826 = vst [vmem:[#allocation4 + $0x8] sm:$0xff] %v716
        %827 = vst [vmem:[#allocation4 + $0x10] sm:$0xff] %v787
        %828 = vst [vmem:[#allocation4 + $0x18] sm:$0xff] %v789
        %829 = vst [vmem:[#allocation4 + $0x20] sm:$0xff] %v718
        %830 = vst [vmem:[#allocation4 + $0x28] sm:$0xff] %v720
        %831 = vst [vmem:[#allocation4 + $0x30] sm:$0xff] %v791
        %832 = vst [vmem:[#allocation4 + $0x38] sm:$0xff] %v793
        %833 = vst [vmem:[#allocation4 + $0x40] sm:$0xff] %v724
        %834 = vst [vmem:[#allocation4 + $0x48] sm:$0xff] %v726
        %835 = vst [vmem:[#allocation4 + $0x50] sm:$0xff] %v797
        %836 = vst [vmem:[#allocation4 + $0x58] sm:$0xff] %v799
        %837 = vst [vmem:[#allocation4 + $0x60] sm:$0xff] %v728
        %838 = vst [vmem:[#allocation4 + $0x68] sm:$0xff] %v730
        %839 = vst [vmem:[#allocation4 + $0x70] sm:$0xff] %v801
        %840 = vst [vmem:[#allocation4 + $0x78] sm:$0xff] %v803
        %841 = vst [vmem:[#allocation4 + $0x80] sm:$0xff] %v734
        %842 = vst [vmem:[#allocation4 + $0x88] sm:$0xff] %v736
        %843 = vst [vmem:[#allocation4 + $0x90] sm:$0xff] %v807
        %844 = vst [vmem:[#allocation4 + $0x98] sm:$0xff] %v809
        %845 = vst [vmem:[#allocation4 + $0xa0] sm:$0xff] %v738
        %846 = vst [vmem:[#allocation4 + $0xa8] sm:$0xff] %v740
        %847 = vst [vmem:[#allocation4 + $0xb0] sm:$0xff] %v811
        %848 = vst [vmem:[#allocation4 + $0xb8] sm:$0xff] %v813
        %849 = vst [vmem:[#allocation4 + $0xc0] sm:$0xff] %v744
        %850 = vst [vmem:[#allocation4 + $0xc8] sm:$0xff] %v746
        %851 = vst [vmem:[#allocation4 + $0xd0] sm:$0xff] %v817
        %852 = vst [vmem:[#allocation4 + $0xd8] sm:$0xff] %v819
        %853 = vst [vmem:[#allocation4 + $0xe0] sm:$0xff] %v748
        %854 = vst [vmem:[#allocation4 + $0xe8] sm:$0xff] %v750
        %855 = vst [vmem:[#allocation4 + $0xf0] sm:$0xff] %v821
        %856 = vst [vmem:[#allocation4 + $0xf8] sm:$0xff] %v823
        %v857 = vld [vmem:[#allocation10] sm:$0xff]
        %v858 = vld [vmem:[#allocation10 + $0x8] sm:$0xff]
        %v859 = vld [vmem:[#allocation10 + $0x10] sm:$0xff]
        %v860 = vld [vmem:[#allocation10 + $0x18] sm:$0xff]
        %v861 = vld [vmem:[#allocation10 + $0x20] sm:$0xff]
        %v862 = vld [vmem:[#allocation10 + $0x28] sm:$0xff]
        %v863 = vld [vmem:[#allocation10 + $0x30] sm:$0xff]
        %v864 = vld [vmem:[#allocation10 + $0x38] sm:$0xff]
        %v865 = vld [vmem:[#allocation10 + $0x40] sm:$0xff]
        %v866 = vld [vmem:[#allocation10 + $0x48] sm:$0xff]
        %v867 = vld [vmem:[#allocation10 + $0x50] sm:$0xff]
        %v868 = vld [vmem:[#allocation10 + $0x58] sm:$0xff]
        %v869 = vld [vmem:[#allocation10 + $0x60] sm:$0xff]
        %v870 = vld [vmem:[#allocation10 + $0x68] sm:$0xff]
        %v871 = vld [vmem:[#allocation10 + $0x70] sm:$0xff]
        %v872 = vld [vmem:[#allocation10 + $0x78] sm:$0xff]
        %v873 = vld [vmem:[#allocation10 + $0x80] sm:$0xff]
        %v874 = vld [vmem:[#allocation10 + $0x88] sm:$0xff]
        %v875 = vld [vmem:[#allocation10 + $0x90] sm:$0xff]
        %v876 = vld [vmem:[#allocation10 + $0x98] sm:$0xff]
        %v877 = vld [vmem:[#allocation10 + $0xa0] sm:$0xff]
        %v878 = vld [vmem:[#allocation10 + $0xa8] sm:$0xff]
        %v879 = vld [vmem:[#allocation10 + $0xb0] sm:$0xff]
        %v880 = vld [vmem:[#allocation10 + $0xb8] sm:$0xff]
        %v881 = vld [vmem:[#allocation10 + $0xc0] sm:$0xff]
        %v882 = vld [vmem:[#allocation10 + $0xc8] sm:$0xff]
        %v883 = vld [vmem:[#allocation10 + $0xd0] sm:$0xff]
        %v884 = vld [vmem:[#allocation10 + $0xd8] sm:$0xff]
        %v885 = vld [vmem:[#allocation10 + $0xe0] sm:$0xff]
        %v886 = vld [vmem:[#allocation10 + $0xe8] sm:$0xff]
        %v887 = vld [vmem:[#allocation10 + $0xf0] sm:$0xff]
        %v888 = vld [vmem:[#allocation10 + $0xf8] sm:$0xff]
        %v889 = vld [vmem:[%s0] sm:$0xff]
        %890 = vset.pattern.permute.xlu0 0
        %891 = vperm.xlu0 %890, %v889
        %v892 = vpop.permute.xlu0 %891
        %v893 = vld [vmem:[#allocation2] sm:$0xff]
        %v894 = vld [vmem:[#allocation3] sm:$0xff]
        %s895 = smul.u32 %s33, 7
        %s896 = smul.u32 %s33, 56
        %s897 = sshra.s32 %s896, 3
        %s898 = sand.u32 %s896, 7
        %s899 = smul.u32 %s897, 4
        %s900 = smul.addr %s899, 8
        %s901 = scalar_lea.vmem [#allocation4], %s900
        %v902 = vld [vmem:[%s901] sm:$0xff]
        %v903 = vld [vmem:[%s901 + $0x8] sm:$0xff]
        %v904 = vld [vmem:[%s901 + $0x10] sm:$0xff]
        %v905 = vld [vmem:[%s901 + $0x18] sm:$0xff]
        %v906 = vpack.c.bf16 %v893, %v893
        %v939 = vunpack.c.l.b16 %v857
        %v940 = vunpack.c.h.b16 %v857
        %v941 = vunpack.c.l.b16 %v858
        %v942 = vunpack.c.h.b16 %v858
        %v943 = vunpack.c.l.b16 %v859
        %v944 = vunpack.c.h.b16 %v859
        %v945 = vunpack.c.l.b16 %v860
        %v946 = vunpack.c.h.b16 %v860
        %v947 = vunpack.c.l.b16 %v861
        %v948 = vunpack.c.h.b16 %v861
        %v949 = vunpack.c.l.b16 %v862
        %v950 = vunpack.c.h.b16 %v862
        %v951 = vunpack.c.l.b16 %v863
        %v952 = vunpack.c.h.b16 %v863
        %v953 = vunpack.c.l.b16 %v864
        %v954 = vunpack.c.h.b16 %v864
        %v955 = vunpack.c.l.b16 %v865
        %v956 = vunpack.c.h.b16 %v865
        %v957 = vunpack.c.l.b16 %v866
        %v958 = vunpack.c.h.b16 %v866
        %v959 = vunpack.c.l.b16 %v867
        %v960 = vunpack.c.h.b16 %v867
        %v961 = vunpack.c.l.b16 %v868
        %v962 = vunpack.c.h.b16 %v868
        %v963 = vunpack.c.l.b16 %v869
        %v964 = vunpack.c.h.b16 %v869
        %v965 = vunpack.c.l.b16 %v870
        %v966 = vunpack.c.h.b16 %v870
        %v967 = vunpack.c.l.b16 %v871
        %v968 = vunpack.c.h.b16 %v871
        %v969 = vunpack.c.l.b16 %v872
        %v970 = vunpack.c.h.b16 %v872
        %v971 = vunpack.c.l.b16 %v873
        %v972 = vunpack.c.h.b16 %v873
        %v973 = vunpack.c.l.b16 %v874
        %v974 = vunpack.c.h.b16 %v874
        %v975 = vunpack.c.l.b16 %v875
        %v976 = vunpack.c.h.b16 %v875
        %v977 = vunpack.c.l.b16 %v876
        %v978 = vunpack.c.h.b16 %v876
        %v979 = vunpack.c.l.b16 %v877
        %v980 = vunpack.c.h.b16 %v877
        %v981 = vunpack.c.l.b16 %v878
        %v982 = vunpack.c.h.b16 %v878
        %v983 = vunpack.c.l.b16 %v879
        %v984 = vunpack.c.h.b16 %v879
        %v985 = vunpack.c.l.b16 %v880
        %v986 = vunpack.c.h.b16 %v880
        %v987 = vunpack.c.l.b16 %v881
        %v988 = vunpack.c.h.b16 %v881
        %v989 = vunpack.c.l.b16 %v882
        %v990 = vunpack.c.h.b16 %v882
        %v991 = vunpack.c.l.b16 %v883
        %v992 = vunpack.c.h.b16 %v883
        %v993 = vunpack.c.l.b16 %v884
        %v994 = vunpack.c.h.b16 %v884
        %v995 = vunpack.c.l.b16 %v885
        %v996 = vunpack.c.h.b16 %v885
        %v997 = vunpack.c.l.b16 %v886
        %v998 = vunpack.c.h.b16 %v886
        %v999 = vunpack.c.l.b16 %v887
        %v1000 = vunpack.c.h.b16 %v887
        %v1001 = vunpack.c.l.b16 %v888
        %v1002 = vunpack.c.h.b16 %v888
        %v1003 = vpack.c.b16 %v943, %v939
        %v1004 = vpack.c.b16 %v944, %v940
        %v1005 = vpack.c.b16 %v945, %v941
        %v1006 = vpack.c.b16 %v946, %v942
        %v1007 = vpack.c.b16 %v951, %v947
        %v1008 = vpack.c.b16 %v952, %v948
        %v1009 = vpack.c.b16 %v953, %v949
        %v1010 = vpack.c.b16 %v954, %v950
        %v1011 = vpack.c.b16 %v959, %v955
        %v1012 = vpack.c.b16 %v960, %v956
        %v1013 = vpack.c.b16 %v961, %v957
        %v1014 = vpack.c.b16 %v962, %v958
        %v1015 = vpack.c.b16 %v967, %v963
        %v1016 = vpack.c.b16 %v968, %v964
        %v1017 = vpack.c.b16 %v969, %v965
        %v1018 = vpack.c.b16 %v970, %v966
        %v1019 = vpack.c.b16 %v975, %v971
        %v1020 = vpack.c.b16 %v976, %v972
        %v1021 = vpack.c.b16 %v977, %v973
        %v1022 = vpack.c.b16 %v978, %v974
        %v1023 = vpack.c.b16 %v983, %v979
        %v1024 = vpack.c.b16 %v984, %v980
        %v1025 = vpack.c.b16 %v985, %v981
        %v1026 = vpack.c.b16 %v986, %v982
        %v1027 = vpack.c.b16 %v991, %v987
        %v1028 = vpack.c.b16 %v992, %v988
        %v1029 = vpack.c.b16 %v993, %v989
        %v1030 = vpack.c.b16 %v994, %v990
        %v1031 = vpack.c.b16 %v999, %v995
        %v1032 = vpack.c.b16 %v1000, %v996
        %v1033 = vpack.c.b16 %v1001, %v997
        %v1034 = vpack.c.b16 %v1002, %v998
        %1067 = vmatprep.subr.bf16.mxu0 %v1032
        %1068 = vmatpush1.bf16.msra.mxu0 %v1031
        %1069 = vmatprep.subr.bf16.mxu0 %v1028
        %1070 = vmatpush1.bf16.msra.mxu0 %v1027
        %1071 = vmatprep.subr.bf16.mxu0 %v1024
        %1072 = vmatpush1.bf16.msra.mxu0 %v1023
        %1073 = vmatprep.subr.bf16.mxu0 %v1020
        %1074 = vmatpush1.bf16.msra.mxu0 %v1019
        %1075 = vmatprep.subr.bf16.mxu0 %v1016
        %1076 = vmatpush1.bf16.msra.mxu0 %v1015
        %1077 = vmatprep.subr.bf16.mxu0 %v1012
        %1078 = vmatpush1.bf16.msra.mxu0 %v1011
        %1079 = vmatprep.subr.bf16.mxu0 %v1008
        %1080 = vmatpush1.bf16.msra.mxu0 %v1007
        %1081 = vmatprep.subr.bf16.mxu0 %v1004
        %1082 = vmatpush1.bf16.msra.mxu0 %v1003
        %1083 = vmatprep.subr.bf16.mxu0 0
        %1084 = vmatpush2.bf16.msra.mxu0 0
        %1085 = vmatprep.subr.bf16.mxu0 0
        %1086 = vmatpush2.bf16.msra.mxu0 0
        %1087 = vmatprep.subr.bf16.mxu0 0
        %1088 = vmatpush2.bf16.msra.mxu0 0
        %1089 = vmatprep.subr.bf16.mxu0 0
        %1090 = vmatpush2.bf16.msra.mxu0 0
        %1091 = vmatprep.subr.bf16.mxu0 0
        %1092 = vmatpush2.bf16.msra.mxu0 0
        %1093 = vmatprep.subr.bf16.mxu0 0
        %1094 = vmatpush2.bf16.msra.mxu0 0
        %1095 = vmatprep.subr.bf16.mxu0 0
        %1096 = vmatpush2.bf16.msra.mxu0 0
        %1097 = vmatprep.subr.bf16.mxu0 0
        %1098 = vmatpush2.bf16.msra.mxu0 0
        %1099 = vmatprep.mubr.bf16.mxu0 0
        %1100 = vmatmul.mubr.bf16.gmra.mxu0 %v906
        %v1101 = vpop.f32.mrf.mxu0
        %v1102 = vadd.f32 0.0, %v1101
        %v1103 = vpop.f32.mrf.mxu0
        %v1104 = vadd.f32 0.0, %v1103
        %v1105 = vpop.f32.mrf.mxu0
        %v1106 = vpop.f32.mrf.mxu0
        %1107 = vdwg.mxu0
        %1108 = vmatprep.subr.bf16.mxu0 %v1034
        %1109 = vmatpush1.bf16.msra.mxu0 %v1033
        %1110 = vmatprep.subr.bf16.mxu0 %v1030
        %1111 = vmatpush1.bf16.msra.mxu0 %v1029
        %1112 = vmatprep.subr.bf16.mxu0 %v1026
        %1113 = vmatpush1.bf16.msra.mxu0 %v1025
        %1114 = vmatprep.subr.bf16.mxu0 %v1022
        %1115 = vmatpush1.bf16.msra.mxu0 %v1021
        %1116 = vmatprep.subr.bf16.mxu0 %v1018
        %1117 = vmatpush1.bf16.msra.mxu0 %v1017
        %1118 = vmatprep.subr.bf16.mxu0 %v1014
        %1119 = vmatpush1.bf16.msra.mxu0 %v1013
        %1120 = vmatprep.subr.bf16.mxu0 %v1010
        %1121 = vmatpush1.bf16.msra.mxu0 %v1009
        %1122 = vmatprep.subr.bf16.mxu0 %v1006
        %1123 = vmatpush1.bf16.msra.mxu0 %v1005
        %1124 = vmatprep.subr.bf16.mxu0 0
        %1125 = vmatpush2.bf16.msra.mxu0 0
        %1126 = vmatprep.subr.bf16.mxu0 0
        %1127 = vmatpush2.bf16.msra.mxu0 0
        %1128 = vmatprep.subr.bf16.mxu0 0
        %1129 = vmatpush2.bf16.msra.mxu0 0
        %1130 = vmatprep.subr.bf16.mxu0 0
        %1131 = vmatpush2.bf16.msra.mxu0 0
        %1132 = vmatprep.subr.bf16.mxu0 0
        %1133 = vmatpush2.bf16.msra.mxu0 0
        %1134 = vmatprep.subr.bf16.mxu0 0
        %1135 = vmatpush2.bf16.msra.mxu0 0
        %1136 = vmatprep.subr.bf16.mxu0 0
        %1137 = vmatpush2.bf16.msra.mxu0 0
        %1138 = vmatprep.subr.bf16.mxu0 0
        %1139 = vmatpush2.bf16.msra.mxu0 0
        %1140 = vmatprep.mubr.bf16.mxu0 0
        %1141 = vmatmul.mubr.bf16.gmra.mxu0 %v906
        %v1142 = vpop.f32.mrf.mxu0
        %v1143 = vadd.f32 0.0, %v1142
        %v1144 = vpop.f32.mrf.mxu0
        %v1145 = vadd.f32 0.0, %v1144
        %v1146 = vpop.f32.mrf.mxu0
        %v1147 = vpop.f32.mrf.mxu0
        %1148 = vdwg.mxu0
        %v1149 = vadd.f32 %v902, %v1102
        %v1150 = vadd.f32 %v903, %v1104
        %v1151 = vadd.f32 %v904, %v1143
        %v1152 = vadd.f32 %v905, %v1145
        %v1153 = vxor.u32 %v1149, 2147483648
        %v1154 = vmul.f32 %v1153, 1.442695
        %v1155 = vpow.pop %v1154
        %v1156 = vadd.f32 %v1155, 1.0
        %v1157 = vrcp.pop %v1156
        %v1158 = vmul.f32 1.0, %v1157
        %v1159 = vxor.u32 %v1150, 2147483648
        %v1160 = vmul.f32 %v1159, 1.442695
        %v1161 = vpow.pop %v1160
        %v1162 = vadd.f32 %v1161, 1.0
        %v1163 = vrcp.pop %v1162
        %v1164 = vmul.f32 1.0, %v1163
        %v1165 = vtanh.pop %v1151
        %v1166 = vxor.u32 %v1152, 2147483648
        %v1167 = vmul.f32 %v1166, 1.442695
        %v1168 = vpow.pop %v1167
        %v1169 = vadd.f32 %v1168, 1.0
        %v1170 = vrcp.pop %v1169
        %v1171 = vmul.f32 1.0, %v1170
        %v1172 = vmul.f32 %v1164, %v894
        %v1173 = vmul.f32 %v1158, %v1165
        %v1174 = vadd.f32 %v1172, %v1173
        %v1175 = vtanh.pop %v1174
        %v1176 = vmul.f32 %v1171, %v1175
        %s1177 = sadd.s32 %s426, %s895
        %v1178 = vstv %s1177
        %vm1179 = vcmp.gt.s32.totalorder %v892, %v1178
        %v1180 = vsel %vm1179, %v1176, %v893
        %v1181 = vsel %vm1179, %v1174, %v894
        %v1182 = vsel %vm1179, %v1176, 0.0
        %v1183 = vpack.c.bf16 %v1182, %v1182
        %s1184 = smul.addr %s895, 4
        %s1185 = scalar_lea.vmem %s392, %s1184 [#allocation11]
        %1186 = vst [vmem:[%s1185] sm:$0xf] %v1183
        %s1187 = smul.u32 %s33, 5
        %s1188 = sadd.s32 %s1187, 1
        %s1189 = smul.u32 %s1188, 8
        %s1190 = sshra.s32 %s1189, 3
        %s1191 = sand.u32 %s1189, 7
        %s1192 = smul.u32 %s1190, 4
        %s1193 = smul.addr %s1192, 8
        %s1194 = scalar_lea.vmem [#allocation4], %s1193
        %v1195 = vld [vmem:[%s1194] sm:$0xff]
        %v1196 = vld [vmem:[%s1194 + $0x8] sm:$0xff]
        %v1197 = vld [vmem:[%s1194 + $0x10] sm:$0xff]
        %v1198 = vld [vmem:[%s1194 + $0x18] sm:$0xff]
        %v1199 = vpack.c.bf16 %v1180, %v1180
        %1200 = vmatprep.subr.bf16.mxu0 %v1032
        %1201 = vmatpush1.bf16.msra.mxu0 %v1031
        %1202 = vmatprep.subr.bf16.mxu0 %v1028
        %1203 = vmatpush1.bf16.msra.mxu0 %v1027
        %1204 = vmatprep.subr.bf16.mxu0 %v1024
        %1205 = vmatpush1.bf16.msra.mxu0 %v1023
        %1206 = vmatprep.subr.bf16.mxu0 %v1020
        %1207 = vmatpush1.bf16.msra.mxu0 %v1019
        %1208 = vmatprep.subr.bf16.mxu0 %v1016
        %1209 = vmatpush1.bf16.msra.mxu0 %v1015
        %1210 = vmatprep.subr.bf16.mxu0 %v1012
        %1211 = vmatpush1.bf16.msra.mxu0 %v1011
        %1212 = vmatprep.subr.bf16.mxu0 %v1008
        %1213 = vmatpush1.bf16.msra.mxu0 %v1007
        %1214 = vmatprep.subr.bf16.mxu0 %v1004
        %1215 = vmatpush1.bf16.msra.mxu0 %v1003
        %1216 = vmatprep.subr.bf16.mxu0 0
        %1217 = vmatpush2.bf16.msra.mxu0 0
        %1218 = vmatprep.subr.bf16.mxu0 0
        %1219 = vmatpush2.bf16.msra.mxu0 0
        %1220 = vmatprep.subr.bf16.mxu0 0
        %1221 = vmatpush2.bf16.msra.mxu0 0
        %1222 = vmatprep.subr.bf16.mxu0 0
        %1223 = vmatpush2.bf16.msra.mxu0 0
        %1224 = vmatprep.subr.bf16.mxu0 0
        %1225 = vmatpush2.bf16.msra.mxu0 0
        %1226 = vmatprep.subr.bf16.mxu0 0
        %1227 = vmatpush2.bf16.msra.mxu0 0
        %1228 = vmatprep.subr.bf16.mxu0 0
        %1229 = vmatpush2.bf16.msra.mxu0 0
        %1230 = vmatprep.subr.bf16.mxu0 0
        %1231 = vmatpush2.bf16.msra.mxu0 0
        %1232 = vmatprep.mubr.bf16.mxu0 0
        %1233 = vmatmul.mubr.bf16.gmra.mxu0 %v1199
        %v1234 = vpop.f32.mrf.mxu0
        %v1235 = vadd.f32 0.0, %v1234
        %v1236 = vpop.f32.mrf.mxu0
        %v1237 = vadd.f32 0.0, %v1236
        %v1238 = vpop.f32.mrf.mxu0
        %v1239 = vpop.f32.mrf.mxu0
        %1240 = vdwg.mxu0
        %1241 = vmatprep.subr.bf16.mxu0 %v1034
        %1242 = vmatpush1.bf16.msra.mxu0 %v1033
        %1243 = vmatprep.subr.bf16.mxu0 %v1030
        %1244 = vmatpush1.bf16.msra.mxu0 %v1029
        %1245 = vmatprep.subr.bf16.mxu0 %v1026
        %1246 = vmatpush1.bf16.msra.mxu0 %v1025
        %1247 = vmatprep.subr.bf16.mxu0 %v1022
        %1248 = vmatpush1.bf16.msra.mxu0 %v1021
        %1249 = vmatprep.subr.bf16.mxu0 %v1018
        %1250 = vmatpush1.bf16.msra.mxu0 %v1017
        %1251 = vmatprep.subr.bf16.mxu0 %v1014
        %1252 = vmatpush1.bf16.msra.mxu0 %v1013
        %1253 = vmatprep.subr.bf16.mxu0 %v1010
        %1254 = vmatpush1.bf16.msra.mxu0 %v1009
        %1255 = vmatprep.subr.bf16.mxu0 %v1006
        %1256 = vmatpush1.bf16.msra.mxu0 %v1005
        %1257 = vmatprep.subr.bf16.mxu0 0
        %1258 = vmatpush2.bf16.msra.mxu0 0
        %1259 = vmatprep.subr.bf16.mxu0 0
        %1260 = vmatpush2.bf16.msra.mxu0 0
        %1261 = vmatprep.subr.bf16.mxu0 0
        %1262 = vmatpush2.bf16.msra.mxu0 0
        %1263 = vmatprep.subr.bf16.mxu0 0
        %1264 = vmatpush2.bf16.msra.mxu0 0
        %1265 = vmatprep.subr.bf16.mxu0 0
        %1266 = vmatpush2.bf16.msra.mxu0 0
        %1267 = vmatprep.subr.bf16.mxu0 0
        %1268 = vmatpush2.bf16.msra.mxu0 0
        %1269 = vmatprep.subr.bf16.mxu0 0
        %1270 = vmatpush2.bf16.msra.mxu0 0
        %1271 = vmatprep.subr.bf16.mxu0 0
        %1272 = vmatpush2.bf16.msra.mxu0 0
        %1273 = vmatprep.mubr.bf16.mxu0 0
        %1274 = vmatmul.mubr.bf16.gmra.mxu0 %v1199
        %v1275 = vpop.f32.mrf.mxu0
        %v1276 = vadd.f32 0.0, %v1275
        %v1277 = vpop.f32.mrf.mxu0
        %v1278 = vadd.f32 0.0, %v1277
        %v1279 = vpop.f32.mrf.mxu0
        %v1280 = vpop.f32.mrf.mxu0
        %1281 = vdwg.mxu0
        %v1282 = vadd.f32 %v1195, %v1235
        %v1283 = vadd.f32 %v1196, %v1237
        %v1284 = vadd.f32 %v1197, %v1276
        %v1285 = vadd.f32 %v1198, %v1278
        %v1286 = vxor.u32 %v1282, 2147483648
        %v1287 = vmul.f32 %v1286, 1.442695
        %v1288 = vpow.pop %v1287
        %v1289 = vadd.f32 %v1288, 1.0
        %v1290 = vrcp.pop %v1289
        %v1291 = vmul.f32 1.0, %v1290
        %v1292 = vxor.u32 %v1283, 2147483648
        %v1293 = vmul.f32 %v1292, 1.442695
        %v1294 = vpow.pop %v1293
        %v1295 = vadd.f32 %v1294, 1.0
        %v1296 = vrcp.pop %v1295
        %v1297 = vmul.f32 1.0, %v1296
        %v1298 = vtanh.pop %v1284
        %v1299 = vxor.u32 %v1285, 2147483648
        %v1300 = vmul.f32 %v1299, 1.442695
        %v1301 = vpow.pop %v1300
        %v1302 = vadd.f32 %v1301, 1.0
        %v1303 = vrcp.pop %v1302
        %v1304 = vmul.f32 1.0, %v1303
        %v1305 = vmul.f32 %v1297, %v1181
        %v1306 = vmul.f32 %v1291, %v1298
        %v1307 = vadd.f32 %v1305, %v1306
        %v1308 = vtanh.pop %v1307
        %v1309 = vmul.f32 %v1304, %v1308
        %s1310 = sadd.s32 %s426, %s1188
        %v1311 = vstv %s1310
        %vm1312 = vcmp.gt.s32.totalorder %v892, %v1311
        %v1313 = vsel %vm1312, %v1309, %v1180
        %v1314 = vsel %vm1312, %v1307, %v1181
        %v1315 = vsel %vm1312, %v1309, 0.0
        %v1316 = vpack.c.bf16 %v1315, %v1315
        %s1317 = smul.addr %s1188, 4
        %s1318 = scalar_lea.vmem %s392, %s1317 [#allocation11]
        %1319 = vst [vmem:[%s1318] sm:$0xf] %v1316
        %s1320 = smul.u32 %s33, 3
        %s1321 = sadd.s32 %s1320, 2
        %s1322 = smul.u32 %s1321, 8
        %s1323 = sshra.s32 %s1322, 3
        %s1324 = sand.u32 %s1322, 7
        %s1325 = smul.u32 %s1323, 4
        %s1326 = smul.addr %s1325, 8
        %s1327 = scalar_lea.vmem [#allocation4], %s1326
        %v1328 = vld [vmem:[%s1327] sm:$0xff]
        %v1329 = vld [vmem:[%s1327 + $0x8] sm:$0xff]
        %v1330 = vld [vmem:[%s1327 + $0x10] sm:$0xff]
        %v1331 = vld [vmem:[%s1327 + $0x18] sm:$0xff]
        %v1332 = vpack.c.bf16 %v1313, %v1313
        %1333 = vmatprep.subr.bf16.mxu0 %v1032
        %1334 = vmatpush1.bf16.msra.mxu0 %v1031
        %1335 = vmatprep.subr.bf16.mxu0 %v1028
        %1336 = vmatpush1.bf16.msra.mxu0 %v1027
        %1337 = vmatprep.subr.bf16.mxu0 %v1024
        %1338 = vmatpush1.bf16.msra.mxu0 %v1023
        %1339 = vmatprep.subr.bf16.mxu0 %v1020
        %1340 = vmatpush1.bf16.msra.mxu0 %v1019
        %1341 = vmatprep.subr.bf16.mxu0 %v1016
        %1342 = vmatpush1.bf16.msra.mxu0 %v1015
        %1343 = vmatprep.subr.bf16.mxu0 %v1012
        %1344 = vmatpush1.bf16.msra.mxu0 %v1011
        %1345 = vmatprep.subr.bf16.mxu0 %v1008
        %1346 = vmatpush1.bf16.msra.mxu0 %v1007
        %1347 = vmatprep.subr.bf16.mxu0 %v1004
        %1348 = vmatpush1.bf16.msra.mxu0 %v1003
        %1349 = vmatprep.subr.bf16.mxu0 0
        %1350 = vmatpush2.bf16.msra.mxu0 0
        %1351 = vmatprep.subr.bf16.mxu0 0
        %1352 = vmatpush2.bf16.msra.mxu0 0
        %1353 = vmatprep.subr.bf16.mxu0 0
        %1354 = vmatpush2.bf16.msra.mxu0 0
        %1355 = vmatprep.subr.bf16.mxu0 0
        %1356 = vmatpush2.bf16.msra.mxu0 0
        %1357 = vmatprep.subr.bf16.mxu0 0
        %1358 = vmatpush2.bf16.msra.mxu0 0
        %1359 = vmatprep.subr.bf16.mxu0 0
        %1360 = vmatpush2.bf16.msra.mxu0 0
        %1361 = vmatprep.subr.bf16.mxu0 0
        %1362 = vmatpush2.bf16.msra.mxu0 0
        %1363 = vmatprep.subr.bf16.mxu0 0
        %1364 = vmatpush2.bf16.msra.mxu0 0
        %1365 = vmatprep.mubr.bf16.mxu0 0
        %1366 = vmatmul.mubr.bf16.gmra.mxu0 %v1332
        %v1367 = vpop.f32.mrf.mxu0
        %v1368 = vadd.f32 0.0, %v1367
        %v1369 = vpop.f32.mrf.mxu0
        %v1370 = vadd.f32 0.0, %v1369
        %v1371 = vpop.f32.mrf.mxu0
        %v1372 = vpop.f32.mrf.mxu0
        %1373 = vdwg.mxu0
        %1374 = vmatprep.subr.bf16.mxu0 %v1034
        %1375 = vmatpush1.bf16.msra.mxu0 %v1033
        %1376 = vmatprep.subr.bf16.mxu0 %v1030
        %1377 = vmatpush1.bf16.msra.mxu0 %v1029
        %1378 = vmatprep.subr.bf16.mxu0 %v1026
        %1379 = vmatpush1.bf16.msra.mxu0 %v1025
        %1380 = vmatprep.subr.bf16.mxu0 %v1022
        %1381 = vmatpush1.bf16.msra.mxu0 %v1021
        %1382 = vmatprep.subr.bf16.mxu0 %v1018
        %1383 = vmatpush1.bf16.msra.mxu0 %v1017
        %1384 = vmatprep.subr.bf16.mxu0 %v1014
        %1385 = vmatpush1.bf16.msra.mxu0 %v1013
        %1386 = vmatprep.subr.bf16.mxu0 %v1010
        %1387 = vmatpush1.bf16.msra.mxu0 %v1009
        %1388 = vmatprep.subr.bf16.mxu0 %v1006
        %1389 = vmatpush1.bf16.msra.mxu0 %v1005
        %1390 = vmatprep.subr.bf16.mxu0 0
        %1391 = vmatpush2.bf16.msra.mxu0 0
        %1392 = vmatprep.subr.bf16.mxu0 0
        %1393 = vmatpush2.bf16.msra.mxu0 0
        %1394 = vmatprep.subr.bf16.mxu0 0
        %1395 = vmatpush2.bf16.msra.mxu0 0
        %1396 = vmatprep.subr.bf16.mxu0 0
        %1397 = vmatpush2.bf16.msra.mxu0 0
        %1398 = vmatprep.subr.bf16.mxu0 0
        %1399 = vmatpush2.bf16.msra.mxu0 0
        %1400 = vmatprep.subr.bf16.mxu0 0
        %1401 = vmatpush2.bf16.msra.mxu0 0
        %1402 = vmatprep.subr.bf16.mxu0 0
        %1403 = vmatpush2.bf16.msra.mxu0 0
        %1404 = vmatprep.subr.bf16.mxu0 0
        %1405 = vmatpush2.bf16.msra.mxu0 0
        %1406 = vmatprep.mubr.bf16.mxu0 0
        %1407 = vmatmul.mubr.bf16.gmra.mxu0 %v1332
        %v1408 = vpop.f32.mrf.mxu0
        %v1409 = vadd.f32 0.0, %v1408
        %v1410 = vpop.f32.mrf.mxu0
        %v1411 = vadd.f32 0.0, %v1410
        %v1412 = vpop.f32.mrf.mxu0
        %v1413 = vpop.f32.mrf.mxu0
        %1414 = vdwg.mxu0
        %v1415 = vadd.f32 %v1328, %v1368
        %v1416 = vadd.f32 %v1329, %v1370
        %v1417 = vadd.f32 %v1330, %v1409
        %v1418 = vadd.f32 %v1331, %v1411
        %v1419 = vxor.u32 %v1415, 2147483648
        %v1420 = vmul.f32 %v1419, 1.442695
        %v1421 = vpow.pop %v1420
        %v1422 = vadd.f32 %v1421, 1.0
        %v1423 = vrcp.pop %v1422
        %v1424 = vmul.f32 1.0, %v1423
        %v1425 = vxor.u32 %v1416, 2147483648
        %v1426 = vmul.f32 %v1425, 1.442695
        %v1427 = vpow.pop %v1426
        %v1428 = vadd.f32 %v1427, 1.0
        %v1429 = vrcp.pop %v1428
        %v1430 = vmul.f32 1.0, %v1429
        %v1431 = vtanh.pop %v1417
        %v1432 = vxor.u32 %v1418, 2147483648
        %v1433 = vmul.f32 %v1432, 1.442695
        %v1434 = vpow.pop %v1433
        %v1435 = vadd.f32 %v1434, 1.0
        %v1436 = vrcp.pop %v1435
        %v1437 = vmul.f32 1.0, %v1436
        %v1438 = vmul.f32 %v1430, %v1314
        %v1439 = vmul.f32 %v1424, %v1431
        %v1440 = vadd.f32 %v1438, %v1439
        %v1441 = vtanh.pop %v1440
        %v1442 = vmul.f32 %v1437, %v1441
        %s1443 = sadd.s32 %s426, %s1321
        %v1444 = vstv %s1443
        %vm1445 = vcmp.gt.s32.totalorder %v892, %v1444
        %v1446 = vsel %vm1445, %v1442, %v1313
        %v1447 = vsel %vm1445, %v1440, %v1314
        %v1448 = vsel %vm1445, %v1442, 0.0
        %v1449 = vpack.c.bf16 %v1448, %v1448
        %s1450 = smul.addr %s1321, 4
        %s1451 = scalar_lea.vmem %s392, %s1450 [#allocation11]
        %1452 = vst [vmem:[%s1451] sm:$0xf] %v1449
        %s1453 = sadd.s32 %s33, 3
        %s1454 = smul.u32 %s1453, 8
        %s1455 = sshra.s32 %s1454, 3
        %s1456 = sand.u32 %s1454, 7
        %s1457 = smul.u32 %s1455, 4
        %s1458 = smul.addr %s1457, 8
        %s1459 = scalar_lea.vmem [#allocation4], %s1458
        %v1460 = vld [vmem:[%s1459] sm:$0xff]
        %v1461 = vld [vmem:[%s1459 + $0x8] sm:$0xff]
        %v1462 = vld [vmem:[%s1459 + $0x10] sm:$0xff]
        %v1463 = vld [vmem:[%s1459 + $0x18] sm:$0xff]
        %v1464 = vpack.c.bf16 %v1446, %v1446
        %1465 = vmatprep.subr.bf16.mxu0 %v1032
        %1466 = vmatpush1.bf16.msra.mxu0 %v1031
        %1467 = vmatprep.subr.bf16.mxu0 %v1028
        %1468 = vmatpush1.bf16.msra.mxu0 %v1027
        %1469 = vmatprep.subr.bf16.mxu0 %v1024
        %1470 = vmatpush1.bf16.msra.mxu0 %v1023
        %1471 = vmatprep.subr.bf16.mxu0 %v1020
        %1472 = vmatpush1.bf16.msra.mxu0 %v1019
        %1473 = vmatprep.subr.bf16.mxu0 %v1016
        %1474 = vmatpush1.bf16.msra.mxu0 %v1015
        %1475 = vmatprep.subr.bf16.mxu0 %v1012
        %1476 = vmatpush1.bf16.msra.mxu0 %v1011
        %1477 = vmatprep.subr.bf16.mxu0 %v1008
        %1478 = vmatpush1.bf16.msra.mxu0 %v1007
        %1479 = vmatprep.subr.bf16.mxu0 %v1004
        %1480 = vmatpush1.bf16.msra.mxu0 %v1003
        %1481 = vmatprep.subr.bf16.mxu0 0
        %1482 = vmatpush2.bf16.msra.mxu0 0
        %1483 = vmatprep.subr.bf16.mxu0 0
        %1484 = vmatpush2.bf16.msra.mxu0 0
        %1485 = vmatprep.subr.bf16.mxu0 0
        %1486 = vmatpush2.bf16.msra.mxu0 0
        %1487 = vmatprep.subr.bf16.mxu0 0
        %1488 = vmatpush2.bf16.msra.mxu0 0
        %1489 = vmatprep.subr.bf16.mxu0 0
        %1490 = vmatpush2.bf16.msra.mxu0 0
        %1491 = vmatprep.subr.bf16.mxu0 0
        %1492 = vmatpush2.bf16.msra.mxu0 0
        %1493 = vmatprep.subr.bf16.mxu0 0
        %1494 = vmatpush2.bf16.msra.mxu0 0
        %1495 = vmatprep.subr.bf16.mxu0 0
        %1496 = vmatpush2.bf16.msra.mxu0 0
        %1497 = vmatprep.mubr.bf16.mxu0 0
        %1498 = vmatmul.mubr.bf16.gmra.mxu0 %v1464
        %v1499 = vpop.f32.mrf.mxu0
        %v1500 = vadd.f32 0.0, %v1499
        %v1501 = vpop.f32.mrf.mxu0
        %v1502 = vadd.f32 0.0, %v1501
        %v1503 = vpop.f32.mrf.mxu0
        %v1504 = vpop.f32.mrf.mxu0
        %1505 = vdwg.mxu0
        %1506 = vmatprep.subr.bf16.mxu0 %v1034
        %1507 = vmatpush1.bf16.msra.mxu0 %v1033
        %1508 = vmatprep.subr.bf16.mxu0 %v1030
        %1509 = vmatpush1.bf16.msra.mxu0 %v1029
        %1510 = vmatprep.subr.bf16.mxu0 %v1026
        %1511 = vmatpush1.bf16.msra.mxu0 %v1025
        %1512 = vmatprep.subr.bf16.mxu0 %v1022
        %1513 = vmatpush1.bf16.msra.mxu0 %v1021
        %1514 = vmatprep.subr.bf16.mxu0 %v1018
        %1515 = vmatpush1.bf16.msra.mxu0 %v1017
        %1516 = vmatprep.subr.bf16.mxu0 %v1014
        %1517 = vmatpush1.bf16.msra.mxu0 %v1013
        %1518 = vmatprep.subr.bf16.mxu0 %v1010
        %1519 = vmatpush1.bf16.msra.mxu0 %v1009
        %1520 = vmatprep.subr.bf16.mxu0 %v1006
        %1521 = vmatpush1.bf16.msra.mxu0 %v1005
        %1522 = vmatprep.subr.bf16.mxu0 0
        %1523 = vmatpush2.bf16.msra.mxu0 0
        %1524 = vmatprep.subr.bf16.mxu0 0
        %1525 = vmatpush2.bf16.msra.mxu0 0
        %1526 = vmatprep.subr.bf16.mxu0 0
        %1527 = vmatpush2.bf16.msra.mxu0 0
        %1528 = vmatprep.subr.bf16.mxu0 0
        %1529 = vmatpush2.bf16.msra.mxu0 0
        %1530 = vmatprep.subr.bf16.mxu0 0
        %1531 = vmatpush2.bf16.msra.mxu0 0
        %1532 = vmatprep.subr.bf16.mxu0 0
        %1533 = vmatpush2.bf16.msra.mxu0 0
        %1534 = vmatprep.subr.bf16.mxu0 0
        %1535 = vmatpush2.bf16.msra.mxu0 0
        %1536 = vmatprep.subr.bf16.mxu0 0
        %1537 = vmatpush2.bf16.msra.mxu0 0
        %1538 = vmatprep.mubr.bf16.mxu0 0
        %1539 = vmatmul.mubr.bf16.gmra.mxu0 %v1464
        %v1540 = vpop.f32.mrf.mxu0
        %v1541 = vadd.f32 0.0, %v1540
        %v1542 = vpop.f32.mrf.mxu0
        %v1543 = vadd.f32 0.0, %v1542
        %v1544 = vpop.f32.mrf.mxu0
        %v1545 = vpop.f32.mrf.mxu0
        %1546 = vdwg.mxu0
        %v1547 = vadd.f32 %v1460, %v1500
        %v1548 = vadd.f32 %v1461, %v1502
        %v1549 = vadd.f32 %v1462, %v1541
        %v1550 = vadd.f32 %v1463, %v1543
        %v1551 = vxor.u32 %v1547, 2147483648
        %v1552 = vmul.f32 %v1551, 1.442695
        %v1553 = vpow.pop %v1552
        %v1554 = vadd.f32 %v1553, 1.0
        %v1555 = vrcp.pop %v1554
        %v1556 = vmul.f32 1.0, %v1555
        %v1557 = vxor.u32 %v1548, 2147483648
        %v1558 = vmul.f32 %v1557, 1.442695
        %v1559 = vpow.pop %v1558
        %v1560 = vadd.f32 %v1559, 1.0
        %v1561 = vrcp.pop %v1560
        %v1562 = vmul.f32 1.0, %v1561
        %v1563 = vtanh.pop %v1549
        %v1564 = vxor.u32 %v1550, 2147483648
        %v1565 = vmul.f32 %v1564, 1.442695
        %v1566 = vpow.pop %v1565
        %v1567 = vadd.f32 %v1566, 1.0
        %v1568 = vrcp.pop %v1567
        %v1569 = vmul.f32 1.0, %v1568
        %v1570 = vmul.f32 %v1562, %v1447
        %v1571 = vmul.f32 %v1556, %v1563
        %v1572 = vadd.f32 %v1570, %v1571
        %v1573 = vtanh.pop %v1572
        %v1574 = vmul.f32 %v1569, %v1573
        %s1575 = sadd.s32 %s426, %s1453
        %v1576 = vstv %s1575
        %vm1577 = vcmp.gt.s32.totalorder %v892, %v1576
        %v1578 = vsel %vm1577, %v1574, %v1446
        %v1579 = vsel %vm1577, %v1572, %v1447
        %v1580 = vsel %vm1577, %v1574, 0.0
        %v1581 = vpack.c.bf16 %v1580, %v1580
        %s1582 = smul.addr %s1453, 4
        %s1583 = scalar_lea.vmem %s392, %s1582 [#allocation11]
        %1584 = vst [vmem:[%s1583] sm:$0xf] %v1581
        %s1585 = ssub.s32 4, %s33
        %s1586 = smul.u32 %s1585, 8
        %s1587 = sshra.s32 %s1586, 3
        %s1588 = sand.u32 %s1586, 7
        %s1589 = smul.u32 %s1587, 4
        %s1590 = smul.addr %s1589, 8
        %s1591 = scalar_lea.vmem [#allocation4], %s1590
        %v1592 = vld [vmem:[%s1591] sm:$0xff]
        %v1593 = vld [vmem:[%s1591 + $0x8] sm:$0xff]
        %v1594 = vld [vmem:[%s1591 + $0x10] sm:$0xff]
        %v1595 = vld [vmem:[%s1591 + $0x18] sm:$0xff]
        %v1596 = vpack.c.bf16 %v1578, %v1578
        %1597 = vmatprep.subr.bf16.mxu0 %v1032
        %1598 = vmatpush1.bf16.msra.mxu0 %v1031
        %1599 = vmatprep.subr.bf16.mxu0 %v1028
        %1600 = vmatpush1.bf16.msra.mxu0 %v1027
        %1601 = vmatprep.subr.bf16.mxu0 %v1024
        %1602 = vmatpush1.bf16.msra.mxu0 %v1023
        %1603 = vmatprep.subr.bf16.mxu0 %v1020
        %1604 = vmatpush1.bf16.msra.mxu0 %v1019
        %1605 = vmatprep.subr.bf16.mxu0 %v1016
        %1606 = vmatpush1.bf16.msra.mxu0 %v1015
        %1607 = vmatprep.subr.bf16.mxu0 %v1012
        %1608 = vmatpush1.bf16.msra.mxu0 %v1011
        %1609 = vmatprep.subr.bf16.mxu0 %v1008
        %1610 = vmatpush1.bf16.msra.mxu0 %v1007
        %1611 = vmatprep.subr.bf16.mxu0 %v1004
        %1612 = vmatpush1.bf16.msra.mxu0 %v1003
        %1613 = vmatprep.subr.bf16.mxu0 0
        %1614 = vmatpush2.bf16.msra.mxu0 0
        %1615 = vmatprep.subr.bf16.mxu0 0
        %1616 = vmatpush2.bf16.msra.mxu0 0
        %1617 = vmatprep.subr.bf16.mxu0 0
        %1618 = vmatpush2.bf16.msra.mxu0 0
        %1619 = vmatprep.subr.bf16.mxu0 0
        %1620 = vmatpush2.bf16.msra.mxu0 0
        %1621 = vmatprep.subr.bf16.mxu0 0
        %1622 = vmatpush2.bf16.msra.mxu0 0
        %1623 = vmatprep.subr.bf16.mxu0 0
        %1624 = vmatpush2.bf16.msra.mxu0 0
        %1625 = vmatprep.subr.bf16.mxu0 0
        %1626 = vmatpush2.bf16.msra.mxu0 0
        %1627 = vmatprep.subr.bf16.mxu0 0
        %1628 = vmatpush2.bf16.msra.mxu0 0
        %1629 = vmatprep.mubr.bf16.mxu0 0
        %1630 = vmatmul.mubr.bf16.gmra.mxu0 %v1596
        %v1631 = vpop.f32.mrf.mxu0
        %v1632 = vadd.f32 0.0, %v1631
        %v1633 = vpop.f32.mrf.mxu0
        %v1634 = vadd.f32 0.0, %v1633
        %v1635 = vpop.f32.mrf.mxu0
        %v1636 = vpop.f32.mrf.mxu0
        %1637 = vdwg.mxu0
        %1638 = vmatprep.subr.bf16.mxu0 %v1034
        %1639 = vmatpush1.bf16.msra.mxu0 %v1033
        %1640 = vmatprep.subr.bf16.mxu0 %v1030
        %1641 = vmatpush1.bf16.msra.mxu0 %v1029
        %1642 = vmatprep.subr.bf16.mxu0 %v1026
        %1643 = vmatpush1.bf16.msra.mxu0 %v1025
        %1644 = vmatprep.subr.bf16.mxu0 %v1022
        %1645 = vmatpush1.bf16.msra.mxu0 %v1021
        %1646 = vmatprep.subr.bf16.mxu0 %v1018
        %1647 = vmatpush1.bf16.msra.mxu0 %v1017
        %1648 = vmatprep.subr.bf16.mxu0 %v1014
        %1649 = vmatpush1.bf16.msra.mxu0 %v1013
        %1650 = vmatprep.subr.bf16.mxu0 %v1010
        %1651 = vmatpush1.bf16.msra.mxu0 %v1009
        %1652 = vmatprep.subr.bf16.mxu0 %v1006
        %1653 = vmatpush1.bf16.msra.mxu0 %v1005
        %1654 = vmatprep.subr.bf16.mxu0 0
        %1655 = vmatpush2.bf16.msra.mxu0 0
        %1656 = vmatprep.subr.bf16.mxu0 0
        %1657 = vmatpush2.bf16.msra.mxu0 0
        %1658 = vmatprep.subr.bf16.mxu0 0
        %1659 = vmatpush2.bf16.msra.mxu0 0
        %1660 = vmatprep.subr.bf16.mxu0 0
        %1661 = vmatpush2.bf16.msra.mxu0 0
        %1662 = vmatprep.subr.bf16.mxu0 0
        %1663 = vmatpush2.bf16.msra.mxu0 0
        %1664 = vmatprep.subr.bf16.mxu0 0
        %1665 = vmatpush2.bf16.msra.mxu0 0
        %1666 = vmatprep.subr.bf16.mxu0 0
        %1667 = vmatpush2.bf16.msra.mxu0 0
        %1668 = vmatprep.subr.bf16.mxu0 0
        %1669 = vmatpush2.bf16.msra.mxu0 0
        %1670 = vmatprep.mubr.bf16.mxu0 0
        %1671 = vmatmul.mubr.bf16.gmra.mxu0 %v1596
        %v1672 = vpop.f32.mrf.mxu0
        %v1673 = vadd.f32 0.0, %v1672
        %v1674 = vpop.f32.mrf.mxu0
        %v1675 = vadd.f32 0.0, %v1674
        %v1676 = vpop.f32.mrf.mxu0
        %v1677 = vpop.f32.mrf.mxu0
        %1678 = vdwg.mxu0
        %v1679 = vadd.f32 %v1592, %v1632
        %v1680 = vadd.f32 %v1593, %v1634
        %v1681 = vadd.f32 %v1594, %v1673
        %v1682 = vadd.f32 %v1595, %v1675
        %v1683 = vxor.u32 %v1679, 2147483648
        %v1684 = vmul.f32 %v1683, 1.442695
        %v1685 = vpow.pop %v1684
        %v1686 = vadd.f32 %v1685, 1.0
        %v1687 = vrcp.pop %v1686
        %v1688 = vmul.f32 1.0, %v1687
        %v1689 = vxor.u32 %v1680, 2147483648
        %v1690 = vmul.f32 %v1689, 1.442695
        %v1691 = vpow.pop %v1690
        %v1692 = vadd.f32 %v1691, 1.0
        %v1693 = vrcp.pop %v1692
        %v1694 = vmul.f32 1.0, %v1693
        %v1695 = vtanh.pop %v1681
        %v1696 = vxor.u32 %v1682, 2147483648
        %v1697 = vmul.f32 %v1696, 1.442695
        %v1698 = vpow.pop %v1697
        %v1699 = vadd.f32 %v1698, 1.0
        %v1700 = vrcp.pop %v1699
        %v1701 = vmul.f32 1.0, %v1700
        %v1702 = vmul.f32 %v1694, %v1579
        %v1703 = vmul.f32 %v1688, %v1695
        %v1704 = vadd.f32 %v1702, %v1703
        %v1705 = vtanh.pop %v1704
        %v1706 = vmul.f32 %v1701, %v1705
        %s1707 = sadd.s32 %s426, %s1585
        %v1708 = vstv %s1707
        %vm1709 = vcmp.gt.s32.totalorder %v892, %v1708
        %v1710 = vsel %vm1709, %v1706, %v1578
        %v1711 = vsel %vm1709, %v1704, %v1579
        %v1712 = vsel %vm1709, %v1706, 0.0
        %v1713 = vpack.c.bf16 %v1712, %v1712
        %s1714 = smul.addr %s1585, 4
        %s1715 = scalar_lea.vmem %s392, %s1714 [#allocation11]
        %1716 = vst [vmem:[%s1715] sm:$0xf] %v1713
        %s1717 = smul.u32 %s33, 4294967293
        %s1718 = sadd.s32 %s1717, 5
        %s1719 = smul.u32 %s1718, 8
        %s1720 = sshra.s32 %s1719, 3
        %s1721 = sand.u32 %s1719, 7
        %s1722 = smul.u32 %s1720, 4
        %s1723 = smul.addr %s1722, 8
        %s1724 = scalar_lea.vmem [#allocation4], %s1723
        %v1725 = vld [vmem:[%s1724] sm:$0xff]
        %v1726 = vld [vmem:[%s1724 + $0x8] sm:$0xff]
        %v1727 = vld [vmem:[%s1724 + $0x10] sm:$0xff]
        %v1728 = vld [vmem:[%s1724 + $0x18] sm:$0xff]
        %v1729 = vpack.c.bf16 %v1710, %v1710
        %1730 = vmatprep.subr.bf16.mxu0 %v1032
        %1731 = vmatpush1.bf16.msra.mxu0 %v1031
        %1732 = vmatprep.subr.bf16.mxu0 %v1028
        %1733 = vmatpush1.bf16.msra.mxu0 %v1027
        %1734 = vmatprep.subr.bf16.mxu0 %v1024
        %1735 = vmatpush1.bf16.msra.mxu0 %v1023
        %1736 = vmatprep.subr.bf16.mxu0 %v1020
        %1737 = vmatpush1.bf16.msra.mxu0 %v1019
        %1738 = vmatprep.subr.bf16.mxu0 %v1016
        %1739 = vmatpush1.bf16.msra.mxu0 %v1015
        %1740 = vmatprep.subr.bf16.mxu0 %v1012
        %1741 = vmatpush1.bf16.msra.mxu0 %v1011
        %1742 = vmatprep.subr.bf16.mxu0 %v1008
        %1743 = vmatpush1.bf16.msra.mxu0 %v1007
        %1744 = vmatprep.subr.bf16.mxu0 %v1004
        %1745 = vmatpush1.bf16.msra.mxu0 %v1003
        %1746 = vmatprep.subr.bf16.mxu0 0
        %1747 = vmatpush2.bf16.msra.mxu0 0
        %1748 = vmatprep.subr.bf16.mxu0 0
        %1749 = vmatpush2.bf16.msra.mxu0 0
        %1750 = vmatprep.subr.bf16.mxu0 0
        %1751 = vmatpush2.bf16.msra.mxu0 0
        %1752 = vmatprep.subr.bf16.mxu0 0
        %1753 = vmatpush2.bf16.msra.mxu0 0
        %1754 = vmatprep.subr.bf16.mxu0 0
        %1755 = vmatpush2.bf16.msra.mxu0 0
        %1756 = vmatprep.subr.bf16.mxu0 0
        %1757 = vmatpush2.bf16.msra.mxu0 0
        %1758 = vmatprep.subr.bf16.mxu0 0
        %1759 = vmatpush2.bf16.msra.mxu0 0
        %1760 = vmatprep.subr.bf16.mxu0 0
        %1761 = vmatpush2.bf16.msra.mxu0 0
        %1762 = vmatprep.mubr.bf16.mxu0 0
        %1763 = vmatmul.mubr.bf16.gmra.mxu0 %v1729
        %v1764 = vpop.f32.mrf.mxu0
        %v1765 = vadd.f32 0.0, %v1764
        %v1766 = vpop.f32.mrf.mxu0
        %v1767 = vadd.f32 0.0, %v1766
        %v1768 = vpop.f32.mrf.mxu0
        %v1769 = vpop.f32.mrf.mxu0
        %1770 = vdwg.mxu0
        %1771 = vmatprep.subr.bf16.mxu0 %v1034
        %1772 = vmatpush1.bf16.msra.mxu0 %v1033
        %1773 = vmatprep.subr.bf16.mxu0 %v1030
        %1774 = vmatpush1.bf16.msra.mxu0 %v1029
        %1775 = vmatprep.subr.bf16.mxu0 %v1026
        %1776 = vmatpush1.bf16.msra.mxu0 %v1025
        %1777 = vmatprep.subr.bf16.mxu0 %v1022
        %1778 = vmatpush1.bf16.msra.mxu0 %v1021
        %1779 = vmatprep.subr.bf16.mxu0 %v1018
        %1780 = vmatpush1.bf16.msra.mxu0 %v1017
        %1781 = vmatprep.subr.bf16.mxu0 %v1014
        %1782 = vmatpush1.bf16.msra.mxu0 %v1013
        %1783 = vmatprep.subr.bf16.mxu0 %v1010
        %1784 = vmatpush1.bf16.msra.mxu0 %v1009
        %1785 = vmatprep.subr.bf16.mxu0 %v1006
        %1786 = vmatpush1.bf16.msra.mxu0 %v1005
        %1787 = vmatprep.subr.bf16.mxu0 0
        %1788 = vmatpush2.bf16.msra.mxu0 0
        %1789 = vmatprep.subr.bf16.mxu0 0
        %1790 = vmatpush2.bf16.msra.mxu0 0
        %1791 = vmatprep.subr.bf16.mxu0 0
        %1792 = vmatpush2.bf16.msra.mxu0 0
        %1793 = vmatprep.subr.bf16.mxu0 0
        %1794 = vmatpush2.bf16.msra.mxu0 0
        %1795 = vmatprep.subr.bf16.mxu0 0
        %1796 = vmatpush2.bf16.msra.mxu0 0
        %1797 = vmatprep.subr.bf16.mxu0 0
        %1798 = vmatpush2.bf16.msra.mxu0 0
        %1799 = vmatprep.subr.bf16.mxu0 0
        %1800 = vmatpush2.bf16.msra.mxu0 0
        %1801 = vmatprep.subr.bf16.mxu0 0
        %1802 = vmatpush2.bf16.msra.mxu0 0
        %1803 = vmatprep.mubr.bf16.mxu0 0
        %1804 = vmatmul.mubr.bf16.gmra.mxu0 %v1729
        %v1805 = vpop.f32.mrf.mxu0
        %v1806 = vadd.f32 0.0, %v1805
        %v1807 = vpop.f32.mrf.mxu0
        %v1808 = vadd.f32 0.0, %v1807
        %v1809 = vpop.f32.mrf.mxu0
        %v1810 = vpop.f32.mrf.mxu0
        %1811 = vdwg.mxu0
        %v1812 = vadd.f32 %v1725, %v1765
        %v1813 = vadd.f32 %v1726, %v1767
        %v1814 = vadd.f32 %v1727, %v1806
        %v1815 = vadd.f32 %v1728, %v1808
        %v1816 = vxor.u32 %v1812, 2147483648
        %v1817 = vmul.f32 %v1816, 1.442695
        %v1818 = vpow.pop %v1817
        %v1819 = vadd.f32 %v1818, 1.0
        %v1820 = vrcp.pop %v1819
        %v1821 = vmul.f32 1.0, %v1820
        %v1822 = vxor.u32 %v1813, 2147483648
        %v1823 = vmul.f32 %v1822, 1.442695
        %v1824 = vpow.pop %v1823
        %v1825 = vadd.f32 %v1824, 1.0
        %v1826 = vrcp.pop %v1825
        %v1827 = vmul.f32 1.0, %v1826
        %v1828 = vtanh.pop %v1814
        %v1829 = vxor.u32 %v1815, 2147483648
        %v1830 = vmul.f32 %v1829, 1.442695
        %v1831 = vpow.pop %v1830
        %v1832 = vadd.f32 %v1831, 1.0
        %v1833 = vrcp.pop %v1832
        %v1834 = vmul.f32 1.0, %v1833
        %v1835 = vmul.f32 %v1827, %v1711
        %v1836 = vmul.f32 %v1821, %v1828
        %v1837 = vadd.f32 %v1835, %v1836
        %v1838 = vtanh.pop %v1837
        %v1839 = vmul.f32 %v1834, %v1838
        %s1840 = sadd.s32 %s426, %s1718
        %v1841 = vstv %s1840
        %vm1842 = vcmp.gt.s32.totalorder %v892, %v1841
        %v1843 = vsel %vm1842, %v1839, %v1710
        %v1844 = vsel %vm1842, %v1837, %v1711
        %v1845 = vsel %vm1842, %v1839, 0.0
        %v1846 = vpack.c.bf16 %v1845, %v1845
        %s1847 = smul.addr %s1718, 4
        %s1848 = scalar_lea.vmem %s392, %s1847 [#allocation11]
        %1849 = vst [vmem:[%s1848] sm:$0xf] %v1846
        %s1850 = smul.u32 %s33, 4294967291
        %s1851 = sadd.s32 %s1850, 6
        %s1852 = smul.u32 %s1851, 8
        %s1853 = sshra.s32 %s1852, 3
        %s1854 = sand.u32 %s1852, 7
        %s1855 = smul.u32 %s1853, 4
        %s1856 = smul.addr %s1855, 8
        %s1857 = scalar_lea.vmem [#allocation4], %s1856
        %v1858 = vld [vmem:[%s1857] sm:$0xff]
        %v1859 = vld [vmem:[%s1857 + $0x8] sm:$0xff]
        %v1860 = vld [vmem:[%s1857 + $0x10] sm:$0xff]
        %v1861 = vld [vmem:[%s1857 + $0x18] sm:$0xff]
        %v1862 = vpack.c.bf16 %v1843, %v1843
        %1863 = vmatprep.subr.bf16.mxu0 %v1032
        %1864 = vmatpush1.bf16.msra.mxu0 %v1031
        %1865 = vmatprep.subr.bf16.mxu0 %v1028
        %1866 = vmatpush1.bf16.msra.mxu0 %v1027
        %1867 = vmatprep.subr.bf16.mxu0 %v1024
        %1868 = vmatpush1.bf16.msra.mxu0 %v1023
        %1869 = vmatprep.subr.bf16.mxu0 %v1020
        %1870 = vmatpush1.bf16.msra.mxu0 %v1019
        %1871 = vmatprep.subr.bf16.mxu0 %v1016
        %1872 = vmatpush1.bf16.msra.mxu0 %v1015
        %1873 = vmatprep.subr.bf16.mxu0 %v1012
        %1874 = vmatpush1.bf16.msra.mxu0 %v1011
        %1875 = vmatprep.subr.bf16.mxu0 %v1008
        %1876 = vmatpush1.bf16.msra.mxu0 %v1007
        %1877 = vmatprep.subr.bf16.mxu0 %v1004
        %1878 = vmatpush1.bf16.msra.mxu0 %v1003
        %1879 = vmatprep.subr.bf16.mxu0 0
        %1880 = vmatpush2.bf16.msra.mxu0 0
        %1881 = vmatprep.subr.bf16.mxu0 0
        %1882 = vmatpush2.bf16.msra.mxu0 0
        %1883 = vmatprep.subr.bf16.mxu0 0
        %1884 = vmatpush2.bf16.msra.mxu0 0
        %1885 = vmatprep.subr.bf16.mxu0 0
        %1886 = vmatpush2.bf16.msra.mxu0 0
        %1887 = vmatprep.subr.bf16.mxu0 0
        %1888 = vmatpush2.bf16.msra.mxu0 0
        %1889 = vmatprep.subr.bf16.mxu0 0
        %1890 = vmatpush2.bf16.msra.mxu0 0
        %1891 = vmatprep.subr.bf16.mxu0 0
        %1892 = vmatpush2.bf16.msra.mxu0 0
        %1893 = vmatprep.subr.bf16.mxu0 0
        %1894 = vmatpush2.bf16.msra.mxu0 0
        %1895 = vmatprep.mubr.bf16.mxu0 0
        %1896 = vmatmul.mubr.bf16.gmra.mxu0 %v1862
        %v1897 = vpop.f32.mrf.mxu0
        %v1898 = vadd.f32 0.0, %v1897
        %v1899 = vpop.f32.mrf.mxu0
        %v1900 = vadd.f32 0.0, %v1899
        %v1901 = vpop.f32.mrf.mxu0
        %v1902 = vpop.f32.mrf.mxu0
        %1903 = vdwg.mxu0
        %1904 = vmatprep.subr.bf16.mxu0 %v1034
        %1905 = vmatpush1.bf16.msra.mxu0 %v1033
        %1906 = vmatprep.subr.bf16.mxu0 %v1030
        %1907 = vmatpush1.bf16.msra.mxu0 %v1029
        %1908 = vmatprep.subr.bf16.mxu0 %v1026
        %1909 = vmatpush1.bf16.msra.mxu0 %v1025
        %1910 = vmatprep.subr.bf16.mxu0 %v1022
        %1911 = vmatpush1.bf16.msra.mxu0 %v1021
        %1912 = vmatprep.subr.bf16.mxu0 %v1018
        %1913 = vmatpush1.bf16.msra.mxu0 %v1017
        %1914 = vmatprep.subr.bf16.mxu0 %v1014
        %1915 = vmatpush1.bf16.msra.mxu0 %v1013
        %1916 = vmatprep.subr.bf16.mxu0 %v1010
        %1917 = vmatpush1.bf16.msra.mxu0 %v1009
        %1918 = vmatprep.subr.bf16.mxu0 %v1006
        %1919 = vmatpush1.bf16.msra.mxu0 %v1005
        %1920 = vmatprep.subr.bf16.mxu0 0
        %1921 = vmatpush2.bf16.msra.mxu0 0
        %1922 = vmatprep.subr.bf16.mxu0 0
        %1923 = vmatpush2.bf16.msra.mxu0 0
        %1924 = vmatprep.subr.bf16.mxu0 0
        %1925 = vmatpush2.bf16.msra.mxu0 0
        %1926 = vmatprep.subr.bf16.mxu0 0
        %1927 = vmatpush2.bf16.msra.mxu0 0
        %1928 = vmatprep.subr.bf16.mxu0 0
        %1929 = vmatpush2.bf16.msra.mxu0 0
        %1930 = vmatprep.subr.bf16.mxu0 0
        %1931 = vmatpush2.bf16.msra.mxu0 0
        %1932 = vmatprep.subr.bf16.mxu0 0
        %1933 = vmatpush2.bf16.msra.mxu0 0
        %1934 = vmatprep.subr.bf16.mxu0 0
        %1935 = vmatpush2.bf16.msra.mxu0 0
        %1936 = vmatprep.mubr.bf16.mxu0 0
        %1937 = vmatmul.mubr.bf16.gmra.mxu0 %v1862
        %v1938 = vpop.f32.mrf.mxu0
        %v1939 = vadd.f32 0.0, %v1938
        %v1940 = vpop.f32.mrf.mxu0
        %v1941 = vadd.f32 0.0, %v1940
        %v1942 = vpop.f32.mrf.mxu0
        %v1943 = vpop.f32.mrf.mxu0
        %1944 = vdwg.mxu0
        %v1945 = vadd.f32 %v1858, %v1898
        %v1946 = vadd.f32 %v1859, %v1900
        %v1947 = vadd.f32 %v1860, %v1939
        %v1948 = vadd.f32 %v1861, %v1941
        %v1949 = vxor.u32 %v1945, 2147483648
        %v1950 = vmul.f32 %v1949, 1.442695
        %v1951 = vpow.pop %v1950
        %v1952 = vadd.f32 %v1951, 1.0
        %v1953 = vrcp.pop %v1952
        %v1954 = vmul.f32 1.0, %v1953
        %v1955 = vxor.u32 %v1946, 2147483648
        %v1956 = vmul.f32 %v1955, 1.442695
        %v1957 = vpow.pop %v1956
        %v1958 = vadd.f32 %v1957, 1.0
        %v1959 = vrcp.pop %v1958
        %v1960 = vmul.f32 1.0, %v1959
        %v1961 = vtanh.pop %v1947
        %v1962 = vxor.u32 %v1948, 2147483648
        %v1963 = vmul.f32 %v1962, 1.442695
        %v1964 = vpow.pop %v1963
        %v1965 = vadd.f32 %v1964, 1.0
        %v1966 = vrcp.pop %v1965
        %v1967 = vmul.f32 1.0, %v1966
        %v1968 = vmul.f32 %v1960, %v1844
        %v1969 = vmul.f32 %v1954, %v1961
        %v1970 = vadd.f32 %v1968, %v1969
        %v1971 = vtanh.pop %v1970
        %v1972 = vmul.f32 %v1967, %v1971
        %s1973 = sadd.s32 %s426, %s1851
        %v1974 = vstv %s1973
        %vm1975 = vcmp.gt.s32.totalorder %v892, %v1974
        %v1976 = vsel %vm1975, %v1972, %v1843
        %v1977 = vsel %vm1975, %v1970, %v1844
        %v1978 = vsel %vm1975, %v1972, 0.0
        %v1979 = vpack.c.bf16 %v1978, %v1978
        %s1980 = smul.addr %s1851, 4
        %s1981 = scalar_lea.vmem %s392, %s1980 [#allocation11]
        %1982 = vst [vmem:[%s1981] sm:$0xf] %v1979
        %s1983 = smul.u32 %s33, 4294967289
        %s1984 = sadd.s32 %s1983, 7
        %s1985 = smul.u32 %s1984, 8
        %s1986 = sshra.s32 %s1985, 3
        %s1987 = sand.u32 %s1985, 7
        %s1988 = smul.u32 %s1986, 4
        %s1989 = smul.addr %s1988, 8
        %s1990 = scalar_lea.vmem [#allocation4], %s1989
        %v1991 = vld [vmem:[%s1990] sm:$0xff]
        %v1992 = vld [vmem:[%s1990 + $0x8] sm:$0xff]
        %v1993 = vld [vmem:[%s1990 + $0x10] sm:$0xff]
        %v1994 = vld [vmem:[%s1990 + $0x18] sm:$0xff]
        %v1995 = vpack.c.bf16 %v1976, %v1976
        %1996 = vmatprep.subr.bf16.mxu0 %v1032
        %1997 = vmatpush1.bf16.msra.mxu0 %v1031
        %1998 = vmatprep.subr.bf16.mxu0 %v1028
        %1999 = vmatpush1.bf16.msra.mxu0 %v1027
        %2000 = vmatprep.subr.bf16.mxu0 %v1024
        %2001 = vmatpush1.bf16.msra.mxu0 %v1023
        %2002 = vmatprep.subr.bf16.mxu0 %v1020
        %2003 = vmatpush1.bf16.msra.mxu0 %v1019
        %2004 = vmatprep.subr.bf16.mxu0 %v1016
        %2005 = vmatpush1.bf16.msra.mxu0 %v1015
        %2006 = vmatprep.subr.bf16.mxu0 %v1012
        %2007 = vmatpush1.bf16.msra.mxu0 %v1011
        %2008 = vmatprep.subr.bf16.mxu0 %v1008
        %2009 = vmatpush1.bf16.msra.mxu0 %v1007
        %2010 = vmatprep.subr.bf16.mxu0 %v1004
        %2011 = vmatpush1.bf16.msra.mxu0 %v1003
        %2012 = vmatprep.subr.bf16.mxu0 0
        %2013 = vmatpush2.bf16.msra.mxu0 0
        %2014 = vmatprep.subr.bf16.mxu0 0
        %2015 = vmatpush2.bf16.msra.mxu0 0
        %2016 = vmatprep.subr.bf16.mxu0 0
        %2017 = vmatpush2.bf16.msra.mxu0 0
        %2018 = vmatprep.subr.bf16.mxu0 0
        %2019 = vmatpush2.bf16.msra.mxu0 0
        %2020 = vmatprep.subr.bf16.mxu0 0
        %2021 = vmatpush2.bf16.msra.mxu0 0
        %2022 = vmatprep.subr.bf16.mxu0 0
        %2023 = vmatpush2.bf16.msra.mxu0 0
        %2024 = vmatprep.subr.bf16.mxu0 0
        %2025 = vmatpush2.bf16.msra.mxu0 0
        %2026 = vmatprep.subr.bf16.mxu0 0
        %2027 = vmatpush2.bf16.msra.mxu0 0
        %2028 = vmatprep.mubr.bf16.mxu0 0
        %2029 = vmatmul.mubr.bf16.gmra.mxu0 %v1995
        %v2030 = vpop.f32.mrf.mxu0
        %v2031 = vadd.f32 0.0, %v2030
        %v2032 = vpop.f32.mrf.mxu0
        %v2033 = vadd.f32 0.0, %v2032
        %v2034 = vpop.f32.mrf.mxu0
        %v2035 = vpop.f32.mrf.mxu0
        %2036 = vdwg.mxu0
        %2037 = vmatprep.subr.bf16.mxu0 %v1034
        %2038 = vmatpush1.bf16.msra.mxu0 %v1033
        %2039 = vmatprep.subr.bf16.mxu0 %v1030
        %2040 = vmatpush1.bf16.msra.mxu0 %v1029
        %2041 = vmatprep.subr.bf16.mxu0 %v1026
        %2042 = vmatpush1.bf16.msra.mxu0 %v1025
        %2043 = vmatprep.subr.bf16.mxu0 %v1022
        %2044 = vmatpush1.bf16.msra.mxu0 %v1021
        %2045 = vmatprep.subr.bf16.mxu0 %v1018
        %2046 = vmatpush1.bf16.msra.mxu0 %v1017
        %2047 = vmatprep.subr.bf16.mxu0 %v1014
        %2048 = vmatpush1.bf16.msra.mxu0 %v1013
        %2049 = vmatprep.subr.bf16.mxu0 %v1010
        %2050 = vmatpush1.bf16.msra.mxu0 %v1009
        %2051 = vmatprep.subr.bf16.mxu0 %v1006
        %2052 = vmatpush1.bf16.msra.mxu0 %v1005
        %2053 = vmatprep.subr.bf16.mxu0 0
        %2054 = vmatpush2.bf16.msra.mxu0 0
        %2055 = vmatprep.subr.bf16.mxu0 0
        %2056 = vmatpush2.bf16.msra.mxu0 0
        %2057 = vmatprep.subr.bf16.mxu0 0
        %2058 = vmatpush2.bf16.msra.mxu0 0
        %2059 = vmatprep.subr.bf16.mxu0 0
        %2060 = vmatpush2.bf16.msra.mxu0 0
        %2061 = vmatprep.subr.bf16.mxu0 0
        %2062 = vmatpush2.bf16.msra.mxu0 0
        %2063 = vmatprep.subr.bf16.mxu0 0
        %2064 = vmatpush2.bf16.msra.mxu0 0
        %2065 = vmatprep.subr.bf16.mxu0 0
        %2066 = vmatpush2.bf16.msra.mxu0 0
        %2067 = vmatprep.subr.bf16.mxu0 0
        %2068 = vmatpush2.bf16.msra.mxu0 0
        %2069 = vmatprep.mubr.bf16.mxu0 0
        %2070 = vmatmul.mubr.bf16.gmra.mxu0 %v1995
        %v2071 = vpop.f32.mrf.mxu0
        %v2072 = vadd.f32 0.0, %v2071
        %v2073 = vpop.f32.mrf.mxu0
        %v2074 = vadd.f32 0.0, %v2073
        %v2075 = vpop.f32.mrf.mxu0
        %v2076 = vpop.f32.mrf.mxu0
        %2077 = vdwg.mxu0
        %v2078 = vadd.f32 %v1991, %v2031
        %v2079 = vadd.f32 %v1992, %v2033
        %v2080 = vadd.f32 %v1993, %v2072
        %v2081 = vadd.f32 %v1994, %v2074
        %v2082 = vxor.u32 %v2078, 2147483648
        %v2083 = vmul.f32 %v2082, 1.442695
        %v2084 = vpow.pop %v2083
        %v2085 = vadd.f32 %v2084, 1.0
        %v2086 = vrcp.pop %v2085
        %v2087 = vmul.f32 1.0, %v2086
        %v2088 = vxor.u32 %v2079, 2147483648
        %v2089 = vmul.f32 %v2088, 1.442695
        %v2090 = vpow.pop %v2089
        %v2091 = vadd.f32 %v2090, 1.0
        %v2092 = vrcp.pop %v2091
        %v2093 = vmul.f32 1.0, %v2092
        %v2094 = vtanh.pop %v2080
        %v2095 = vxor.u32 %v2081, 2147483648
        %v2096 = vmul.f32 %v2095, 1.442695
        %v2097 = vpow.pop %v2096
        %v2098 = vadd.f32 %v2097, 1.0
        %v2099 = vrcp.pop %v2098
        %v2100 = vmul.f32 1.0, %v2099
        %v2101 = vmul.f32 %v2093, %v1977
        %v2102 = vmul.f32 %v2087, %v2094
        %v2103 = vadd.f32 %v2101, %v2102
        %v2104 = vtanh.pop %v2103
        %v2105 = vmul.f32 %v2100, %v2104
        %s2106 = sadd.s32 %s426, %s1984
        %v2107 = vstv %s2106
        %vm2108 = vcmp.gt.s32.totalorder %v892, %v2107
        %v2109 = vsel %vm2108, %v2105, %v1976
        %v2110 = vsel %vm2108, %v2103, %v1977
        %v2111 = vsel %vm2108, %v2105, 0.0
        %v2112 = vpack.c.bf16 %v2111, %v2111
        %s2113 = smul.addr %s1984, 4
        %s2114 = scalar_lea.vmem %s392, %s2113 [#allocation11]
        %2115 = vst [vmem:[%s2114] sm:$0xf] %v2112
        %2116 = vst [vmem:[#allocation2] sm:$0xff] %v2109
        %2117 = vst [vmem:[#allocation3] sm:$0xff] %v2110
        // Predicated region
        $region57: #{tpu_custom_call.1} parent=39 // pred_check
          %p2118 = pneg %p427
        $region58: #{tpu_custom_call.1} parent=39 // pred_check_branch
          %2120 = sbr.rel (%p2118) target = $region60
        $region59: #{tpu_custom_call.1} parent=39 // pred_region
          %2121 = vst [vmem:[%s399] sm:$0xff] %v2109
          %2122 = vst [vmem:[%s406] sm:$0xff] %v2110
        $region60: #{tpu_custom_call.1} parent=39 // pred_fallthru
          _
        %s2123 = sand.u32 %s192, 1
        %s2124 = scalar_lea.sflag [#allocation7], %s2123
        %s2125 = sand.u32 %s192, 1
        %s2126 = smul.addr %s2125, 32
        %s2127 = scalar_lea.vmem [#allocation11], %s2126
        %s2128 = sand.u32 %s29, 1
        %s2129 = scalar_lea.sflag [#allocation13], %s2128
        %s2130 = sand.u32 %s218, 1
        %s2131 = smul.addr %s2130, 8
        %s2132 = scalar_lea.vmem [#allocation12], %s2131
        %s2133 = sand.u32 %s29, 1
        %s2134 = scalar_lea.sflag [#allocation13], %s2133
        %s2135 = sand.u32 %s244, 1
        %s2136 = smul.addr %s2135, 8
        %s2137 = scalar_lea.vmem [#allocation14], %s2136
        // Predicated region
        $region61: #{tpu_custom_call.1} parent=39 // pred_check
          %p2138 = pneg %p202
        $region62: #{tpu_custom_call.1} parent=39 // pred_check_branch
          %2140 = sbr.rel (%p2138) target = $region64
        $region63: #{tpu_custom_call.1} parent=39 // pred_region
          %s2141 = smul.u32 %s34, 2
          %s2142 = ssub.s32 0, %s2141
          %s2143 = smul.u32 %s33, %s2142
          %s2144 = sadd.s32 %s34, %s2143
          %s2145 = smul.u32 8, %s2144
          %s2147 = ssub.s32 512, 512
          %2148 = vsyncadd %s2124, %s2147
          %s2149 = smul.addr %s2145, 2
          %s2150 = sadd.s32 %s33, %s2149
          %s2151 = smul.addr %s2150, 64
          %s2152 = scalar_lea.hbm %s5, %s2151
          %s2153 = sshll.u32 %s2127, 4
          %s2154 = int_to_ptr.vmem [resolvable:$true] %s2153
          %2159 = dma.vmem_to_hbm [thread:$0]  %s2154, 512, %s2152, %s2124, 64, 128, 4
        $region64: #{tpu_custom_call.1} parent=39 // pred_fallthru
          _
        // Predicated region
        $region65: #{tpu_custom_call.1} parent=39 // pred_check
          %p2160 = pneg %p228
        $region66: #{tpu_custom_call.1} parent=39 // pred_check_branch
          %2162 = sbr.rel (%p2160) target = $region68
        $region67: #{tpu_custom_call.1} parent=39 // pred_region
          %s2164 = ssub.s32 128, 128
          %2165 = vsyncadd %s2129, %s2164
          %s2166 = smul.addr %s33, 128
          %s2167 = scalar_lea.hbm %s6, %s2166
          %s2169 = sshll.u32 %s2132, 4
          %s2170 = int_to_ptr.vmem [resolvable:$true] %s2169
          %2172 = dma.vmem_to_hbm [thread:$0]  %s2170, 128, %s2167, %s2129
        $region68: #{tpu_custom_call.1} parent=39 // pred_fallthru
          _
        // Predicated region
        $region69: #{tpu_custom_call.1} parent=39 // pred_check
          %p2173 = pneg %p254
        $region70: #{tpu_custom_call.1} parent=39 // pred_check_branch
          %2175 = sbr.rel (%p2173) target = $region72
        $region71: #{tpu_custom_call.1} parent=39 // pred_region
          %s2177 = ssub.s32 128, 128
          %2178 = vsyncadd %s2134, %s2177
          %s2179 = smul.addr %s33, 128
          %s2180 = scalar_lea.hbm %s7, %s2179
          %s2182 = sshll.u32 %s2137, 4
          %s2183 = int_to_ptr.vmem [resolvable:$true] %s2182
          %2185 = dma.vmem_to_hbm [thread:$0]  %s2183, 128, %s2180, %s2134
        $region72: #{tpu_custom_call.1} parent=39 // pred_fallthru
          _
      $region40: #{tpu_custom_call.1} parent=5 // pred_fallthru
        _
      %p2186 = scmp.le.s32.totalorder 2, %s24
      // Predicated region
      $region73: #{tpu_custom_call.1} parent=5 // pred_check
        %p2187 = pneg %p2186
      $region74: #{tpu_custom_call.1} parent=5 // pred_check_branch
        %2189 = sbr.rel (%p2187) target = $region76
      $region75: #{tpu_custom_call.1} parent=5 // pred_region
        %s2190 = ssub.s32 %s24, 2
        // Predicated region
        $region77: #{tpu_custom_call.1} parent=75 // pred_check
          %p2191 = pneg %p208
        $region78: #{tpu_custom_call.1} parent=75 // pred_check_branch
          %2193 = sbr.rel (%p2191) target = $region80
        $region79: #{tpu_custom_call.1} parent=75 // pred_region
          %s2194 = sand.u32 %s193, 1
          %s2195 = scalar_lea.sflag [#allocation7], %s2194
          %s2196 = sand.u32 %s193, 1
          %s2197 = smul.addr %s2196, 32
          %s2198 = scalar_lea.vmem [#allocation11], %s2197
          %2199 = dma.done %s2195, 512
        $region80: #{tpu_custom_call.1} parent=75 // pred_fallthru
          _
        // Predicated region
        $region81: #{tpu_custom_call.1} parent=75 // pred_check
          %p2200 = pneg %p234
        $region82: #{tpu_custom_call.1} parent=75 // pred_check_branch
          %2202 = sbr.rel (%p2200) target = $region84
        $region83: #{tpu_custom_call.1} parent=75 // pred_region
          %s2203 = sand.u32 %s30, 1
          %s2204 = scalar_lea.sflag [#allocation13], %s2203
          %s2205 = sand.u32 %s219, 1
          %s2206 = smul.addr %s2205, 8
          %s2207 = scalar_lea.vmem [#allocation12], %s2206
          %2208 = dma.done %s2204, 128
        $region84: #{tpu_custom_call.1} parent=75 // pred_fallthru
          _
        // Predicated region
        $region85: #{tpu_custom_call.1} parent=75 // pred_check
          %p2209 = pneg %p260
        $region86: #{tpu_custom_call.1} parent=75 // pred_check_branch
          %2211 = sbr.rel (%p2209) target = $region88
        $region87: #{tpu_custom_call.1} parent=75 // pred_region
          %s2212 = sand.u32 %s30, 1
          %s2213 = scalar_lea.sflag [#allocation13], %s2212
          %s2214 = sand.u32 %s245, 1
          %s2215 = smul.addr %s2214, 8
          %s2216 = scalar_lea.vmem [#allocation14], %s2215
          %2217 = dma.done %s2213, 128
        $region88: #{tpu_custom_call.1} parent=75 // pred_fallthru
          _
      $region76: #{tpu_custom_call.1} parent=5 // pred_fallthru
        _
    $region6: #{tpu_custom_call.1} parent=1 // loop_footer
      %s28 = sadd.s32 1, %s24
    $region7: #{tpu_custom_call.1} parent=1 // loop_footer_branch
      %23 = sbr.rel target = $region3
    $region8: #{tpu_custom_call.1} parent=1 // loop_exit
      _
    %2218 = vsyncpa [#allocation6], 1
    %s2219 = scalar_lea.sflag [#allocation6], 1
    %2220 = vsyncpa %s2219, 1
    %2221 = vsyncpa [#allocation9], 1
    %2222 = vsyncpa [#allocation7], 1
    %s2223 = scalar_lea.sflag [#allocation7], 1
    %2224 = vsyncpa %s2223, 1
    %2225 = vsyncpa [#allocation13], 1
    %s2226 = scalar_lea.sflag [#allocation13], 1
    %2227 = vsyncpa %s2226, 1

// kernel: tpu_custom_call.1
$region0: #{tpu_custom_call.1}
  #allocation0 [shape = 'u32[]', space=smem, size = 0x4, offset = 0x4, fixed_abs, tag = 'smem constant byte address 0x4 - core index']
  #allocation1 [shape = 'u32[144,128]{1,0:T(1,128)}', space=vmem, size = 0x12000, scoped, tag = 'internal scratch']
  #allocation2 [shape = 'f32[8,128]{1,0:T(8,128)}', space=vmem, size = 0x1000, scoped, tag = 'scratch operand']
  #allocation3 [shape = 'f32[8,128]{1,0:T(8,128)}', space=vmem, size = 0x1000, scoped, tag = 'scratch operand']
  #allocation4 [shape = 'f32[64,512]{1,0:T(8,128)}', space=vmem, size = 0x20000, scoped, tag = 'scratch operand']
  %s0 = inlined_call_operand.vmem [shape: s32[8,1], index: 0, kind: input, shape index: {}]
  %s1 = inlined_call_operand.hbm [shape: bf16[64,128], index: 1, kind: input, shape index: {}]
  %s2 = inlined_call_operand.hbm [shape: bf16[2,128,512], index: 2, kind: input, shape index: {}]
  %s3 = inlined_call_operand.hbm [shape: bf16[2,128,512], index: 3, kind: input, shape index: {}]
  %s4 = inlined_call_operand.vmem [shape: f32[2,1,512], index: 4, kind: input, shape index: {}]
  %s5 = inlined_call_operand.hbm [shape: bf16[8,8,256], index: 5, kind: output, shape index: {0}]
  %s6 = inlined_call_operand.hbm [shape: f32[2,8,128], index: 6, kind: output, shape index: {1}]
  %s7 = inlined_call_operand.hbm [shape: f32[2,8,128], index: 7, kind: output, shape index: {2}]
  %8 = xla_tuple %s5, %s6, %s7
  %s9 = sld [smem:[#allocation0]]
  $region89: #{tpu_custom_call.1} parent=0
    _
  %s11 = ssub.s32 1, %s9
  %s12 = scalar_select 0, %s11, %s9
  $region1: #{tpu_custom_call.1} parent=0
    #allocation5 [shape = 'u8[32768]{0}', space=vmem, size = 0x8000, scoped, tag = 'input window, operand 1']
    #allocation6 [shape = 's32[2]{0}', space=sflag, size = 0x8, scoped, tag = 'scoped memory for tpu_custom_call.1']
    #allocation7 [shape = 's32[2]{0}', space=sflag, size = 0x8, scoped, tag = 'scoped memory for tpu_custom_call.1']
    #allocation8 [shape = 'u8[262144]{0}', space=vmem, size = 0x40000, scoped, tag = 'input window, operand 2']
    #allocation9 [shape = 's32[2]{0}', space=sflag, size = 0x8, scoped, tag = 'scoped memory for tpu_custom_call.1']
    #allocation10 [shape = 'u8[262144]{0}', space=vmem, size = 0x40000, scoped, tag = 'input window, operand 3']
    #allocation11 [shape = 'u8[32768]{0}', space=vmem, size = 0x8000, scoped, tag = 'output window, operand 0']
    #allocation12 [shape = 'u8[8192]{0}', space=vmem, size = 0x2000, scoped, tag = 'output window, operand 1']
    #allocation13 [shape = 's32[2]{0}', space=sflag, size = 0x8, scoped, tag = 'scoped memory for tpu_custom_call.1']
    #allocation14 [shape = 'u8[8192]{0}', space=vmem, size = 0x2000, scoped, tag = 'output window, operand 2']
    %13 = vsyncpa [#allocation6], 0
    %s14 = scalar_lea.sflag [#allocation6], 1
    %15 = vsyncpa %s14, 0
    %16 = vsyncpa [#allocation9], 0
    %s17 = scalar_lea.sflag [#allocation9], 1
    %18 = vsyncpa %s17, 0
    %19 = vsyncpa [#allocation7], 0
    %s20 = scalar_lea.sflag [#allocation7], 1
    %21 = vsyncpa %s20, 0
    %22 = vsyncpa [#allocation13], 0
    %s23 = scalar_lea.sflag [#allocation13], 1
    %24 = vsyncpa %s23, 0
    loop: start=0, step=1, limit=4
    $region2: #{tpu_custom_call.1} parent=1 // loop_pre_header
      _
    $region3: #{tpu_custom_call.1} parent=1 // loop_header
      %s26 = sphi 0, %s30
      %p27 = scmp.ge.s32.totalorder %s26, 4
      %s33 = sphi 0, %s45
      %s34 = sphi 0, %s41
      %s35 = sphi 0, %s33
      %s36 = sphi 0, %s34
      %s37 = sphi 0, %s35
      %s38 = sphi 0, %s36
      %s46 = sphi 0, %s46
      %s48 = sphi 0, %s46
      %s49 = sphi 0, %s48
      %s63 = sphi 0, %s49
      %s77 = sphi 0, %s79
      %s80 = sphi 0, %s77
      %s81 = sphi 0, %s80
      %s97 = sphi 0, %s81
      %s103 = sphi 0, %s105
      %s106 = sphi 0, %s103
      %s107 = sphi 0, %s106
      %s123 = sphi 0, %s107
      %s129 = sphi 0, %s131
      %s132 = sphi 0, %s129
      %s133 = sphi 0, %s132
      %s149 = sphi 0, %s133
      %s155 = sphi 0, %s157
      %s158 = sphi 0, %s155
      %s159 = sphi 0, %s158
      %s175 = sphi 0, %s159
      %s191 = sphi 0, %s193
      %s194 = sphi 0, %s191
      %s195 = sphi 0, %s194
      %s211 = sphi 0, %s195
      %s217 = sphi 0, %s219
      %s220 = sphi 0, %s217
      %s221 = sphi 0, %s220
      %s237 = sphi 0, %s221
      %s243 = sphi 0, %s245
      %s246 = sphi 0, %s243
      %s247 = sphi 0, %s246
      %s263 = sphi 0, %s247
    $region4: #{tpu_custom_call.1} parent=1 // loop_header_branch
      %29 = sbr.rel (%p27) target = $region8
    $region5: #{tpu_custom_call.1} parent=1 // loop_body
      %s31 = ssub.s32 %s26, 1
      %s32 = ssub.s32 %s26, 2
      %s39 = sadd.s32 1, %s34
      %p40 = scmp.ge.s32.totalorder %s39, 1
      %s41 = scalar_select %p40, 0, %s39
      %s42 = sadd.s32 1, %s33
      %s43 = scalar_select %p40, %s42, %s33
      %p44 = scmp.ge.s32.totalorder %s43, 2
      %s45 = scalar_select %p44, 0, %s43
      %s47 = sadd.s32 %s46, 1
      %p50 = scmp.eq.s32.totalorder %s26, 1
      %p51 = scmp.ne.s32.totalorder %s46, %s48
      %p52 = scmp.eq.s32.totalorder %s26, 0
      %p53 = por %p51, %p52
      %p54 = scmp.ne.s32.totalorder %s46, %s48
      %p55 = scmp.eq.s32.totalorder %s31, 1
      %p56 = por %p54, %p55
      %p57 = scmp.ne.s32.totalorder %s48, %s49
      %p58 = scmp.eq.s32.totalorder %s31, 0
      %p59 = por %p57, %p58
      %p60 = scmp.ne.s32.totalorder %s48, %s49
      %p61 = scmp.eq.s32.totalorder %s32, 1
      %p62 = por %p60, %p61
      %p64 = scmp.ne.s32.totalorder %s49, %s63
      %p65 = scmp.eq.s32.totalorder %s32, 0
      %p66 = por %p64, %p65
      %s67 = smul.u32 %s34, 2
      %s68 = ssub.s32 0, %s67
      %s69 = smul.u32 %s33, %s68
      %s70 = sadd.s32 %s34, %s69
      %s71 = smul.u32 %s41, 2
      %s72 = ssub.s32 0, %s71
      %s73 = smul.u32 %s45, %s72
      %s74 = sadd.s32 %s41, %s73
      %s75 = ssub.s32 %s70, %s74
      %p76 = scmp.eq.s32.totalorder %s75, 0
      %s78 = sadd.s32 %s77, 1
      %s79 = scalar_select %p76, %s77, %s78
      %p82 = pneg %p76
      %p83 = scmp.eq.s32.totalorder %s26, 1
      %p84 = por %p82, %p83
      %p85 = scmp.ne.s32.totalorder %s77, %s80
      %p86 = scmp.eq.s32.totalorder %s26, 0
      %p87 = por %p85, %p86
      %p88 = scmp.ne.s32.totalorder %s77, %s80
      %p89 = scmp.eq.s32.totalorder %s31, 1
      %p90 = por %p88, %p89
      %p91 = scmp.ne.s32.totalorder %s80, %s81
      %p92 = scmp.eq.s32.totalorder %s31, 0
      %p93 = por %p91, %p92
      %p94 = scmp.ne.s32.totalorder %s80, %s81
      %p95 = scmp.eq.s32.totalorder %s32, 1
      %p96 = por %p94, %p95
      %p98 = scmp.ne.s32.totalorder %s81, %s97
      %p99 = scmp.eq.s32.totalorder %s32, 0
      %p100 = por %p98, %p99
      %s101 = ssub.s32 %s33, %s45
      %p102 = scmp.eq.s32.totalorder %s101, 0
      %s104 = sadd.s32 %s103, 1
      %s105 = scalar_select %p102, %s103, %s104
      %p108 = pneg %p102
      %p109 = scmp.eq.s32.totalorder %s26, 1
      %p110 = por %p108, %p109
      %p111 = scmp.ne.s32.totalorder %s103, %s106
      %p112 = scmp.eq.s32.totalorder %s26, 0
      %p113 = por %p111, %p112
      %p114 = scmp.ne.s32.totalorder %s103, %s106
      %p115 = scmp.eq.s32.totalorder %s31, 1
      %p116 = por %p114, %p115
      %p117 = scmp.ne.s32.totalorder %s106, %s107
      %p118 = scmp.eq.s32.totalorder %s31, 0
      %p119 = por %p117, %p118
      %p120 = scmp.ne.s32.totalorder %s106, %s107
      %p121 = scmp.eq.s32.totalorder %s32, 1
      %p122 = por %p120, %p121
      %p124 = scmp.ne.s32.totalorder %s107, %s123
      %p125 = scmp.eq.s32.totalorder %s32, 0
      %p126 = por %p124, %p125
      %s127 = ssub.s32 %s33, %s45
      %p128 = scmp.eq.s32.totalorder %s127, 0
      %s130 = sadd.s32 %s129, 1
      %s131 = scalar_select %p128, %s129, %s130
      %p134 = pneg %p128
      %p135 = scmp.eq.s32.totalorder %s26, 1
      %p136 = por %p134, %p135
      %p137 = scmp.ne.s32.totalorder %s129, %s132
      %p138 = scmp.eq.s32.totalorder %s26, 0
      %p139 = por %p137, %p138
      %p140 = scmp.ne.s32.totalorder %s129, %s132
      %p141 = scmp.eq.s32.totalorder %s31, 1
      %p142 = por %p140, %p141
      %p143 = scmp.ne.s32.totalorder %s132, %s133
      %p144 = scmp.eq.s32.totalorder %s31, 0
      %p145 = por %p143, %p144
      %p146 = scmp.ne.s32.totalorder %s132, %s133
      %p147 = scmp.eq.s32.totalorder %s32, 1
      %p148 = por %p146, %p147
      %p150 = scmp.ne.s32.totalorder %s133, %s149
      %p151 = scmp.eq.s32.totalorder %s32, 0
      %p152 = por %p150, %p151
      %s153 = ssub.s32 %s33, %s45
      %p154 = scmp.eq.s32.totalorder %s153, 0
      %s156 = sadd.s32 %s155, 1
      %s157 = scalar_select %p154, %s155, %s156
      %p160 = pneg %p154
      %p161 = scmp.eq.s32.totalorder %s26, 1
      %p162 = por %p160, %p161
      %p163 = scmp.ne.s32.totalorder %s155, %s158
      %p164 = scmp.eq.s32.totalorder %s26, 0
      %p165 = por %p163, %p164
      %p166 = scmp.ne.s32.totalorder %s155, %s158
      %p167 = scmp.eq.s32.totalorder %s31, 1
      %p168 = por %p166, %p167
      %p169 = scmp.ne.s32.totalorder %s158, %s159
      %p170 = scmp.eq.s32.totalorder %s31, 0
      %p171 = por %p169, %p170
      %p172 = scmp.ne.s32.totalorder %s158, %s159
      %p173 = scmp.eq.s32.totalorder %s32, 1
      %p174 = por %p172, %p173
      %p176 = scmp.ne.s32.totalorder %s159, %s175
      %p177 = scmp.eq.s32.totalorder %s32, 0
      %p178 = por %p176, %p177
      %s179 = smul.u32 %s34, 2
      %s180 = ssub.s32 0, %s179
      %s181 = smul.u32 %s33, %s180
      %s182 = sadd.s32 %s34, %s181
      %s183 = smul.u32 %s41, 2
      %s184 = ssub.s32 0, %s183
      %s185 = smul.u32 %s45, %s184
      %s186 = sadd.s32 %s41, %s185
      %s187 = ssub.s32 %s182, %s186
      %s188 = ssub.s32 %s33, %s45
      %s189 = sor.u32 %s187, %s188
      %p190 = scmp.eq.s32.totalorder %s189, 0
      %s192 = sadd.s32 %s191, 1
      %s193 = scalar_select %p190, %s191, %s192
      %p196 = pneg %p190
      %p197 = scmp.eq.s32.totalorder %s26, 1
      %p198 = por %p196, %p197
      %p199 = scmp.ne.s32.totalorder %s191, %s194
      %p200 = scmp.eq.s32.totalorder %s26, 0
      %p201 = por %p199, %p200
      %p202 = scmp.ne.s32.totalorder %s191, %s194
      %p203 = scmp.eq.s32.totalorder %s31, 1
      %p204 = por %p202, %p203
      %p205 = scmp.ne.s32.totalorder %s194, %s195
      %p206 = scmp.eq.s32.totalorder %s31, 0
      %p207 = por %p205, %p206
      %p208 = scmp.ne.s32.totalorder %s194, %s195
      %p209 = scmp.eq.s32.totalorder %s32, 1
      %p210 = por %p208, %p209
      %p212 = scmp.ne.s32.totalorder %s195, %s211
      %p213 = scmp.eq.s32.totalorder %s32, 0
      %p214 = por %p212, %p213
      %s215 = ssub.s32 %s33, %s45
      %p216 = scmp.eq.s32.totalorder %s215, 0
      %s218 = sadd.s32 %s217, 1
      %s219 = scalar_select %p216, %s217, %s218
      %p222 = pneg %p216
      %p223 = scmp.eq.s32.totalorder %s26, 1
      %p224 = por %p222, %p223
      %p225 = scmp.ne.s32.totalorder %s217, %s220
      %p226 = scmp.eq.s32.totalorder %s26, 0
      %p227 = por %p225, %p226
      %p228 = scmp.ne.s32.totalorder %s217, %s220
      %p229 = scmp.eq.s32.totalorder %s31, 1
      %p230 = por %p228, %p229
      %p231 = scmp.ne.s32.totalorder %s220, %s221
      %p232 = scmp.eq.s32.totalorder %s31, 0
      %p233 = por %p231, %p232
      %p234 = scmp.ne.s32.totalorder %s220, %s221
      %p235 = scmp.eq.s32.totalorder %s32, 1
      %p236 = por %p234, %p235
      %p238 = scmp.ne.s32.totalorder %s221, %s237
      %p239 = scmp.eq.s32.totalorder %s32, 0
      %p240 = por %p238, %p239
      %s241 = ssub.s32 %s33, %s45
      %p242 = scmp.eq.s32.totalorder %s241, 0
      %s244 = sadd.s32 %s243, 1
      %s245 = scalar_select %p242, %s243, %s244
      %p248 = pneg %p242
      %p249 = scmp.eq.s32.totalorder %s26, 1
      %p250 = por %p248, %p249
      %p251 = scmp.ne.s32.totalorder %s243, %s246
      %p252 = scmp.eq.s32.totalorder %s26, 0
      %p253 = por %p251, %p252
      %p254 = scmp.ne.s32.totalorder %s243, %s246
      %p255 = scmp.eq.s32.totalorder %s31, 1
      %p256 = por %p254, %p255
      %p257 = scmp.ne.s32.totalorder %s246, %s247
      %p258 = scmp.eq.s32.totalorder %s31, 0
      %p259 = por %p257, %p258
      %p260 = scmp.ne.s32.totalorder %s246, %s247
      %p261 = scmp.eq.s32.totalorder %s32, 1
      %p262 = por %p260, %p261
      %p264 = scmp.ne.s32.totalorder %s247, %s263
      %p265 = scmp.eq.s32.totalorder %s32, 0
      %p266 = por %p264, %p265
      %p267 = scmp.le.s32.totalorder 1, %s26
      %p268 = scmp.lt.s32.totalorder %s26, 3
      %p269 = pnand %p267, %p268
      %p270 = pneg %p269
      // Predicated region
      $region9: #{tpu_custom_call.1} parent=5 // pred_check
        _
      $region10: #{tpu_custom_call.1} parent=5 // pred_check_branch
        %272 = sbr.rel (%p269) target = $region12
      $region11: #{tpu_custom_call.1} parent=5 // pred_region
        %s273 = ssub.s32 %s26, 1
        // Predicated region
        $region13: #{tpu_custom_call.1} parent=11 // pred_check
          %p274 = pneg %p59
        $region14: #{tpu_custom_call.1} parent=11 // pred_check_branch
          %276 = sbr.rel (%p274) target = $region16
        $region15: #{tpu_custom_call.1} parent=11 // pred_region
          _
        $region16: #{tpu_custom_call.1} parent=11 // pred_fallthru
          _
      $region12: #{tpu_custom_call.1} parent=5 // pred_fallthru
        _
      %p277 = scmp.lt.s32.totalorder %s26, 2
      // Predicated region
      $region17: #{tpu_custom_call.1} parent=5 // pred_check
        %p278 = pneg %p277
      $region18: #{tpu_custom_call.1} parent=5 // pred_check_branch
        %280 = sbr.rel (%p278) target = $region20
      $region19: #{tpu_custom_call.1} parent=5 // pred_region
        // Predicated region
        $region21: #{tpu_custom_call.1} parent=19 // pred_check
          %p281 = pneg %p87
        $region22: #{tpu_custom_call.1} parent=19 // pred_check_branch
          %283 = sbr.rel (%p281) target = $region24
        $region23: #{tpu_custom_call.1} parent=19 // pred_region
          %s284 = sand.u32 %s77, 1
          %s285 = scalar_lea.sflag [#allocation6], %s284
          %s286 = sand.u32 %s77, 1
          %s287 = smul.addr %s286, 32
          %s288 = scalar_lea.vmem [#allocation5], %s287
          %s289 = smul.u32 %s34, 2
          %s290 = ssub.s32 0, %s289
          %s291 = smul.u32 %s33, %s290
          %s292 = sadd.s32 %s34, %s291
          %s293 = smul.u32 8, %s292
          %s295 = ssub.s32 512, 512
          %296 = vsyncadd %s285, %s295
          %s297 = smul.addr %s293, 64
          %s298 = scalar_lea.hbm %s1, %s297
          %s299 = sshll.u32 %s288, 4
          %s300 = int_to_ptr.vmem [resolvable:$true] %s299
          %305 = dma.hbm_to_vmem [thread:$0]  %s298, 512, %s300, %s285, 64, 64, 4
        $region24: #{tpu_custom_call.1} parent=19 // pred_fallthru
          _
        // Predicated region
        $region25: #{tpu_custom_call.1} parent=19 // pred_check
          %p306 = pneg %p113
        $region26: #{tpu_custom_call.1} parent=19 // pred_check_branch
          %308 = sbr.rel (%p306) target = $region28
        $region27: #{tpu_custom_call.1} parent=19 // pred_region
          %s309 = sand.u32 %s26, 1
          %s310 = scalar_lea.sflag [#allocation9], %s309
          %s311 = sand.u32 %s103, 1
          %s312 = smul.addr %s311, 256
          %s313 = scalar_lea.vmem [#allocation8], %s312
          %s315 = ssub.s32 4096, 4096
          %316 = vsyncadd %s310, %s315
          %s317 = smul.addr %s33, 64
          %s318 = smul.addr %s317, 64
          %s319 = scalar_lea.hbm %s2, %s318
          %s320 = sshll.u32 %s313, 4
          %s321 = int_to_ptr.vmem [resolvable:$true] %s320
          %326 = dma.hbm_to_vmem [thread:$0]  %s319, 4096, %s321, %s310, 256, 256, 16
        $region28: #{tpu_custom_call.1} parent=19 // pred_fallthru
          _
        // Predicated region
        $region29: #{tpu_custom_call.1} parent=19 // pred_check
          %p327 = pneg %p139
        $region30: #{tpu_custom_call.1} parent=19 // pred_check_branch
          %329 = sbr.rel (%p327) target = $region32
        $region31: #{tpu_custom_call.1} parent=19 // pred_region
          %s330 = sand.u32 %s26, 1
          %s331 = scalar_lea.sflag [#allocation9], %s330
          %s332 = sand.u32 %s129, 1
          %s333 = smul.addr %s332, 256
          %s334 = scalar_lea.vmem [#allocation10], %s333
          %s336 = ssub.s32 4096, 4096
          %337 = vsyncadd %s331, %s336
          %s338 = smul.addr %s33, 64
          %s339 = smul.addr %s338, 64
          %s340 = scalar_lea.hbm %s3, %s339
          %s341 = sshll.u32 %s334, 4
          %s342 = int_to_ptr.vmem [resolvable:$true] %s341
          %347 = dma.hbm_to_vmem [thread:$0]  %s340, 4096, %s342, %s331, 256, 256, 16
        $region32: #{tpu_custom_call.1} parent=19 // pred_fallthru
          _
        // Predicated region
        $region33: #{tpu_custom_call.1} parent=19 // pred_check
          %p348 = pneg %p165
        $region34: #{tpu_custom_call.1} parent=19 // pred_check_branch
          %350 = sbr.rel (%p348) target = $region36
        $region35: #{tpu_custom_call.1} parent=19 // pred_region
          %p351 = scmp.lt.s32.totalorder %s33, 1
          %s352 = scalar_select %p351, %s33, 1
          %s353 = smul.addr %s352, 4
          %s354 = scalar_lea.vmem %s4, %s353
        $region36: #{tpu_custom_call.1} parent=19 // pred_fallthru
          _
      $region20: #{tpu_custom_call.1} parent=5 // pred_fallthru
        _
      %p355 = scmp.le.s32.totalorder 1, %s26
      %p356 = scmp.lt.s32.totalorder %s26, 3
      %p357 = pnand %p355, %p356
      %p358 = pneg %p357
      // Predicated region
      $region37: #{tpu_custom_call.1} parent=5 // pred_check
        _
      $region38: #{tpu_custom_call.1} parent=5 // pred_check_branch
        %360 = sbr.rel (%p357) target = $region40
      $region39: #{tpu_custom_call.1} parent=5 // pred_region
        %s361 = ssub.s32 %s26, 1
        %s362 = sand.u32 %s80, 1
        %s363 = scalar_lea.sflag [#allocation6], %s362
        %s364 = sand.u32 %s80, 1
        %s365 = smul.addr %s364, 32
        %s366 = scalar_lea.vmem [#allocation5], %s365
        // Predicated region
        $region41: #{tpu_custom_call.1} parent=39 // pred_check
          %p367 = pneg %p93
        $region42: #{tpu_custom_call.1} parent=39 // pred_check_branch
          %369 = sbr.rel (%p367) target = $region44
        $region43: #{tpu_custom_call.1} parent=39 // pred_region
          %370 = dma.done %s363, 512
        $region44: #{tpu_custom_call.1} parent=39 // pred_fallthru
          _
        %s371 = sand.u32 %s31, 1
        %s372 = scalar_lea.sflag [#allocation9], %s371
        %s373 = sand.u32 %s106, 1
        %s374 = smul.addr %s373, 256
        %s375 = scalar_lea.vmem [#allocation8], %s374
        // Predicated region
        $region45: #{tpu_custom_call.1} parent=39 // pred_check
          %p376 = pneg %p119
        $region46: #{tpu_custom_call.1} parent=39 // pred_check_branch
          %378 = sbr.rel (%p376) target = $region48
        $region47: #{tpu_custom_call.1} parent=39 // pred_region
          %379 = dma.done %s372, 4096
        $region48: #{tpu_custom_call.1} parent=39 // pred_fallthru
          _
        %s380 = sand.u32 %s31, 1
        %s381 = scalar_lea.sflag [#allocation9], %s380
        %s382 = sand.u32 %s132, 1
        %s383 = smul.addr %s382, 256
        %s384 = scalar_lea.vmem [#allocation10], %s383
        // Predicated region
        $region49: #{tpu_custom_call.1} parent=39 // pred_check
          %p385 = pneg %p145
        $region50: #{tpu_custom_call.1} parent=39 // pred_check_branch
          %387 = sbr.rel (%p385) target = $region52
        $region51: #{tpu_custom_call.1} parent=39 // pred_region
          %388 = dma.done %s381, 4096
        $region52: #{tpu_custom_call.1} parent=39 // pred_fallthru
          _
        %p389 = pneg %p59
        %p390 = pneg %p56
        %s391 = sand.u32 %s80, 1
        %s392 = scalar_lea.sflag [#allocation6], %s391
        %s393 = sand.u32 %s80, 1
        %s394 = smul.addr %s393, 32
        %s395 = scalar_lea.vmem [#allocation5], %s394
        %p396 = pneg %p93
        %p397 = pneg %p90
        %s398 = sand.u32 %s31, 1
        %s399 = scalar_lea.sflag [#allocation9], %s398
        %s400 = sand.u32 %s106, 1
        %s401 = smul.addr %s400, 256
        %s402 = scalar_lea.vmem [#allocation8], %s401
        %p403 = pneg %p119
        %p404 = pneg %p116
        %s405 = sand.u32 %s31, 1
        %s406 = scalar_lea.sflag [#allocation9], %s405
        %s407 = sand.u32 %s132, 1
        %s408 = smul.addr %s407, 256
        %s409 = scalar_lea.vmem [#allocation10], %s408
        %p410 = pneg %p145
        %p411 = pneg %p142
        %p412 = scmp.lt.s32.totalorder %s35, 1
        %s413 = scalar_select %p412, %s35, 1
        %s414 = smul.addr %s413, 4
        %s415 = scalar_lea.vmem %s4, %s414
        %p416 = pneg %p171
        %p417 = pneg %p168
        %p418 = pneg %p207
        %p419 = pneg %p204
        %s420 = sand.u32 %s194, 1
        %s421 = scalar_lea.sflag [#allocation7], %s420
        %s422 = sand.u32 %s194, 1
        %s423 = smul.addr %s422, 32
        %s424 = scalar_lea.vmem [#allocation11], %s423
        %p425 = pneg %p233
        %p426 = pneg %p230
        %s427 = sand.u32 %s31, 1
        %s428 = scalar_lea.sflag [#allocation13], %s427
        %s429 = sand.u32 %s220, 1
        %s430 = smul.addr %s429, 8
        %s431 = scalar_lea.vmem [#allocation12], %s430
        %p432 = pneg %p259
        %p433 = pneg %p256
        %s434 = sand.u32 %s31, 1
        %s435 = scalar_lea.sflag [#allocation13], %s434
        %s436 = sand.u32 %s246, 1
        %s437 = smul.addr %s436, 8
        %s438 = scalar_lea.vmem [#allocation14], %s437
        %s439 = smul.u32 %s36, 2
        %s440 = ssub.s32 0, %s439
        %s441 = smul.u32 %s35, %s440
        %s442 = sadd.s32 %s36, %s441
        %s443 = smul.u32 8, %s442
        %p444 = scmp.lt.s32.totalorder %s35, 1
        %s445 = scalar_select %p444, %s35, 1
        %s446 = smul.addr %s445, 4
        %s447 = scalar_lea.vmem %s4, %s446
        %s448 = smul.u32 %s36, 2
        %s449 = ssub.s32 0, %s448
        %s450 = smul.u32 %s35, %s449
        %s451 = sadd.s32 %s36, %s450
        %s452 = smul.u32 8, %s451
        %s454 = smul.u32 %s36, 2
        %s455 = ssub.s32 0, %s454
        %s456 = smul.u32 %s35, %s455
        %s457 = sadd.s32 %s36, %s456
        %s458 = smul.u32 %s457, 8
        %p459 = scmp.eq.s32.totalorder %s36, 0
        // Predicated region
        $region53: #{tpu_custom_call.1} parent=39 // pred_check
          %p460 = pneg %p459
        $region54: #{tpu_custom_call.1} parent=39 // pred_check_branch
          %462 = sbr.rel (%p460) target = $region56
        $region55: #{tpu_custom_call.1} parent=39 // pred_region
          %463 = vst [vmem:[#allocation2] sm:$0xff] 0.0
          %464 = vst [vmem:[#allocation3] sm:$0xff] 0.0
        $region56: #{tpu_custom_call.1} parent=39 // pred_fallthru
          _
        %v465 = vld [vmem:[%s366] sm:$0xf]
        %v466 = vld [vmem:[%s366 + $0x4] sm:$0xf]
        %v467 = vld [vmem:[%s366 + $0x8] sm:$0xf]
        %v468 = vld [vmem:[%s366 + $0xc] sm:$0xf]
        %v469 = vld [vmem:[%s366 + $0x10] sm:$0xf]
        %v470 = vld [vmem:[%s366 + $0x14] sm:$0xf]
        %v471 = vld [vmem:[%s366 + $0x18] sm:$0xf]
        %v472 = vld [vmem:[%s366 + $0x1c] sm:$0xf]
        %v473 = vld [vmem:[%s375] sm:$0xff]
        %v474 = vld [vmem:[%s375 + $0x8] sm:$0xff]
        %v475 = vld [vmem:[%s375 + $0x10] sm:$0xff]
        %v476 = vld [vmem:[%s375 + $0x18] sm:$0xff]
        %v477 = vld [vmem:[%s375 + $0x20] sm:$0xff]
        %v478 = vld [vmem:[%s375 + $0x28] sm:$0xff]
        %v479 = vld [vmem:[%s375 + $0x30] sm:$0xff]
        %v480 = vld [vmem:[%s375 + $0x38] sm:$0xff]
        %v481 = vld [vmem:[%s375 + $0x40] sm:$0xff]
        %v482 = vld [vmem:[%s375 + $0x48] sm:$0xff]
        %v483 = vld [vmem:[%s375 + $0x50] sm:$0xff]
        %v484 = vld [vmem:[%s375 + $0x58] sm:$0xff]
        %v485 = vld [vmem:[%s375 + $0x60] sm:$0xff]
        %v486 = vld [vmem:[%s375 + $0x68] sm:$0xff]
        %v487 = vld [vmem:[%s375 + $0x70] sm:$0xff]
        %v488 = vld [vmem:[%s375 + $0x78] sm:$0xff]
        %v489 = vld [vmem:[%s375 + $0x80] sm:$0xff]
        %v490 = vld [vmem:[%s375 + $0x88] sm:$0xff]
        %v491 = vld [vmem:[%s375 + $0x90] sm:$0xff]
        %v492 = vld [vmem:[%s375 + $0x98] sm:$0xff]
        %v493 = vld [vmem:[%s375 + $0xa0] sm:$0xff]
        %v494 = vld [vmem:[%s375 + $0xa8] sm:$0xff]
        %v495 = vld [vmem:[%s375 + $0xb0] sm:$0xff]
        %v496 = vld [vmem:[%s375 + $0xb8] sm:$0xff]
        %v497 = vld [vmem:[%s375 + $0xc0] sm:$0xff]
        %v498 = vld [vmem:[%s375 + $0xc8] sm:$0xff]
        %v499 = vld [vmem:[%s375 + $0xd0] sm:$0xff]
        %v500 = vld [vmem:[%s375 + $0xd8] sm:$0xff]
        %v501 = vld [vmem:[%s375 + $0xe0] sm:$0xff]
        %v502 = vld [vmem:[%s375 + $0xe8] sm:$0xff]
        %v503 = vld [vmem:[%s375 + $0xf0] sm:$0xff]
        %v504 = vld [vmem:[%s375 + $0xf8] sm:$0xff]
        %v505 = vld [vmem:[%s447] sm:$0xf]
        %v507 = vlaneseq
        %v508 = vshrl.u32 %v507, 7
        %v509 = vsub.s32 0, %v508
        %v510 = vrot.slane %v505, %v509
        %v511 = vlaneseq
        %v512 = vshrl.u32 %v511, 7
        %v513 = vsub.s32 1, %v512
        %v514 = vrot.slane %v505, %v513
        %v515 = vlaneseq
        %v516 = vshrl.u32 %v515, 7
        %v517 = vsub.s32 2, %v516
        %v518 = vrot.slane %v505, %v517
        %v519 = vlaneseq
        %v520 = vshrl.u32 %v519, 7
        %v521 = vsub.s32 3, %v520
        %v522 = vrot.slane %v505, %v521
        %v535 = vunpack.c.l.b16 %v465
        %v536 = vunpack.c.l.b16 %v466
        %v537 = vunpack.c.l.b16 %v467
        %v538 = vunpack.c.l.b16 %v468
        %v539 = vunpack.c.l.b16 %v469
        %v540 = vunpack.c.l.b16 %v470
        %v541 = vunpack.c.l.b16 %v471
        %v542 = vunpack.c.l.b16 %v472
        %v543 = vpack.c.b16 %v536, %v535
        %v544 = vpack.c.b16 %v538, %v537
        %v545 = vpack.c.b16 %v540, %v539
        %v546 = vpack.c.b16 %v542, %v541
        %v583 = vunpack.c.l.b16 %v473
        %v584 = vunpack.c.h.b16 %v473
        %v585 = vunpack.c.l.b16 %v474
        %v586 = vunpack.c.h.b16 %v474
        %v587 = vunpack.c.l.b16 %v475
        %v588 = vunpack.c.h.b16 %v475
        %v589 = vunpack.c.l.b16 %v476
        %v590 = vunpack.c.h.b16 %v476
        %v591 = vunpack.c.l.b16 %v477
        %v592 = vunpack.c.h.b16 %v477
        %v593 = vunpack.c.l.b16 %v478
        %v594 = vunpack.c.h.b16 %v478
        %v595 = vunpack.c.l.b16 %v479
        %v596 = vunpack.c.h.b16 %v479
        %v597 = vunpack.c.l.b16 %v480
        %v598 = vunpack.c.h.b16 %v480
        %v599 = vunpack.c.l.b16 %v481
        %v600 = vunpack.c.h.b16 %v481
        %v601 = vunpack.c.l.b16 %v482
        %v602 = vunpack.c.h.b16 %v482
        %v603 = vunpack.c.l.b16 %v483
        %v604 = vunpack.c.h.b16 %v483
        %v605 = vunpack.c.l.b16 %v484
        %v606 = vunpack.c.h.b16 %v484
        %v607 = vunpack.c.l.b16 %v485
        %v608 = vunpack.c.h.b16 %v485
        %v609 = vunpack.c.l.b16 %v486
        %v610 = vunpack.c.h.b16 %v486
        %v611 = vunpack.c.l.b16 %v487
        %v612 = vunpack.c.h.b16 %v487
        %v613 = vunpack.c.l.b16 %v488
        %v614 = vunpack.c.h.b16 %v488
        %v615 = vunpack.c.l.b16 %v489
        %v616 = vunpack.c.h.b16 %v489
        %v617 = vunpack.c.l.b16 %v490
        %v618 = vunpack.c.h.b16 %v490
        %v619 = vunpack.c.l.b16 %v491
        %v620 = vunpack.c.h.b16 %v491
        %v621 = vunpack.c.l.b16 %v492
        %v622 = vunpack.c.h.b16 %v492
        %v623 = vunpack.c.l.b16 %v493
        %v624 = vunpack.c.h.b16 %v493
        %v625 = vunpack.c.l.b16 %v494
        %v626 = vunpack.c.h.b16 %v494
        %v627 = vunpack.c.l.b16 %v495
        %v628 = vunpack.c.h.b16 %v495
        %v629 = vunpack.c.l.b16 %v496
        %v630 = vunpack.c.h.b16 %v496
        %v631 = vunpack.c.l.b16 %v497
        %v632 = vunpack.c.h.b16 %v497
        %v633 = vunpack.c.l.b16 %v498
        %v634 = vunpack.c.h.b16 %v498
        %v635 = vunpack.c.l.b16 %v499
        %v636 = vunpack.c.h.b16 %v499
        %v637 = vunpack.c.l.b16 %v500
        %v638 = vunpack.c.h.b16 %v500
        %v639 = vunpack.c.l.b16 %v501
        %v640 = vunpack.c.h.b16 %v501
        %v641 = vunpack.c.l.b16 %v502
        %v642 = vunpack.c.h.b16 %v502
        %v643 = vunpack.c.l.b16 %v503
        %v644 = vunpack.c.h.b16 %v503
        %v645 = vunpack.c.l.b16 %v504
        %v646 = vunpack.c.h.b16 %v504
        %v647 = vpack.c.b16 %v587, %v583
        %v648 = vpack.c.b16 %v588, %v584
        %v649 = vpack.c.b16 %v589, %v585
        %v650 = vpack.c.b16 %v590, %v586
        %v651 = vpack.c.b16 %v595, %v591
        %v652 = vpack.c.b16 %v596, %v592
        %v653 = vpack.c.b16 %v597, %v593
        %v654 = vpack.c.b16 %v598, %v594
        %v655 = vpack.c.b16 %v603, %v599
        %v656 = vpack.c.b16 %v604, %v600
        %v657 = vpack.c.b16 %v605, %v601
        %v658 = vpack.c.b16 %v606, %v602
        %v659 = vpack.c.b16 %v611, %v607
        %v660 = vpack.c.b16 %v612, %v608
        %v661 = vpack.c.b16 %v613, %v609
        %v662 = vpack.c.b16 %v614, %v610
        %v663 = vpack.c.b16 %v619, %v615
        %v664 = vpack.c.b16 %v620, %v616
        %v665 = vpack.c.b16 %v621, %v617
        %v666 = vpack.c.b16 %v622, %v618
        %v667 = vpack.c.b16 %v627, %v623
        %v668 = vpack.c.b16 %v628, %v624
        %v669 = vpack.c.b16 %v629, %v625
        %v670 = vpack.c.b16 %v630, %v626
        %v671 = vpack.c.b16 %v635, %v631
        %v672 = vpack.c.b16 %v636, %v632
        %v673 = vpack.c.b16 %v637, %v633
        %v674 = vpack.c.b16 %v638, %v634
        %v675 = vpack.c.b16 %v643, %v639
        %v676 = vpack.c.b16 %v644, %v640
        %v677 = vpack.c.b16 %v645, %v641
        %v678 = vpack.c.b16 %v646, %v642
        %711 = vmatprep.subr.bf16.mxu0 %v676
        %712 = vmatpush1.bf16.msra.mxu0 %v675
        %713 = vmatprep.subr.bf16.mxu0 %v672
        %714 = vmatpush1.bf16.msra.mxu0 %v671
        %715 = vmatprep.subr.bf16.mxu0 %v668
        %716 = vmatpush1.bf16.msra.mxu0 %v667
        %717 = vmatprep.subr.bf16.mxu0 %v664
        %718 = vmatpush1.bf16.msra.mxu0 %v663
        %719 = vmatprep.subr.bf16.mxu0 %v660
        %720 = vmatpush1.bf16.msra.mxu0 %v659
        %721 = vmatprep.subr.bf16.mxu0 %v656
        %722 = vmatpush1.bf16.msra.mxu0 %v655
        %723 = vmatprep.subr.bf16.mxu0 %v652
        %724 = vmatpush1.bf16.msra.mxu0 %v651
        %725 = vmatprep.subr.bf16.mxu0 %v648
        %726 = vmatpush1.bf16.msra.mxu0 %v647
        %727 = vmatprep.subr.bf16.mxu0 0
        %728 = vmatpush2.bf16.msra.mxu0 0
        %729 = vmatprep.subr.bf16.mxu0 0
        %730 = vmatpush2.bf16.msra.mxu0 0
        %731 = vmatprep.subr.bf16.mxu0 0
        %732 = vmatpush2.bf16.msra.mxu0 0
        %733 = vmatprep.subr.bf16.mxu0 0
        %734 = vmatpush2.bf16.msra.mxu0 0
        %735 = vmatprep.subr.bf16.mxu0 0
        %736 = vmatpush2.bf16.msra.mxu0 0
        %737 = vmatprep.subr.bf16.mxu0 0
        %738 = vmatpush2.bf16.msra.mxu0 0
        %739 = vmatprep.subr.bf16.mxu0 0
        %740 = vmatpush2.bf16.msra.mxu0 0
        %741 = vmatprep.subr.bf16.mxu0 0
        %742 = vmatpush2.bf16.msra.mxu0 0
        %743 = vmatprep.mubr.bf16.mxu0 0
        %744 = vmatmul.mubr.bf16.gmra.mxu0 %v543
        %v745 = vpop.f32.mrf.mxu0
        %v746 = vadd.f32 %v510, %v745
        %v747 = vpop.f32.mrf.mxu0
        %v748 = vadd.f32 %v514, %v747
        %v749 = vpop.f32.mrf.mxu0
        %v750 = vadd.f32 %v510, %v749
        %v751 = vpop.f32.mrf.mxu0
        %v752 = vadd.f32 %v514, %v751
        %753 = vmatprep.mubr.bf16.mxu0 0
        %754 = vmatmul.mubr.bf16.gmra.mxu0 %v544
        %v755 = vpop.f32.mrf.mxu0
        %v756 = vadd.f32 %v510, %v755
        %v757 = vpop.f32.mrf.mxu0
        %v758 = vadd.f32 %v514, %v757
        %v759 = vpop.f32.mrf.mxu0
        %v760 = vadd.f32 %v510, %v759
        %v761 = vpop.f32.mrf.mxu0
        %v762 = vadd.f32 %v514, %v761
        %763 = vmatprep.mubr.bf16.mxu0 0
        %764 = vmatmul.mubr.bf16.gmra.mxu0 %v545
        %v765 = vpop.f32.mrf.mxu0
        %v766 = vadd.f32 %v510, %v765
        %v767 = vpop.f32.mrf.mxu0
        %v768 = vadd.f32 %v514, %v767
        %v769 = vpop.f32.mrf.mxu0
        %v770 = vadd.f32 %v510, %v769
        %v771 = vpop.f32.mrf.mxu0
        %v772 = vadd.f32 %v514, %v771
        %773 = vmatprep.mubr.bf16.mxu0 0
        %774 = vmatmul.mubr.bf16.gmra.mxu0 %v546
        %v775 = vpop.f32.mrf.mxu0
        %v776 = vadd.f32 %v510, %v775
        %v777 = vpop.f32.mrf.mxu0
        %v778 = vadd.f32 %v514, %v777
        %v779 = vpop.f32.mrf.mxu0
        %v780 = vadd.f32 %v510, %v779
        %v781 = vpop.f32.mrf.mxu0
        %v782 = vadd.f32 %v514, %v781
        %783 = vdwg.mxu0
        %784 = vmatprep.subr.bf16.mxu0 %v678
        %785 = vmatpush1.bf16.msra.mxu0 %v677
        %786 = vmatprep.subr.bf16.mxu0 %v674
        %787 = vmatpush1.bf16.msra.mxu0 %v673
        %788 = vmatprep.subr.bf16.mxu0 %v670
        %789 = vmatpush1.bf16.msra.mxu0 %v669
        %790 = vmatprep.subr.bf16.mxu0 %v666
        %791 = vmatpush1.bf16.msra.mxu0 %v665
        %792 = vmatprep.subr.bf16.mxu0 %v662
        %793 = vmatpush1.bf16.msra.mxu0 %v661
        %794 = vmatprep.subr.bf16.mxu0 %v658
        %795 = vmatpush1.bf16.msra.mxu0 %v657
        %796 = vmatprep.subr.bf16.mxu0 %v654
        %797 = vmatpush1.bf16.msra.mxu0 %v653
        %798 = vmatprep.subr.bf16.mxu0 %v650
        %799 = vmatpush1.bf16.msra.mxu0 %v649
        %800 = vmatprep.subr.bf16.mxu0 0
        %801 = vmatpush2.bf16.msra.mxu0 0
        %802 = vmatprep.subr.bf16.mxu0 0
        %803 = vmatpush2.bf16.msra.mxu0 0
        %804 = vmatprep.subr.bf16.mxu0 0
        %805 = vmatpush2.bf16.msra.mxu0 0
        %806 = vmatprep.subr.bf16.mxu0 0
        %807 = vmatpush2.bf16.msra.mxu0 0
        %808 = vmatprep.subr.bf16.mxu0 0
        %809 = vmatpush2.bf16.msra.mxu0 0
        %810 = vmatprep.subr.bf16.mxu0 0
        %811 = vmatpush2.bf16.msra.mxu0 0
        %812 = vmatprep.subr.bf16.mxu0 0
        %813 = vmatpush2.bf16.msra.mxu0 0
        %814 = vmatprep.subr.bf16.mxu0 0
        %815 = vmatpush2.bf16.msra.mxu0 0
        %816 = vmatprep.mubr.bf16.mxu0 0
        %817 = vmatmul.mubr.bf16.gmra.mxu0 %v543
        %v818 = vpop.f32.mrf.mxu0
        %v819 = vadd.f32 %v518, %v818
        %v820 = vpop.f32.mrf.mxu0
        %v821 = vadd.f32 %v522, %v820
        %v822 = vpop.f32.mrf.mxu0
        %v823 = vadd.f32 %v518, %v822
        %v824 = vpop.f32.mrf.mxu0
        %v825 = vadd.f32 %v522, %v824
        %826 = vmatprep.mubr.bf16.mxu0 0
        %827 = vmatmul.mubr.bf16.gmra.mxu0 %v544
        %v828 = vpop.f32.mrf.mxu0
        %v829 = vadd.f32 %v518, %v828
        %v830 = vpop.f32.mrf.mxu0
        %v831 = vadd.f32 %v522, %v830
        %v832 = vpop.f32.mrf.mxu0
        %v833 = vadd.f32 %v518, %v832
        %v834 = vpop.f32.mrf.mxu0
        %v835 = vadd.f32 %v522, %v834
        %836 = vmatprep.mubr.bf16.mxu0 0
        %837 = vmatmul.mubr.bf16.gmra.mxu0 %v545
        %v838 = vpop.f32.mrf.mxu0
        %v839 = vadd.f32 %v518, %v838
        %v840 = vpop.f32.mrf.mxu0
        %v841 = vadd.f32 %v522, %v840
        %v842 = vpop.f32.mrf.mxu0
        %v843 = vadd.f32 %v518, %v842
        %v844 = vpop.f32.mrf.mxu0
        %v845 = vadd.f32 %v522, %v844
        %846 = vmatprep.mubr.bf16.mxu0 0
        %847 = vmatmul.mubr.bf16.gmra.mxu0 %v546
        %v848 = vpop.f32.mrf.mxu0
        %v849 = vadd.f32 %v518, %v848
        %v850 = vpop.f32.mrf.mxu0
        %v851 = vadd.f32 %v522, %v850
        %v852 = vpop.f32.mrf.mxu0
        %v853 = vadd.f32 %v518, %v852
        %v854 = vpop.f32.mrf.mxu0
        %v855 = vadd.f32 %v522, %v854
        %856 = vdwg.mxu0
        %857 = vst [vmem:[#allocation4] sm:$0xff] %v746
        %858 = vst [vmem:[#allocation4 + $0x8] sm:$0xff] %v748
        %859 = vst [vmem:[#allocation4 + $0x10] sm:$0xff] %v819
        %860 = vst [vmem:[#allocation4 + $0x18] sm:$0xff] %v821
        %861 = vst [vmem:[#allocation4 + $0x20] sm:$0xff] %v750
        %862 = vst [vmem:[#allocation4 + $0x28] sm:$0xff] %v752
        %863 = vst [vmem:[#allocation4 + $0x30] sm:$0xff] %v823
        %864 = vst [vmem:[#allocation4 + $0x38] sm:$0xff] %v825
        %865 = vst [vmem:[#allocation4 + $0x40] sm:$0xff] %v756
        %866 = vst [vmem:[#allocation4 + $0x48] sm:$0xff] %v758
        %867 = vst [vmem:[#allocation4 + $0x50] sm:$0xff] %v829
        %868 = vst [vmem:[#allocation4 + $0x58] sm:$0xff] %v831
        %869 = vst [vmem:[#allocation4 + $0x60] sm:$0xff] %v760
        %870 = vst [vmem:[#allocation4 + $0x68] sm:$0xff] %v762
        %871 = vst [vmem:[#allocation4 + $0x70] sm:$0xff] %v833
        %872 = vst [vmem:[#allocation4 + $0x78] sm:$0xff] %v835
        %873 = vst [vmem:[#allocation4 + $0x80] sm:$0xff] %v766
        %874 = vst [vmem:[#allocation4 + $0x88] sm:$0xff] %v768
        %875 = vst [vmem:[#allocation4 + $0x90] sm:$0xff] %v839
        %876 = vst [vmem:[#allocation4 + $0x98] sm:$0xff] %v841
        %877 = vst [vmem:[#allocation4 + $0xa0] sm:$0xff] %v770
        %878 = vst [vmem:[#allocation4 + $0xa8] sm:$0xff] %v772
        %879 = vst [vmem:[#allocation4 + $0xb0] sm:$0xff] %v843
        %880 = vst [vmem:[#allocation4 + $0xb8] sm:$0xff] %v845
        %881 = vst [vmem:[#allocation4 + $0xc0] sm:$0xff] %v776
        %882 = vst [vmem:[#allocation4 + $0xc8] sm:$0xff] %v778
        %883 = vst [vmem:[#allocation4 + $0xd0] sm:$0xff] %v849
        %884 = vst [vmem:[#allocation4 + $0xd8] sm:$0xff] %v851
        %885 = vst [vmem:[#allocation4 + $0xe0] sm:$0xff] %v780
        %886 = vst [vmem:[#allocation4 + $0xe8] sm:$0xff] %v782
        %887 = vst [vmem:[#allocation4 + $0xf0] sm:$0xff] %v853
        %888 = vst [vmem:[#allocation4 + $0xf8] sm:$0xff] %v855
        %v889 = vld [vmem:[%s384] sm:$0xff]
        %v890 = vld [vmem:[%s384 + $0x8] sm:$0xff]
        %v891 = vld [vmem:[%s384 + $0x10] sm:$0xff]
        %v892 = vld [vmem:[%s384 + $0x18] sm:$0xff]
        %v893 = vld [vmem:[%s384 + $0x20] sm:$0xff]
        %v894 = vld [vmem:[%s384 + $0x28] sm:$0xff]
        %v895 = vld [vmem:[%s384 + $0x30] sm:$0xff]
        %v896 = vld [vmem:[%s384 + $0x38] sm:$0xff]
        %v897 = vld [vmem:[%s384 + $0x40] sm:$0xff]
        %v898 = vld [vmem:[%s384 + $0x48] sm:$0xff]
        %v899 = vld [vmem:[%s384 + $0x50] sm:$0xff]
        %v900 = vld [vmem:[%s384 + $0x58] sm:$0xff]
        %v901 = vld [vmem:[%s384 + $0x60] sm:$0xff]
        %v902 = vld [vmem:[%s384 + $0x68] sm:$0xff]
        %v903 = vld [vmem:[%s384 + $0x70] sm:$0xff]
        %v904 = vld [vmem:[%s384 + $0x78] sm:$0xff]
        %v905 = vld [vmem:[%s384 + $0x80] sm:$0xff]
        %v906 = vld [vmem:[%s384 + $0x88] sm:$0xff]
        %v907 = vld [vmem:[%s384 + $0x90] sm:$0xff]
        %v908 = vld [vmem:[%s384 + $0x98] sm:$0xff]
        %v909 = vld [vmem:[%s384 + $0xa0] sm:$0xff]
        %v910 = vld [vmem:[%s384 + $0xa8] sm:$0xff]
        %v911 = vld [vmem:[%s384 + $0xb0] sm:$0xff]
        %v912 = vld [vmem:[%s384 + $0xb8] sm:$0xff]
        %v913 = vld [vmem:[%s384 + $0xc0] sm:$0xff]
        %v914 = vld [vmem:[%s384 + $0xc8] sm:$0xff]
        %v915 = vld [vmem:[%s384 + $0xd0] sm:$0xff]
        %v916 = vld [vmem:[%s384 + $0xd8] sm:$0xff]
        %v917 = vld [vmem:[%s384 + $0xe0] sm:$0xff]
        %v918 = vld [vmem:[%s384 + $0xe8] sm:$0xff]
        %v919 = vld [vmem:[%s384 + $0xf0] sm:$0xff]
        %v920 = vld [vmem:[%s384 + $0xf8] sm:$0xff]
        %v921 = vld [vmem:[%s0] sm:$0xff]
        %922 = vset.pattern.permute.xlu0 0
        %923 = vperm.xlu0 %922, %v921
        %v924 = vpop.permute.xlu0 %923
        %v925 = vld [vmem:[#allocation2] sm:$0xff]
        %v926 = vld [vmem:[#allocation3] sm:$0xff]
        %s927 = smul.u32 %s35, 7
        %s928 = smul.u32 %s35, 56
        %s929 = sshra.s32 %s928, 3
        %s930 = sand.u32 %s928, 7
        %s931 = smul.u32 %s929, 4
        %s932 = smul.addr %s931, 8
        %s933 = scalar_lea.vmem [#allocation4], %s932
        %v934 = vld [vmem:[%s933] sm:$0xff]
        %v935 = vld [vmem:[%s933 + $0x8] sm:$0xff]
        %v936 = vld [vmem:[%s933 + $0x10] sm:$0xff]
        %v937 = vld [vmem:[%s933 + $0x18] sm:$0xff]
        %v938 = vpack.c.bf16 %v925, %v925
        %v971 = vunpack.c.l.b16 %v889
        %v972 = vunpack.c.h.b16 %v889
        %v973 = vunpack.c.l.b16 %v890
        %v974 = vunpack.c.h.b16 %v890
        %v975 = vunpack.c.l.b16 %v891
        %v976 = vunpack.c.h.b16 %v891
        %v977 = vunpack.c.l.b16 %v892
        %v978 = vunpack.c.h.b16 %v892
        %v979 = vunpack.c.l.b16 %v893
        %v980 = vunpack.c.h.b16 %v893
        %v981 = vunpack.c.l.b16 %v894
        %v982 = vunpack.c.h.b16 %v894
        %v983 = vunpack.c.l.b16 %v895
        %v984 = vunpack.c.h.b16 %v895
        %v985 = vunpack.c.l.b16 %v896
        %v986 = vunpack.c.h.b16 %v896
        %v987 = vunpack.c.l.b16 %v897
        %v988 = vunpack.c.h.b16 %v897
        %v989 = vunpack.c.l.b16 %v898
        %v990 = vunpack.c.h.b16 %v898
        %v991 = vunpack.c.l.b16 %v899
        %v992 = vunpack.c.h.b16 %v899
        %v993 = vunpack.c.l.b16 %v900
        %v994 = vunpack.c.h.b16 %v900
        %v995 = vunpack.c.l.b16 %v901
        %v996 = vunpack.c.h.b16 %v901
        %v997 = vunpack.c.l.b16 %v902
        %v998 = vunpack.c.h.b16 %v902
        %v999 = vunpack.c.l.b16 %v903
        %v1000 = vunpack.c.h.b16 %v903
        %v1001 = vunpack.c.l.b16 %v904
        %v1002 = vunpack.c.h.b16 %v904
        %v1003 = vunpack.c.l.b16 %v905
        %v1004 = vunpack.c.h.b16 %v905
        %v1005 = vunpack.c.l.b16 %v906
        %v1006 = vunpack.c.h.b16 %v906
        %v1007 = vunpack.c.l.b16 %v907
        %v1008 = vunpack.c.h.b16 %v907
        %v1009 = vunpack.c.l.b16 %v908
        %v1010 = vunpack.c.h.b16 %v908
        %v1011 = vunpack.c.l.b16 %v909
        %v1012 = vunpack.c.h.b16 %v909
        %v1013 = vunpack.c.l.b16 %v910
        %v1014 = vunpack.c.h.b16 %v910
        %v1015 = vunpack.c.l.b16 %v911
        %v1016 = vunpack.c.h.b16 %v911
        %v1017 = vunpack.c.l.b16 %v912
        %v1018 = vunpack.c.h.b16 %v912
        %v1019 = vunpack.c.l.b16 %v913
        %v1020 = vunpack.c.h.b16 %v913
        %v1021 = vunpack.c.l.b16 %v914
        %v1022 = vunpack.c.h.b16 %v914
        %v1023 = vunpack.c.l.b16 %v915
        %v1024 = vunpack.c.h.b16 %v915
        %v1025 = vunpack.c.l.b16 %v916
        %v1026 = vunpack.c.h.b16 %v916
        %v1027 = vunpack.c.l.b16 %v917
        %v1028 = vunpack.c.h.b16 %v917
        %v1029 = vunpack.c.l.b16 %v918
        %v1030 = vunpack.c.h.b16 %v918
        %v1031 = vunpack.c.l.b16 %v919
        %v1032 = vunpack.c.h.b16 %v919
        %v1033 = vunpack.c.l.b16 %v920
        %v1034 = vunpack.c.h.b16 %v920
        %v1035 = vpack.c.b16 %v975, %v971
        %v1036 = vpack.c.b16 %v976, %v972
        %v1037 = vpack.c.b16 %v977, %v973
        %v1038 = vpack.c.b16 %v978, %v974
        %v1039 = vpack.c.b16 %v983, %v979
        %v1040 = vpack.c.b16 %v984, %v980
        %v1041 = vpack.c.b16 %v985, %v981
        %v1042 = vpack.c.b16 %v986, %v982
        %v1043 = vpack.c.b16 %v991, %v987
        %v1044 = vpack.c.b16 %v992, %v988
        %v1045 = vpack.c.b16 %v993, %v989
        %v1046 = vpack.c.b16 %v994, %v990
        %v1047 = vpack.c.b16 %v999, %v995
        %v1048 = vpack.c.b16 %v1000, %v996
        %v1049 = vpack.c.b16 %v1001, %v997
        %v1050 = vpack.c.b16 %v1002, %v998
        %v1051 = vpack.c.b16 %v1007, %v1003
        %v1052 = vpack.c.b16 %v1008, %v1004
        %v1053 = vpack.c.b16 %v1009, %v1005
        %v1054 = vpack.c.b16 %v1010, %v1006
        %v1055 = vpack.c.b16 %v1015, %v1011
        %v1056 = vpack.c.b16 %v1016, %v1012
        %v1057 = vpack.c.b16 %v1017, %v1013
        %v1058 = vpack.c.b16 %v1018, %v1014
        %v1059 = vpack.c.b16 %v1023, %v1019
        %v1060 = vpack.c.b16 %v1024, %v1020
        %v1061 = vpack.c.b16 %v1025, %v1021
        %v1062 = vpack.c.b16 %v1026, %v1022
        %v1063 = vpack.c.b16 %v1031, %v1027
        %v1064 = vpack.c.b16 %v1032, %v1028
        %v1065 = vpack.c.b16 %v1033, %v1029
        %v1066 = vpack.c.b16 %v1034, %v1030
        %1099 = vmatprep.subr.bf16.mxu0 %v1064
        %1100 = vmatpush1.bf16.msra.mxu0 %v1063
        %1101 = vmatprep.subr.bf16.mxu0 %v1060
        %1102 = vmatpush1.bf16.msra.mxu0 %v1059
        %1103 = vmatprep.subr.bf16.mxu0 %v1056
        %1104 = vmatpush1.bf16.msra.mxu0 %v1055
        %1105 = vmatprep.subr.bf16.mxu0 %v1052
        %1106 = vmatpush1.bf16.msra.mxu0 %v1051
        %1107 = vmatprep.subr.bf16.mxu0 %v1048
        %1108 = vmatpush1.bf16.msra.mxu0 %v1047
        %1109 = vmatprep.subr.bf16.mxu0 %v1044
        %1110 = vmatpush1.bf16.msra.mxu0 %v1043
        %1111 = vmatprep.subr.bf16.mxu0 %v1040
        %1112 = vmatpush1.bf16.msra.mxu0 %v1039
        %1113 = vmatprep.subr.bf16.mxu0 %v1036
        %1114 = vmatpush1.bf16.msra.mxu0 %v1035
        %1115 = vmatprep.subr.bf16.mxu0 0
        %1116 = vmatpush2.bf16.msra.mxu0 0
        %1117 = vmatprep.subr.bf16.mxu0 0
        %1118 = vmatpush2.bf16.msra.mxu0 0
        %1119 = vmatprep.subr.bf16.mxu0 0
        %1120 = vmatpush2.bf16.msra.mxu0 0
        %1121 = vmatprep.subr.bf16.mxu0 0
        %1122 = vmatpush2.bf16.msra.mxu0 0
        %1123 = vmatprep.subr.bf16.mxu0 0
        %1124 = vmatpush2.bf16.msra.mxu0 0
        %1125 = vmatprep.subr.bf16.mxu0 0
        %1126 = vmatpush2.bf16.msra.mxu0 0
        %1127 = vmatprep.subr.bf16.mxu0 0
        %1128 = vmatpush2.bf16.msra.mxu0 0
        %1129 = vmatprep.subr.bf16.mxu0 0
        %1130 = vmatpush2.bf16.msra.mxu0 0
        %1131 = vmatprep.mubr.bf16.mxu0 0
        %1132 = vmatmul.mubr.bf16.gmra.mxu0 %v938
        %v1133 = vpop.f32.mrf.mxu0
        %v1134 = vadd.f32 0.0, %v1133
        %v1135 = vpop.f32.mrf.mxu0
        %v1136 = vadd.f32 0.0, %v1135
        %v1137 = vpop.f32.mrf.mxu0
        %v1138 = vpop.f32.mrf.mxu0
        %1139 = vdwg.mxu0
        %1140 = vmatprep.subr.bf16.mxu0 %v1066
        %1141 = vmatpush1.bf16.msra.mxu0 %v1065
        %1142 = vmatprep.subr.bf16.mxu0 %v1062
        %1143 = vmatpush1.bf16.msra.mxu0 %v1061
        %1144 = vmatprep.subr.bf16.mxu0 %v1058
        %1145 = vmatpush1.bf16.msra.mxu0 %v1057
        %1146 = vmatprep.subr.bf16.mxu0 %v1054
        %1147 = vmatpush1.bf16.msra.mxu0 %v1053
        %1148 = vmatprep.subr.bf16.mxu0 %v1050
        %1149 = vmatpush1.bf16.msra.mxu0 %v1049
        %1150 = vmatprep.subr.bf16.mxu0 %v1046
        %1151 = vmatpush1.bf16.msra.mxu0 %v1045
        %1152 = vmatprep.subr.bf16.mxu0 %v1042
        %1153 = vmatpush1.bf16.msra.mxu0 %v1041
        %1154 = vmatprep.subr.bf16.mxu0 %v1038
        %1155 = vmatpush1.bf16.msra.mxu0 %v1037
        %1156 = vmatprep.subr.bf16.mxu0 0
        %1157 = vmatpush2.bf16.msra.mxu0 0
        %1158 = vmatprep.subr.bf16.mxu0 0
        %1159 = vmatpush2.bf16.msra.mxu0 0
        %1160 = vmatprep.subr.bf16.mxu0 0
        %1161 = vmatpush2.bf16.msra.mxu0 0
        %1162 = vmatprep.subr.bf16.mxu0 0
        %1163 = vmatpush2.bf16.msra.mxu0 0
        %1164 = vmatprep.subr.bf16.mxu0 0
        %1165 = vmatpush2.bf16.msra.mxu0 0
        %1166 = vmatprep.subr.bf16.mxu0 0
        %1167 = vmatpush2.bf16.msra.mxu0 0
        %1168 = vmatprep.subr.bf16.mxu0 0
        %1169 = vmatpush2.bf16.msra.mxu0 0
        %1170 = vmatprep.subr.bf16.mxu0 0
        %1171 = vmatpush2.bf16.msra.mxu0 0
        %1172 = vmatprep.mubr.bf16.mxu0 0
        %1173 = vmatmul.mubr.bf16.gmra.mxu0 %v938
        %v1174 = vpop.f32.mrf.mxu0
        %v1175 = vadd.f32 0.0, %v1174
        %v1176 = vpop.f32.mrf.mxu0
        %v1177 = vadd.f32 0.0, %v1176
        %v1178 = vpop.f32.mrf.mxu0
        %v1179 = vpop.f32.mrf.mxu0
        %1180 = vdwg.mxu0
        %v1181 = vadd.f32 %v934, %v1134
        %v1182 = vadd.f32 %v935, %v1136
        %v1183 = vadd.f32 %v936, %v1175
        %v1184 = vadd.f32 %v937, %v1177
        %v1185 = vxor.u32 %v1181, 2147483648
        %v1186 = vmul.f32 %v1185, 1.442695
        %v1187 = vpow.pop %v1186
        %v1188 = vadd.f32 %v1187, 1.0
        %v1189 = vrcp.pop %v1188
        %v1190 = vmul.f32 1.0, %v1189
        %v1191 = vxor.u32 %v1182, 2147483648
        %v1192 = vmul.f32 %v1191, 1.442695
        %v1193 = vpow.pop %v1192
        %v1194 = vadd.f32 %v1193, 1.0
        %v1195 = vrcp.pop %v1194
        %v1196 = vmul.f32 1.0, %v1195
        %v1197 = vtanh.pop %v1183
        %v1198 = vxor.u32 %v1184, 2147483648
        %v1199 = vmul.f32 %v1198, 1.442695
        %v1200 = vpow.pop %v1199
        %v1201 = vadd.f32 %v1200, 1.0
        %v1202 = vrcp.pop %v1201
        %v1203 = vmul.f32 1.0, %v1202
        %v1204 = vmul.f32 %v1196, %v926
        %v1205 = vmul.f32 %v1190, %v1197
        %v1206 = vadd.f32 %v1204, %v1205
        %v1207 = vtanh.pop %v1206
        %v1208 = vmul.f32 %v1203, %v1207
        %s1209 = sadd.s32 %s458, %s927
        %v1210 = vstv %s1209
        %vm1211 = vcmp.gt.s32.totalorder %v924, %v1210
        %v1212 = vsel %vm1211, %v1208, %v925
        %v1213 = vsel %vm1211, %v1206, %v926
        %v1214 = vsel %vm1211, %v1208, 0.0
        %v1215 = vpack.c.bf16 %v1214, %v1214
        %s1216 = smul.addr %s927, 4
        %s1217 = scalar_lea.vmem %s424, %s1216 [#allocation11]
        %1218 = vst [vmem:[%s1217] sm:$0xf] %v1215
        %s1219 = smul.u32 %s35, 5
        %s1220 = sadd.s32 %s1219, 1
        %s1221 = smul.u32 %s1220, 8
        %s1222 = sshra.s32 %s1221, 3
        %s1223 = sand.u32 %s1221, 7
        %s1224 = smul.u32 %s1222, 4
        %s1225 = smul.addr %s1224, 8
        %s1226 = scalar_lea.vmem [#allocation4], %s1225
        %v1227 = vld [vmem:[%s1226] sm:$0xff]
        %v1228 = vld [vmem:[%s1226 + $0x8] sm:$0xff]
        %v1229 = vld [vmem:[%s1226 + $0x10] sm:$0xff]
        %v1230 = vld [vmem:[%s1226 + $0x18] sm:$0xff]
        %v1231 = vpack.c.bf16 %v1212, %v1212
        %1232 = vmatprep.subr.bf16.mxu0 %v1064
        %1233 = vmatpush1.bf16.msra.mxu0 %v1063
        %1234 = vmatprep.subr.bf16.mxu0 %v1060
        %1235 = vmatpush1.bf16.msra.mxu0 %v1059
        %1236 = vmatprep.subr.bf16.mxu0 %v1056
        %1237 = vmatpush1.bf16.msra.mxu0 %v1055
        %1238 = vmatprep.subr.bf16.mxu0 %v1052
        %1239 = vmatpush1.bf16.msra.mxu0 %v1051
        %1240 = vmatprep.subr.bf16.mxu0 %v1048
        %1241 = vmatpush1.bf16.msra.mxu0 %v1047
        %1242 = vmatprep.subr.bf16.mxu0 %v1044
        %1243 = vmatpush1.bf16.msra.mxu0 %v1043
        %1244 = vmatprep.subr.bf16.mxu0 %v1040
        %1245 = vmatpush1.bf16.msra.mxu0 %v1039
        %1246 = vmatprep.subr.bf16.mxu0 %v1036
        %1247 = vmatpush1.bf16.msra.mxu0 %v1035
        %1248 = vmatprep.subr.bf16.mxu0 0
        %1249 = vmatpush2.bf16.msra.mxu0 0
        %1250 = vmatprep.subr.bf16.mxu0 0
        %1251 = vmatpush2.bf16.msra.mxu0 0
        %1252 = vmatprep.subr.bf16.mxu0 0
        %1253 = vmatpush2.bf16.msra.mxu0 0
        %1254 = vmatprep.subr.bf16.mxu0 0
        %1255 = vmatpush2.bf16.msra.mxu0 0
        %1256 = vmatprep.subr.bf16.mxu0 0
        %1257 = vmatpush2.bf16.msra.mxu0 0
        %1258 = vmatprep.subr.bf16.mxu0 0
        %1259 = vmatpush2.bf16.msra.mxu0 0
        %1260 = vmatprep.subr.bf16.mxu0 0
        %1261 = vmatpush2.bf16.msra.mxu0 0
        %1262 = vmatprep.subr.bf16.mxu0 0
        %1263 = vmatpush2.bf16.msra.mxu0 0
        %1264 = vmatprep.mubr.bf16.mxu0 0
        %1265 = vmatmul.mubr.bf16.gmra.mxu0 %v1231
        %v1266 = vpop.f32.mrf.mxu0
        %v1267 = vadd.f32 0.0, %v1266
        %v1268 = vpop.f32.mrf.mxu0
        %v1269 = vadd.f32 0.0, %v1268
        %v1270 = vpop.f32.mrf.mxu0
        %v1271 = vpop.f32.mrf.mxu0
        %1272 = vdwg.mxu0
        %1273 = vmatprep.subr.bf16.mxu0 %v1066
        %1274 = vmatpush1.bf16.msra.mxu0 %v1065
        %1275 = vmatprep.subr.bf16.mxu0 %v1062
        %1276 = vmatpush1.bf16.msra.mxu0 %v1061
        %1277 = vmatprep.subr.bf16.mxu0 %v1058
        %1278 = vmatpush1.bf16.msra.mxu0 %v1057
        %1279 = vmatprep.subr.bf16.mxu0 %v1054
        %1280 = vmatpush1.bf16.msra.mxu0 %v1053
        %1281 = vmatprep.subr.bf16.mxu0 %v1050
        %1282 = vmatpush1.bf16.msra.mxu0 %v1049
        %1283 = vmatprep.subr.bf16.mxu0 %v1046
        %1284 = vmatpush1.bf16.msra.mxu0 %v1045
        %1285 = vmatprep.subr.bf16.mxu0 %v1042
        %1286 = vmatpush1.bf16.msra.mxu0 %v1041
        %1287 = vmatprep.subr.bf16.mxu0 %v1038
        %1288 = vmatpush1.bf16.msra.mxu0 %v1037
        %1289 = vmatprep.subr.bf16.mxu0 0
        %1290 = vmatpush2.bf16.msra.mxu0 0
        %1291 = vmatprep.subr.bf16.mxu0 0
        %1292 = vmatpush2.bf16.msra.mxu0 0
        %1293 = vmatprep.subr.bf16.mxu0 0
        %1294 = vmatpush2.bf16.msra.mxu0 0
        %1295 = vmatprep.subr.bf16.mxu0 0
        %1296 = vmatpush2.bf16.msra.mxu0 0
        %1297 = vmatprep.subr.bf16.mxu0 0
        %1298 = vmatpush2.bf16.msra.mxu0 0
        %1299 = vmatprep.subr.bf16.mxu0 0
        %1300 = vmatpush2.bf16.msra.mxu0 0
        %1301 = vmatprep.subr.bf16.mxu0 0
        %1302 = vmatpush2.bf16.msra.mxu0 0
        %1303 = vmatprep.subr.bf16.mxu0 0
        %1304 = vmatpush2.bf16.msra.mxu0 0
        %1305 = vmatprep.mubr.bf16.mxu0 0
        %1306 = vmatmul.mubr.bf16.gmra.mxu0 %v1231
        %v1307 = vpop.f32.mrf.mxu0
        %v1308 = vadd.f32 0.0, %v1307
        %v1309 = vpop.f32.mrf.mxu0
        %v1310 = vadd.f32 0.0, %v1309
        %v1311 = vpop.f32.mrf.mxu0
        %v1312 = vpop.f32.mrf.mxu0
        %1313 = vdwg.mxu0
        %v1314 = vadd.f32 %v1227, %v1267
        %v1315 = vadd.f32 %v1228, %v1269
        %v1316 = vadd.f32 %v1229, %v1308
        %v1317 = vadd.f32 %v1230, %v1310
        %v1318 = vxor.u32 %v1314, 2147483648
        %v1319 = vmul.f32 %v1318, 1.442695
        %v1320 = vpow.pop %v1319
        %v1321 = vadd.f32 %v1320, 1.0
        %v1322 = vrcp.pop %v1321
        %v1323 = vmul.f32 1.0, %v1322
        %v1324 = vxor.u32 %v1315, 2147483648
        %v1325 = vmul.f32 %v1324, 1.442695
        %v1326 = vpow.pop %v1325
        %v1327 = vadd.f32 %v1326, 1.0
        %v1328 = vrcp.pop %v1327
        %v1329 = vmul.f32 1.0, %v1328
        %v1330 = vtanh.pop %v1316
        %v1331 = vxor.u32 %v1317, 2147483648
        %v1332 = vmul.f32 %v1331, 1.442695
        %v1333 = vpow.pop %v1332
        %v1334 = vadd.f32 %v1333, 1.0
        %v1335 = vrcp.pop %v1334
        %v1336 = vmul.f32 1.0, %v1335
        %v1337 = vmul.f32 %v1329, %v1213
        %v1338 = vmul.f32 %v1323, %v1330
        %v1339 = vadd.f32 %v1337, %v1338
        %v1340 = vtanh.pop %v1339
        %v1341 = vmul.f32 %v1336, %v1340
        %s1342 = sadd.s32 %s458, %s1220
        %v1343 = vstv %s1342
        %vm1344 = vcmp.gt.s32.totalorder %v924, %v1343
        %v1345 = vsel %vm1344, %v1341, %v1212
        %v1346 = vsel %vm1344, %v1339, %v1213
        %v1347 = vsel %vm1344, %v1341, 0.0
        %v1348 = vpack.c.bf16 %v1347, %v1347
        %s1349 = smul.addr %s1220, 4
        %s1350 = scalar_lea.vmem %s424, %s1349 [#allocation11]
        %1351 = vst [vmem:[%s1350] sm:$0xf] %v1348
        %s1352 = smul.u32 %s35, 3
        %s1353 = sadd.s32 %s1352, 2
        %s1354 = smul.u32 %s1353, 8
        %s1355 = sshra.s32 %s1354, 3
        %s1356 = sand.u32 %s1354, 7
        %s1357 = smul.u32 %s1355, 4
        %s1358 = smul.addr %s1357, 8
        %s1359 = scalar_lea.vmem [#allocation4], %s1358
        %v1360 = vld [vmem:[%s1359] sm:$0xff]
        %v1361 = vld [vmem:[%s1359 + $0x8] sm:$0xff]
        %v1362 = vld [vmem:[%s1359 + $0x10] sm:$0xff]
        %v1363 = vld [vmem:[%s1359 + $0x18] sm:$0xff]
        %v1364 = vpack.c.bf16 %v1345, %v1345
        %1365 = vmatprep.subr.bf16.mxu0 %v1064
        %1366 = vmatpush1.bf16.msra.mxu0 %v1063
        %1367 = vmatprep.subr.bf16.mxu0 %v1060
        %1368 = vmatpush1.bf16.msra.mxu0 %v1059
        %1369 = vmatprep.subr.bf16.mxu0 %v1056
        %1370 = vmatpush1.bf16.msra.mxu0 %v1055
        %1371 = vmatprep.subr.bf16.mxu0 %v1052
        %1372 = vmatpush1.bf16.msra.mxu0 %v1051
        %1373 = vmatprep.subr.bf16.mxu0 %v1048
        %1374 = vmatpush1.bf16.msra.mxu0 %v1047
        %1375 = vmatprep.subr.bf16.mxu0 %v1044
        %1376 = vmatpush1.bf16.msra.mxu0 %v1043
        %1377 = vmatprep.subr.bf16.mxu0 %v1040
        %1378 = vmatpush1.bf16.msra.mxu0 %v1039
        %1379 = vmatprep.subr.bf16.mxu0 %v1036
        %1380 = vmatpush1.bf16.msra.mxu0 %v1035
        %1381 = vmatprep.subr.bf16.mxu0 0
        %1382 = vmatpush2.bf16.msra.mxu0 0
        %1383 = vmatprep.subr.bf16.mxu0 0
        %1384 = vmatpush2.bf16.msra.mxu0 0
        %1385 = vmatprep.subr.bf16.mxu0 0
        %1386 = vmatpush2.bf16.msra.mxu0 0
        %1387 = vmatprep.subr.bf16.mxu0 0
        %1388 = vmatpush2.bf16.msra.mxu0 0
        %1389 = vmatprep.subr.bf16.mxu0 0
        %1390 = vmatpush2.bf16.msra.mxu0 0
        %1391 = vmatprep.subr.bf16.mxu0 0
        %1392 = vmatpush2.bf16.msra.mxu0 0
        %1393 = vmatprep.subr.bf16.mxu0 0
        %1394 = vmatpush2.bf16.msra.mxu0 0
        %1395 = vmatprep.subr.bf16.mxu0 0
        %1396 = vmatpush2.bf16.msra.mxu0 0
        %1397 = vmatprep.mubr.bf16.mxu0 0
        %1398 = vmatmul.mubr.bf16.gmra.mxu0 %v1364
        %v1399 = vpop.f32.mrf.mxu0
        %v1400 = vadd.f32 0.0, %v1399
        %v1401 = vpop.f32.mrf.mxu0
        %v1402 = vadd.f32 0.0, %v1401
        %v1403 = vpop.f32.mrf.mxu0
        %v1404 = vpop.f32.mrf.mxu0
        %1405 = vdwg.mxu0
        %1406 = vmatprep.subr.bf16.mxu0 %v1066
        %1407 = vmatpush1.bf16.msra.mxu0 %v1065
        %1408 = vmatprep.subr.bf16.mxu0 %v1062
        %1409 = vmatpush1.bf16.msra.mxu0 %v1061
        %1410 = vmatprep.subr.bf16.mxu0 %v1058
        %1411 = vmatpush1.bf16.msra.mxu0 %v1057
        %1412 = vmatprep.subr.bf16.mxu0 %v1054
        %1413 = vmatpush1.bf16.msra.mxu0 %v1053
        %1414 = vmatprep.subr.bf16.mxu0 %v1050
        %1415 = vmatpush1.bf16.msra.mxu0 %v1049
        %1416 = vmatprep.subr.bf16.mxu0 %v1046
        %1417 = vmatpush1.bf16.msra.mxu0 %v1045
        %1418 = vmatprep.subr.bf16.mxu0 %v1042
        %1419 = vmatpush1.bf16.msra.mxu0 %v1041
        %1420 = vmatprep.subr.bf16.mxu0 %v1038
        %1421 = vmatpush1.bf16.msra.mxu0 %v1037
        %1422 = vmatprep.subr.bf16.mxu0 0
        %1423 = vmatpush2.bf16.msra.mxu0 0
        %1424 = vmatprep.subr.bf16.mxu0 0
        %1425 = vmatpush2.bf16.msra.mxu0 0
        %1426 = vmatprep.subr.bf16.mxu0 0
        %1427 = vmatpush2.bf16.msra.mxu0 0
        %1428 = vmatprep.subr.bf16.mxu0 0
        %1429 = vmatpush2.bf16.msra.mxu0 0
        %1430 = vmatprep.subr.bf16.mxu0 0
        %1431 = vmatpush2.bf16.msra.mxu0 0
        %1432 = vmatprep.subr.bf16.mxu0 0
        %1433 = vmatpush2.bf16.msra.mxu0 0
        %1434 = vmatprep.subr.bf16.mxu0 0
        %1435 = vmatpush2.bf16.msra.mxu0 0
        %1436 = vmatprep.subr.bf16.mxu0 0
        %1437 = vmatpush2.bf16.msra.mxu0 0
        %1438 = vmatprep.mubr.bf16.mxu0 0
        %1439 = vmatmul.mubr.bf16.gmra.mxu0 %v1364
        %v1440 = vpop.f32.mrf.mxu0
        %v1441 = vadd.f32 0.0, %v1440
        %v1442 = vpop.f32.mrf.mxu0
        %v1443 = vadd.f32 0.0, %v1442
        %v1444 = vpop.f32.mrf.mxu0
        %v1445 = vpop.f32.mrf.mxu0
        %1446 = vdwg.mxu0
        %v1447 = vadd.f32 %v1360, %v1400
        %v1448 = vadd.f32 %v1361, %v1402
        %v1449 = vadd.f32 %v1362, %v1441
        %v1450 = vadd.f32 %v1363, %v1443
        %v1451 = vxor.u32 %v1447, 2147483648
        %v1452 = vmul.f32 %v1451, 1.442695
        %v1453 = vpow.pop %v1452
        %v1454 = vadd.f32 %v1453, 1.0
        %v1455 = vrcp.pop %v1454
        %v1456 = vmul.f32 1.0, %v1455
        %v1457 = vxor.u32 %v1448, 2147483648
        %v1458 = vmul.f32 %v1457, 1.442695
        %v1459 = vpow.pop %v1458
        %v1460 = vadd.f32 %v1459, 1.0
        %v1461 = vrcp.pop %v1460
        %v1462 = vmul.f32 1.0, %v1461
        %v1463 = vtanh.pop %v1449
        %v1464 = vxor.u32 %v1450, 2147483648
        %v1465 = vmul.f32 %v1464, 1.442695
        %v1466 = vpow.pop %v1465
        %v1467 = vadd.f32 %v1466, 1.0
        %v1468 = vrcp.pop %v1467
        %v1469 = vmul.f32 1.0, %v1468
        %v1470 = vmul.f32 %v1462, %v1346
        %v1471 = vmul.f32 %v1456, %v1463
        %v1472 = vadd.f32 %v1470, %v1471
        %v1473 = vtanh.pop %v1472
        %v1474 = vmul.f32 %v1469, %v1473
        %s1475 = sadd.s32 %s458, %s1353
        %v1476 = vstv %s1475
        %vm1477 = vcmp.gt.s32.totalorder %v924, %v1476
        %v1478 = vsel %vm1477, %v1474, %v1345
        %v1479 = vsel %vm1477, %v1472, %v1346
        %v1480 = vsel %vm1477, %v1474, 0.0
        %v1481 = vpack.c.bf16 %v1480, %v1480
        %s1482 = smul.addr %s1353, 4
        %s1483 = scalar_lea.vmem %s424, %s1482 [#allocation11]
        %1484 = vst [vmem:[%s1483] sm:$0xf] %v1481
        %s1485 = sadd.s32 %s35, 3
        %s1486 = smul.u32 %s1485, 8
        %s1487 = sshra.s32 %s1486, 3
        %s1488 = sand.u32 %s1486, 7
        %s1489 = smul.u32 %s1487, 4
        %s1490 = smul.addr %s1489, 8
        %s1491 = scalar_lea.vmem [#allocation4], %s1490
        %v1492 = vld [vmem:[%s1491] sm:$0xff]
        %v1493 = vld [vmem:[%s1491 + $0x8] sm:$0xff]
        %v1494 = vld [vmem:[%s1491 + $0x10] sm:$0xff]
        %v1495 = vld [vmem:[%s1491 + $0x18] sm:$0xff]
        %v1496 = vpack.c.bf16 %v1478, %v1478
        %1497 = vmatprep.subr.bf16.mxu0 %v1064
        %1498 = vmatpush1.bf16.msra.mxu0 %v1063
        %1499 = vmatprep.subr.bf16.mxu0 %v1060
        %1500 = vmatpush1.bf16.msra.mxu0 %v1059
        %1501 = vmatprep.subr.bf16.mxu0 %v1056
        %1502 = vmatpush1.bf16.msra.mxu0 %v1055
        %1503 = vmatprep.subr.bf16.mxu0 %v1052
        %1504 = vmatpush1.bf16.msra.mxu0 %v1051
        %1505 = vmatprep.subr.bf16.mxu0 %v1048
        %1506 = vmatpush1.bf16.msra.mxu0 %v1047
        %1507 = vmatprep.subr.bf16.mxu0 %v1044
        %1508 = vmatpush1.bf16.msra.mxu0 %v1043
        %1509 = vmatprep.subr.bf16.mxu0 %v1040
        %1510 = vmatpush1.bf16.msra.mxu0 %v1039
        %1511 = vmatprep.subr.bf16.mxu0 %v1036
        %1512 = vmatpush1.bf16.msra.mxu0 %v1035
        %1513 = vmatprep.subr.bf16.mxu0 0
        %1514 = vmatpush2.bf16.msra.mxu0 0
        %1515 = vmatprep.subr.bf16.mxu0 0
        %1516 = vmatpush2.bf16.msra.mxu0 0
        %1517 = vmatprep.subr.bf16.mxu0 0
        %1518 = vmatpush2.bf16.msra.mxu0 0
        %1519 = vmatprep.subr.bf16.mxu0 0
        %1520 = vmatpush2.bf16.msra.mxu0 0
        %1521 = vmatprep.subr.bf16.mxu0 0
        %1522 = vmatpush2.bf16.msra.mxu0 0
        %1523 = vmatprep.subr.bf16.mxu0 0
        %1524 = vmatpush2.bf16.msra.mxu0 0
        %1525 = vmatprep.subr.bf16.mxu0 0
        %1526 = vmatpush2.bf16.msra.mxu0 0
        %1527 = vmatprep.subr.bf16.mxu0 0
        %1528 = vmatpush2.bf16.msra.mxu0 0
        %1529 = vmatprep.mubr.bf16.mxu0 0
        %1530 = vmatmul.mubr.bf16.gmra.mxu0 %v1496
        %v1531 = vpop.f32.mrf.mxu0
        %v1532 = vadd.f32 0.0, %v1531
        %v1533 = vpop.f32.mrf.mxu0
        %v1534 = vadd.f32 0.0, %v1533
        %v1535 = vpop.f32.mrf.mxu0
        %v1536 = vpop.f32.mrf.mxu0
        %1537 = vdwg.mxu0
        %1538 = vmatprep.subr.bf16.mxu0 %v1066
        %1539 = vmatpush1.bf16.msra.mxu0 %v1065
        %1540 = vmatprep.subr.bf16.mxu0 %v1062
        %1541 = vmatpush1.bf16.msra.mxu0 %v1061
        %1542 = vmatprep.subr.bf16.mxu0 %v1058
        %1543 = vmatpush1.bf16.msra.mxu0 %v1057
        %1544 = vmatprep.subr.bf16.mxu0 %v1054
        %1545 = vmatpush1.bf16.msra.mxu0 %v1053
        %1546 = vmatprep.subr.bf16.mxu0 %v1050
        %1547 = vmatpush1.bf16.msra.mxu0 %v1049
        %1548 = vmatprep.subr.bf16.mxu0 %v1046
        %1549 = vmatpush1.bf16.msra.mxu0 %v1045
        %1550 = vmatprep.subr.bf16.mxu0 %v1042
        %1551 = vmatpush1.bf16.msra.mxu0 %v1041
        %1552 = vmatprep.subr.bf16.mxu0 %v1038
        %1553 = vmatpush1.bf16.msra.mxu0 %v1037
        %1554 = vmatprep.subr.bf16.mxu0 0
        %1555 = vmatpush2.bf16.msra.mxu0 0
        %1556 = vmatprep.subr.bf16.mxu0 0
        %1557 = vmatpush2.bf16.msra.mxu0 0
        %1558 = vmatprep.subr.bf16.mxu0 0
        %1559 = vmatpush2.bf16.msra.mxu0 0
        %1560 = vmatprep.subr.bf16.mxu0 0
        %1561 = vmatpush2.bf16.msra.mxu0 0
        %1562 = vmatprep.subr.bf16.mxu0 0
        %1563 = vmatpush2.bf16.msra.mxu0 0
        %1564 = vmatprep.subr.bf16.mxu0 0
        %1565 = vmatpush2.bf16.msra.mxu0 0
        %1566 = vmatprep.subr.bf16.mxu0 0
        %1567 = vmatpush2.bf16.msra.mxu0 0
        %1568 = vmatprep.subr.bf16.mxu0 0
        %1569 = vmatpush2.bf16.msra.mxu0 0
        %1570 = vmatprep.mubr.bf16.mxu0 0
        %1571 = vmatmul.mubr.bf16.gmra.mxu0 %v1496
        %v1572 = vpop.f32.mrf.mxu0
        %v1573 = vadd.f32 0.0, %v1572
        %v1574 = vpop.f32.mrf.mxu0
        %v1575 = vadd.f32 0.0, %v1574
        %v1576 = vpop.f32.mrf.mxu0
        %v1577 = vpop.f32.mrf.mxu0
        %1578 = vdwg.mxu0
        %v1579 = vadd.f32 %v1492, %v1532
        %v1580 = vadd.f32 %v1493, %v1534
        %v1581 = vadd.f32 %v1494, %v1573
        %v1582 = vadd.f32 %v1495, %v1575
        %v1583 = vxor.u32 %v1579, 2147483648
        %v1584 = vmul.f32 %v1583, 1.442695
        %v1585 = vpow.pop %v1584
        %v1586 = vadd.f32 %v1585, 1.0
        %v1587 = vrcp.pop %v1586
        %v1588 = vmul.f32 1.0, %v1587
        %v1589 = vxor.u32 %v1580, 2147483648
        %v1590 = vmul.f32 %v1589, 1.442695
        %v1591 = vpow.pop %v1590
        %v1592 = vadd.f32 %v1591, 1.0
        %v1593 = vrcp.pop %v1592
        %v1594 = vmul.f32 1.0, %v1593
        %v1595 = vtanh.pop %v1581
        %v1596 = vxor.u32 %v1582, 2147483648
        %v1597 = vmul.f32 %v1596, 1.442695
        %v1598 = vpow.pop %v1597
        %v1599 = vadd.f32 %v1598, 1.0
        %v1600 = vrcp.pop %v1599
        %v1601 = vmul.f32 1.0, %v1600
        %v1602 = vmul.f32 %v1594, %v1479
        %v1603 = vmul.f32 %v1588, %v1595
        %v1604 = vadd.f32 %v1602, %v1603
        %v1605 = vtanh.pop %v1604
        %v1606 = vmul.f32 %v1601, %v1605
        %s1607 = sadd.s32 %s458, %s1485
        %v1608 = vstv %s1607
        %vm1609 = vcmp.gt.s32.totalorder %v924, %v1608
        %v1610 = vsel %vm1609, %v1606, %v1478
        %v1611 = vsel %vm1609, %v1604, %v1479
        %v1612 = vsel %vm1609, %v1606, 0.0
        %v1613 = vpack.c.bf16 %v1612, %v1612
        %s1614 = smul.addr %s1485, 4
        %s1615 = scalar_lea.vmem %s424, %s1614 [#allocation11]
        %1616 = vst [vmem:[%s1615] sm:$0xf] %v1613
        %s1617 = ssub.s32 4, %s35
        %s1618 = smul.u32 %s1617, 8
        %s1619 = sshra.s32 %s1618, 3
        %s1620 = sand.u32 %s1618, 7
        %s1621 = smul.u32 %s1619, 4
        %s1622 = smul.addr %s1621, 8
        %s1623 = scalar_lea.vmem [#allocation4], %s1622
        %v1624 = vld [vmem:[%s1623] sm:$0xff]
        %v1625 = vld [vmem:[%s1623 + $0x8] sm:$0xff]
        %v1626 = vld [vmem:[%s1623 + $0x10] sm:$0xff]
        %v1627 = vld [vmem:[%s1623 + $0x18] sm:$0xff]
        %v1628 = vpack.c.bf16 %v1610, %v1610
        %1629 = vmatprep.subr.bf16.mxu0 %v1064
        %1630 = vmatpush1.bf16.msra.mxu0 %v1063
        %1631 = vmatprep.subr.bf16.mxu0 %v1060
        %1632 = vmatpush1.bf16.msra.mxu0 %v1059
        %1633 = vmatprep.subr.bf16.mxu0 %v1056
        %1634 = vmatpush1.bf16.msra.mxu0 %v1055
        %1635 = vmatprep.subr.bf16.mxu0 %v1052
        %1636 = vmatpush1.bf16.msra.mxu0 %v1051
        %1637 = vmatprep.subr.bf16.mxu0 %v1048
        %1638 = vmatpush1.bf16.msra.mxu0 %v1047
        %1639 = vmatprep.subr.bf16.mxu0 %v1044
        %1640 = vmatpush1.bf16.msra.mxu0 %v1043
        %1641 = vmatprep.subr.bf16.mxu0 %v1040
        %1642 = vmatpush1.bf16.msra.mxu0 %v1039
        %1643 = vmatprep.subr.bf16.mxu0 %v1036
        %1644 = vmatpush1.bf16.msra.mxu0 %v1035
        %1645 = vmatprep.subr.bf16.mxu0 0
        %1646 = vmatpush2.bf16.msra.mxu0 0
        %1647 = vmatprep.subr.bf16.mxu0 0
        %1648 = vmatpush2.bf16.msra.mxu0 0
        %1649 = vmatprep.subr.bf16.mxu0 0
        %1650 = vmatpush2.bf16.msra.mxu0 0
        %1651 = vmatprep.subr.bf16.mxu0 0
        %1652 = vmatpush2.bf16.msra.mxu0 0
        %1653 = vmatprep.subr.bf16.mxu0 0
        %1654 = vmatpush2.bf16.msra.mxu0 0
        %1655 = vmatprep.subr.bf16.mxu0 0
        %1656 = vmatpush2.bf16.msra.mxu0 0
        %1657 = vmatprep.subr.bf16.mxu0 0
        %1658 = vmatpush2.bf16.msra.mxu0 0
        %1659 = vmatprep.subr.bf16.mxu0 0
        %1660 = vmatpush2.bf16.msra.mxu0 0
        %1661 = vmatprep.mubr.bf16.mxu0 0
        %1662 = vmatmul.mubr.bf16.gmra.mxu0 %v1628
        %v1663 = vpop.f32.mrf.mxu0
        %v1664 = vadd.f32 0.0, %v1663
        %v1665 = vpop.f32.mrf.mxu0
        %v1666 = vadd.f32 0.0, %v1665
        %v1667 = vpop.f32.mrf.mxu0
        %v1668 = vpop.f32.mrf.mxu0
        %1669 = vdwg.mxu0
        %1670 = vmatprep.subr.bf16.mxu0 %v1066
        %1671 = vmatpush1.bf16.msra.mxu0 %v1065
        %1672 = vmatprep.subr.bf16.mxu0 %v1062
        %1673 = vmatpush1.bf16.msra.mxu0 %v1061
        %1674 = vmatprep.subr.bf16.mxu0 %v1058
        %1675 = vmatpush1.bf16.msra.mxu0 %v1057
        %1676 = vmatprep.subr.bf16.mxu0 %v1054
        %1677 = vmatpush1.bf16.msra.mxu0 %v1053
        %1678 = vmatprep.subr.bf16.mxu0 %v1050
        %1679 = vmatpush1.bf16.msra.mxu0 %v1049
        %1680 = vmatprep.subr.bf16.mxu0 %v1046
        %1681 = vmatpush1.bf16.msra.mxu0 %v1045
        %1682 = vmatprep.subr.bf16.mxu0 %v1042
        %1683 = vmatpush1.bf16.msra.mxu0 %v1041
        %1684 = vmatprep.subr.bf16.mxu0 %v1038
        %1685 = vmatpush1.bf16.msra.mxu0 %v1037
        %1686 = vmatprep.subr.bf16.mxu0 0
        %1687 = vmatpush2.bf16.msra.mxu0 0
        %1688 = vmatprep.subr.bf16.mxu0 0
        %1689 = vmatpush2.bf16.msra.mxu0 0
        %1690 = vmatprep.subr.bf16.mxu0 0
        %1691 = vmatpush2.bf16.msra.mxu0 0
        %1692 = vmatprep.subr.bf16.mxu0 0
        %1693 = vmatpush2.bf16.msra.mxu0 0
        %1694 = vmatprep.subr.bf16.mxu0 0
        %1695 = vmatpush2.bf16.msra.mxu0 0
        %1696 = vmatprep.subr.bf16.mxu0 0
        %1697 = vmatpush2.bf16.msra.mxu0 0
        %1698 = vmatprep.subr.bf16.mxu0 0
        %1699 = vmatpush2.bf16.msra.mxu0 0
        %1700 = vmatprep.subr.bf16.mxu0 0
        %1701 = vmatpush2.bf16.msra.mxu0 0
        %1702 = vmatprep.mubr.bf16.mxu0 0
        %1703 = vmatmul.mubr.bf16.gmra.mxu0 %v1628
        %v1704 = vpop.f32.mrf.mxu0
        %v1705 = vadd.f32 0.0, %v1704
        %v1706 = vpop.f32.mrf.mxu0
        %v1707 = vadd.f32 0.0, %v1706
        %v1708 = vpop.f32.mrf.mxu0
        %v1709 = vpop.f32.mrf.mxu0
        %1710 = vdwg.mxu0
        %v1711 = vadd.f32 %v1624, %v1664
        %v1712 = vadd.f32 %v1625, %v1666
        %v1713 = vadd.f32 %v1626, %v1705
        %v1714 = vadd.f32 %v1627, %v1707
        %v1715 = vxor.u32 %v1711, 2147483648
        %v1716 = vmul.f32 %v1715, 1.442695
        %v1717 = vpow.pop %v1716
        %v1718 = vadd.f32 %v1717, 1.0
        %v1719 = vrcp.pop %v1718
        %v1720 = vmul.f32 1.0, %v1719
        %v1721 = vxor.u32 %v1712, 2147483648
        %v1722 = vmul.f32 %v1721, 1.442695
        %v1723 = vpow.pop %v1722
        %v1724 = vadd.f32 %v1723, 1.0
        %v1725 = vrcp.pop %v1724
        %v1726 = vmul.f32 1.0, %v1725
        %v1727 = vtanh.pop %v1713
        %v1728 = vxor.u32 %v1714, 2147483648
        %v1729 = vmul.f32 %v1728, 1.442695
        %v1730 = vpow.pop %v1729
        %v1731 = vadd.f32 %v1730, 1.0
        %v1732 = vrcp.pop %v1731
        %v1733 = vmul.f32 1.0, %v1732
        %v1734 = vmul.f32 %v1726, %v1611
        %v1735 = vmul.f32 %v1720, %v1727
        %v1736 = vadd.f32 %v1734, %v1735
        %v1737 = vtanh.pop %v1736
        %v1738 = vmul.f32 %v1733, %v1737
        %s1739 = sadd.s32 %s458, %s1617
        %v1740 = vstv %s1739
        %vm1741 = vcmp.gt.s32.totalorder %v924, %v1740
        %v1742 = vsel %vm1741, %v1738, %v1610
        %v1743 = vsel %vm1741, %v1736, %v1611
        %v1744 = vsel %vm1741, %v1738, 0.0
        %v1745 = vpack.c.bf16 %v1744, %v1744
        %s1746 = smul.addr %s1617, 4
        %s1747 = scalar_lea.vmem %s424, %s1746 [#allocation11]
        %1748 = vst [vmem:[%s1747] sm:$0xf] %v1745
        %s1749 = smul.u32 %s35, 4294967293
        %s1750 = sadd.s32 %s1749, 5
        %s1751 = smul.u32 %s1750, 8
        %s1752 = sshra.s32 %s1751, 3
        %s1753 = sand.u32 %s1751, 7
        %s1754 = smul.u32 %s1752, 4
        %s1755 = smul.addr %s1754, 8
        %s1756 = scalar_lea.vmem [#allocation4], %s1755
        %v1757 = vld [vmem:[%s1756] sm:$0xff]
        %v1758 = vld [vmem:[%s1756 + $0x8] sm:$0xff]
        %v1759 = vld [vmem:[%s1756 + $0x10] sm:$0xff]
        %v1760 = vld [vmem:[%s1756 + $0x18] sm:$0xff]
        %v1761 = vpack.c.bf16 %v1742, %v1742
        %1762 = vmatprep.subr.bf16.mxu0 %v1064
        %1763 = vmatpush1.bf16.msra.mxu0 %v1063
        %1764 = vmatprep.subr.bf16.mxu0 %v1060
        %1765 = vmatpush1.bf16.msra.mxu0 %v1059
        %1766 = vmatprep.subr.bf16.mxu0 %v1056
        %1767 = vmatpush1.bf16.msra.mxu0 %v1055
        %1768 = vmatprep.subr.bf16.mxu0 %v1052
        %1769 = vmatpush1.bf16.msra.mxu0 %v1051
        %1770 = vmatprep.subr.bf16.mxu0 %v1048
        %1771 = vmatpush1.bf16.msra.mxu0 %v1047
        %1772 = vmatprep.subr.bf16.mxu0 %v1044
        %1773 = vmatpush1.bf16.msra.mxu0 %v1043
        %1774 = vmatprep.subr.bf16.mxu0 %v1040
        %1775 = vmatpush1.bf16.msra.mxu0 %v1039
        %1776 = vmatprep.subr.bf16.mxu0 %v1036
        %1777 = vmatpush1.bf16.msra.mxu0 %v1035
        %1778 = vmatprep.subr.bf16.mxu0 0
        %1779 = vmatpush2.bf16.msra.mxu0 0
        %1780 = vmatprep.subr.bf16.mxu0 0
        %1781 = vmatpush2.bf16.msra.mxu0 0
        %1782 = vmatprep.subr.bf16.mxu0 0
        %1783 = vmatpush2.bf16.msra.mxu0 0
        %1784 = vmatprep.subr.bf16.mxu0 0
        %1785 = vmatpush2.bf16.msra.mxu0 0
        %1786 = vmatprep.subr.bf16.mxu0 0
        %1787 = vmatpush2.bf16.msra.mxu0 0
        %1788 = vmatprep.subr.bf16.mxu0 0
        %1789 = vmatpush2.bf16.msra.mxu0 0
        %1790 = vmatprep.subr.bf16.mxu0 0
        %1791 = vmatpush2.bf16.msra.mxu0 0
        %1792 = vmatprep.subr.bf16.mxu0 0
        %1793 = vmatpush2.bf16.msra.mxu0 0
        %1794 = vmatprep.mubr.bf16.mxu0 0
        %1795 = vmatmul.mubr.bf16.gmra.mxu0 %v1761
        %v1796 = vpop.f32.mrf.mxu0
        %v1797 = vadd.f32 0.0, %v1796
        %v1798 = vpop.f32.mrf.mxu0
        %v1799 = vadd.f32 0.0, %v1798
        %v1800 = vpop.f32.mrf.mxu0
        %v1801 = vpop.f32.mrf.mxu0
        %1802 = vdwg.mxu0
        %1803 = vmatprep.subr.bf16.mxu0 %v1066
        %1804 = vmatpush1.bf16.msra.mxu0 %v1065
        %1805 = vmatprep.subr.bf16.mxu0 %v1062
        %1806 = vmatpush1.bf16.msra.mxu0 %v1061
        %1807 = vmatprep.subr.bf16.mxu0 %v1058
        %1808 = vmatpush1.bf16.msra.mxu0 %v1057
        %1809 = vmatprep.subr.bf16.mxu0 %v1054
        %1810 = vmatpush1.bf16.msra.mxu0 %v1053
        %1811 = vmatprep.subr.bf16.mxu0 %v1050
        %1812 = vmatpush1.bf16.msra.mxu0 %v1049
        %1813 = vmatprep.subr.bf16.mxu0 %v1046
        %1814 = vmatpush1.bf16.msra.mxu0 %v1045
        %1815 = vmatprep.subr.bf16.mxu0 %v1042
        %1816 = vmatpush1.bf16.msra.mxu0 %v1041
        %1817 = vmatprep.subr.bf16.mxu0 %v1038
        %1818 = vmatpush1.bf16.msra.mxu0 %v1037
        %1819 = vmatprep.subr.bf16.mxu0 0
        %1820 = vmatpush2.bf16.msra.mxu0 0
        %1821 = vmatprep.subr.bf16.mxu0 0
        %1822 = vmatpush2.bf16.msra.mxu0 0
        %1823 = vmatprep.subr.bf16.mxu0 0
        %1824 = vmatpush2.bf16.msra.mxu0 0
        %1825 = vmatprep.subr.bf16.mxu0 0
        %1826 = vmatpush2.bf16.msra.mxu0 0
        %1827 = vmatprep.subr.bf16.mxu0 0
        %1828 = vmatpush2.bf16.msra.mxu0 0
        %1829 = vmatprep.subr.bf16.mxu0 0
        %1830 = vmatpush2.bf16.msra.mxu0 0
        %1831 = vmatprep.subr.bf16.mxu0 0
        %1832 = vmatpush2.bf16.msra.mxu0 0
        %1833 = vmatprep.subr.bf16.mxu0 0
        %1834 = vmatpush2.bf16.msra.mxu0 0
        %1835 = vmatprep.mubr.bf16.mxu0 0
        %1836 = vmatmul.mubr.bf16.gmra.mxu0 %v1761
        %v1837 = vpop.f32.mrf.mxu0
        %v1838 = vadd.f32 0.0, %v1837
        %v1839 = vpop.f32.mrf.mxu0
        %v1840 = vadd.f32 0.0, %v1839
        %v1841 = vpop.f32.mrf.mxu0
        %v1842 = vpop.f32.mrf.mxu0
        %1843 = vdwg.mxu0
        %v1844 = vadd.f32 %v1757, %v1797
        %v1845 = vadd.f32 %v1758, %v1799
        %v1846 = vadd.f32 %v1759, %v1838
        %v1847 = vadd.f32 %v1760, %v1840
        %v1848 = vxor.u32 %v1844, 2147483648
        %v1849 = vmul.f32 %v1848, 1.442695
        %v1850 = vpow.pop %v1849
        %v1851 = vadd.f32 %v1850, 1.0
        %v1852 = vrcp.pop %v1851
        %v1853 = vmul.f32 1.0, %v1852
        %v1854 = vxor.u32 %v1845, 2147483648
        %v1855 = vmul.f32 %v1854, 1.442695
        %v1856 = vpow.pop %v1855
        %v1857 = vadd.f32 %v1856, 1.0
        %v1858 = vrcp.pop %v1857
        %v1859 = vmul.f32 1.0, %v1858
        %v1860 = vtanh.pop %v1846
        %v1861 = vxor.u32 %v1847, 2147483648
        %v1862 = vmul.f32 %v1861, 1.442695
        %v1863 = vpow.pop %v1862
        %v1864 = vadd.f32 %v1863, 1.0
        %v1865 = vrcp.pop %v1864
        %v1866 = vmul.f32 1.0, %v1865
        %v1867 = vmul.f32 %v1859, %v1743
        %v1868 = vmul.f32 %v1853, %v1860
        %v1869 = vadd.f32 %v1867, %v1868
        %v1870 = vtanh.pop %v1869
        %v1871 = vmul.f32 %v1866, %v1870
        %s1872 = sadd.s32 %s458, %s1750
        %v1873 = vstv %s1872
        %vm1874 = vcmp.gt.s32.totalorder %v924, %v1873
        %v1875 = vsel %vm1874, %v1871, %v1742
        %v1876 = vsel %vm1874, %v1869, %v1743
        %v1877 = vsel %vm1874, %v1871, 0.0
        %v1878 = vpack.c.bf16 %v1877, %v1877
        %s1879 = smul.addr %s1750, 4
        %s1880 = scalar_lea.vmem %s424, %s1879 [#allocation11]
        %1881 = vst [vmem:[%s1880] sm:$0xf] %v1878
        %s1882 = smul.u32 %s35, 4294967291
        %s1883 = sadd.s32 %s1882, 6
        %s1884 = smul.u32 %s1883, 8
        %s1885 = sshra.s32 %s1884, 3
        %s1886 = sand.u32 %s1884, 7
        %s1887 = smul.u32 %s1885, 4
        %s1888 = smul.addr %s1887, 8
        %s1889 = scalar_lea.vmem [#allocation4], %s1888
        %v1890 = vld [vmem:[%s1889] sm:$0xff]
        %v1891 = vld [vmem:[%s1889 + $0x8] sm:$0xff]
        %v1892 = vld [vmem:[%s1889 + $0x10] sm:$0xff]
        %v1893 = vld [vmem:[%s1889 + $0x18] sm:$0xff]
        %v1894 = vpack.c.bf16 %v1875, %v1875
        %1895 = vmatprep.subr.bf16.mxu0 %v1064
        %1896 = vmatpush1.bf16.msra.mxu0 %v1063
        %1897 = vmatprep.subr.bf16.mxu0 %v1060
        %1898 = vmatpush1.bf16.msra.mxu0 %v1059
        %1899 = vmatprep.subr.bf16.mxu0 %v1056
        %1900 = vmatpush1.bf16.msra.mxu0 %v1055
        %1901 = vmatprep.subr.bf16.mxu0 %v1052
        %1902 = vmatpush1.bf16.msra.mxu0 %v1051
        %1903 = vmatprep.subr.bf16.mxu0 %v1048
        %1904 = vmatpush1.bf16.msra.mxu0 %v1047
        %1905 = vmatprep.subr.bf16.mxu0 %v1044
        %1906 = vmatpush1.bf16.msra.mxu0 %v1043
        %1907 = vmatprep.subr.bf16.mxu0 %v1040
        %1908 = vmatpush1.bf16.msra.mxu0 %v1039
        %1909 = vmatprep.subr.bf16.mxu0 %v1036
        %1910 = vmatpush1.bf16.msra.mxu0 %v1035
        %1911 = vmatprep.subr.bf16.mxu0 0
        %1912 = vmatpush2.bf16.msra.mxu0 0
        %1913 = vmatprep.subr.bf16.mxu0 0
        %1914 = vmatpush2.bf16.msra.mxu0 0
        %1915 = vmatprep.subr.bf16.mxu0 0
        %1916 = vmatpush2.bf16.msra.mxu0 0
        %1917 = vmatprep.subr.bf16.mxu0 0
        %1918 = vmatpush2.bf16.msra.mxu0 0
        %1919 = vmatprep.subr.bf16.mxu0 0
        %1920 = vmatpush2.bf16.msra.mxu0 0
        %1921 = vmatprep.subr.bf16.mxu0 0
        %1922 = vmatpush2.bf16.msra.mxu0 0
        %1923 = vmatprep.subr.bf16.mxu0 0
        %1924 = vmatpush2.bf16.msra.mxu0 0
        %1925 = vmatprep.subr.bf16.mxu0 0
        %1926 = vmatpush2.bf16.msra.mxu0 0
        %1927 = vmatprep.mubr.bf16.mxu0 0
        %1928 = vmatmul.mubr.bf16.gmra.mxu0 %v1894
        %v1929 = vpop.f32.mrf.mxu0
        %v1930 = vadd.f32 0.0, %v1929
        %v1931 = vpop.f32.mrf.mxu0
        %v1932 = vadd.f32 0.0, %v1931
        %v1933 = vpop.f32.mrf.mxu0
        %v1934 = vpop.f32.mrf.mxu0
        %1935 = vdwg.mxu0
        %1936 = vmatprep.subr.bf16.mxu0 %v1066
        %1937 = vmatpush1.bf16.msra.mxu0 %v1065
        %1938 = vmatprep.subr.bf16.mxu0 %v1062
        %1939 = vmatpush1.bf16.msra.mxu0 %v1061
        %1940 = vmatprep.subr.bf16.mxu0 %v1058
        %1941 = vmatpush1.bf16.msra.mxu0 %v1057
        %1942 = vmatprep.subr.bf16.mxu0 %v1054
        %1943 = vmatpush1.bf16.msra.mxu0 %v1053
        %1944 = vmatprep.subr.bf16.mxu0 %v1050
        %1945 = vmatpush1.bf16.msra.mxu0 %v1049
        %1946 = vmatprep.subr.bf16.mxu0 %v1046
        %1947 = vmatpush1.bf16.msra.mxu0 %v1045
        %1948 = vmatprep.subr.bf16.mxu0 %v1042
        %1949 = vmatpush1.bf16.msra.mxu0 %v1041
        %1950 = vmatprep.subr.bf16.mxu0 %v1038
        %1951 = vmatpush1.bf16.msra.mxu0 %v1037
        %1952 = vmatprep.subr.bf16.mxu0 0
        %1953 = vmatpush2.bf16.msra.mxu0 0
        %1954 = vmatprep.subr.bf16.mxu0 0
        %1955 = vmatpush2.bf16.msra.mxu0 0
        %1956 = vmatprep.subr.bf16.mxu0 0
        %1957 = vmatpush2.bf16.msra.mxu0 0
        %1958 = vmatprep.subr.bf16.mxu0 0
        %1959 = vmatpush2.bf16.msra.mxu0 0
        %1960 = vmatprep.subr.bf16.mxu0 0
        %1961 = vmatpush2.bf16.msra.mxu0 0
        %1962 = vmatprep.subr.bf16.mxu0 0
        %1963 = vmatpush2.bf16.msra.mxu0 0
        %1964 = vmatprep.subr.bf16.mxu0 0
        %1965 = vmatpush2.bf16.msra.mxu0 0
        %1966 = vmatprep.subr.bf16.mxu0 0
        %1967 = vmatpush2.bf16.msra.mxu0 0
        %1968 = vmatprep.mubr.bf16.mxu0 0
        %1969 = vmatmul.mubr.bf16.gmra.mxu0 %v1894
        %v1970 = vpop.f32.mrf.mxu0
        %v1971 = vadd.f32 0.0, %v1970
        %v1972 = vpop.f32.mrf.mxu0
        %v1973 = vadd.f32 0.0, %v1972
        %v1974 = vpop.f32.mrf.mxu0
        %v1975 = vpop.f32.mrf.mxu0
        %1976 = vdwg.mxu0
        %v1977 = vadd.f32 %v1890, %v1930
        %v1978 = vadd.f32 %v1891, %v1932
        %v1979 = vadd.f32 %v1892, %v1971
        %v1980 = vadd.f32 %v1893, %v1973
        %v1981 = vxor.u32 %v1977, 2147483648
        %v1982 = vmul.f32 %v1981, 1.442695
        %v1983 = vpow.pop %v1982
        %v1984 = vadd.f32 %v1983, 1.0
        %v1985 = vrcp.pop %v1984
        %v1986 = vmul.f32 1.0, %v1985
        %v1987 = vxor.u32 %v1978, 2147483648
        %v1988 = vmul.f32 %v1987, 1.442695
        %v1989 = vpow.pop %v1988
        %v1990 = vadd.f32 %v1989, 1.0
        %v1991 = vrcp.pop %v1990
        %v1992 = vmul.f32 1.0, %v1991
        %v1993 = vtanh.pop %v1979
        %v1994 = vxor.u32 %v1980, 2147483648
        %v1995 = vmul.f32 %v1994, 1.442695
        %v1996 = vpow.pop %v1995
        %v1997 = vadd.f32 %v1996, 1.0
        %v1998 = vrcp.pop %v1997
        %v1999 = vmul.f32 1.0, %v1998
        %v2000 = vmul.f32 %v1992, %v1876
        %v2001 = vmul.f32 %v1986, %v1993
        %v2002 = vadd.f32 %v2000, %v2001
        %v2003 = vtanh.pop %v2002
        %v2004 = vmul.f32 %v1999, %v2003
        %s2005 = sadd.s32 %s458, %s1883
        %v2006 = vstv %s2005
        %vm2007 = vcmp.gt.s32.totalorder %v924, %v2006
        %v2008 = vsel %vm2007, %v2004, %v1875
        %v2009 = vsel %vm2007, %v2002, %v1876
        %v2010 = vsel %vm2007, %v2004, 0.0
        %v2011 = vpack.c.bf16 %v2010, %v2010
        %s2012 = smul.addr %s1883, 4
        %s2013 = scalar_lea.vmem %s424, %s2012 [#allocation11]
        %2014 = vst [vmem:[%s2013] sm:$0xf] %v2011
        %s2015 = smul.u32 %s35, 4294967289
        %s2016 = sadd.s32 %s2015, 7
        %s2017 = smul.u32 %s2016, 8
        %s2018 = sshra.s32 %s2017, 3
        %s2019 = sand.u32 %s2017, 7
        %s2020 = smul.u32 %s2018, 4
        %s2021 = smul.addr %s2020, 8
        %s2022 = scalar_lea.vmem [#allocation4], %s2021
        %v2023 = vld [vmem:[%s2022] sm:$0xff]
        %v2024 = vld [vmem:[%s2022 + $0x8] sm:$0xff]
        %v2025 = vld [vmem:[%s2022 + $0x10] sm:$0xff]
        %v2026 = vld [vmem:[%s2022 + $0x18] sm:$0xff]
        %v2027 = vpack.c.bf16 %v2008, %v2008
        %2028 = vmatprep.subr.bf16.mxu0 %v1064
        %2029 = vmatpush1.bf16.msra.mxu0 %v1063
        %2030 = vmatprep.subr.bf16.mxu0 %v1060
        %2031 = vmatpush1.bf16.msra.mxu0 %v1059
        %2032 = vmatprep.subr.bf16.mxu0 %v1056
        %2033 = vmatpush1.bf16.msra.mxu0 %v1055
        %2034 = vmatprep.subr.bf16.mxu0 %v1052
        %2035 = vmatpush1.bf16.msra.mxu0 %v1051
        %2036 = vmatprep.subr.bf16.mxu0 %v1048
        %2037 = vmatpush1.bf16.msra.mxu0 %v1047
        %2038 = vmatprep.subr.bf16.mxu0 %v1044
        %2039 = vmatpush1.bf16.msra.mxu0 %v1043
        %2040 = vmatprep.subr.bf16.mxu0 %v1040
        %2041 = vmatpush1.bf16.msra.mxu0 %v1039
        %2042 = vmatprep.subr.bf16.mxu0 %v1036
        %2043 = vmatpush1.bf16.msra.mxu0 %v1035
        %2044 = vmatprep.subr.bf16.mxu0 0
        %2045 = vmatpush2.bf16.msra.mxu0 0
        %2046 = vmatprep.subr.bf16.mxu0 0
        %2047 = vmatpush2.bf16.msra.mxu0 0
        %2048 = vmatprep.subr.bf16.mxu0 0
        %2049 = vmatpush2.bf16.msra.mxu0 0
        %2050 = vmatprep.subr.bf16.mxu0 0
        %2051 = vmatpush2.bf16.msra.mxu0 0
        %2052 = vmatprep.subr.bf16.mxu0 0
        %2053 = vmatpush2.bf16.msra.mxu0 0
        %2054 = vmatprep.subr.bf16.mxu0 0
        %2055 = vmatpush2.bf16.msra.mxu0 0
        %2056 = vmatprep.subr.bf16.mxu0 0
        %2057 = vmatpush2.bf16.msra.mxu0 0
        %2058 = vmatprep.subr.bf16.mxu0 0
        %2059 = vmatpush2.bf16.msra.mxu0 0
        %2060 = vmatprep.mubr.bf16.mxu0 0
        %2061 = vmatmul.mubr.bf16.gmra.mxu0 %v2027
        %v2062 = vpop.f32.mrf.mxu0
        %v2063 = vadd.f32 0.0, %v2062
        %v2064 = vpop.f32.mrf.mxu0
        %v2065 = vadd.f32 0.0, %v2064
        %v2066 = vpop.f32.mrf.mxu0
        %v2067 = vpop.f32.mrf.mxu0
        %2068 = vdwg.mxu0
        %2069 = vmatprep.subr.bf16.mxu0 %v1066
        %2070 = vmatpush1.bf16.msra.mxu0 %v1065
        %2071 = vmatprep.subr.bf16.mxu0 %v1062
        %2072 = vmatpush1.bf16.msra.mxu0 %v1061
        %2073 = vmatprep.subr.bf16.mxu0 %v1058
        %2074 = vmatpush1.bf16.msra.mxu0 %v1057
        %2075 = vmatprep.subr.bf16.mxu0 %v1054
        %2076 = vmatpush1.bf16.msra.mxu0 %v1053
        %2077 = vmatprep.subr.bf16.mxu0 %v1050
        %2078 = vmatpush1.bf16.msra.mxu0 %v1049
        %2079 = vmatprep.subr.bf16.mxu0 %v1046
        %2080 = vmatpush1.bf16.msra.mxu0 %v1045
        %2081 = vmatprep.subr.bf16.mxu0 %v1042
        %2082 = vmatpush1.bf16.msra.mxu0 %v1041
        %2083 = vmatprep.subr.bf16.mxu0 %v1038
        %2084 = vmatpush1.bf16.msra.mxu0 %v1037
        %2085 = vmatprep.subr.bf16.mxu0 0
        %2086 = vmatpush2.bf16.msra.mxu0 0
        %2087 = vmatprep.subr.bf16.mxu0 0
        %2088 = vmatpush2.bf16.msra.mxu0 0
        %2089 = vmatprep.subr.bf16.mxu0 0
        %2090 = vmatpush2.bf16.msra.mxu0 0
        %2091 = vmatprep.subr.bf16.mxu0 0
        %2092 = vmatpush2.bf16.msra.mxu0 0
        %2093 = vmatprep.subr.bf16.mxu0 0
        %2094 = vmatpush2.bf16.msra.mxu0 0
        %2095 = vmatprep.subr.bf16.mxu0 0
        %2096 = vmatpush2.bf16.msra.mxu0 0
        %2097 = vmatprep.subr.bf16.mxu0 0
        %2098 = vmatpush2.bf16.msra.mxu0 0
        %2099 = vmatprep.subr.bf16.mxu0 0
        %2100 = vmatpush2.bf16.msra.mxu0 0
        %2101 = vmatprep.mubr.bf16.mxu0 0
        %2102 = vmatmul.mubr.bf16.gmra.mxu0 %v2027
        %v2103 = vpop.f32.mrf.mxu0
        %v2104 = vadd.f32 0.0, %v2103
        %v2105 = vpop.f32.mrf.mxu0
        %v2106 = vadd.f32 0.0, %v2105
        %v2107 = vpop.f32.mrf.mxu0
        %v2108 = vpop.f32.mrf.mxu0
        %2109 = vdwg.mxu0
        %v2110 = vadd.f32 %v2023, %v2063
        %v2111 = vadd.f32 %v2024, %v2065
        %v2112 = vadd.f32 %v2025, %v2104
        %v2113 = vadd.f32 %v2026, %v2106
        %v2114 = vxor.u32 %v2110, 2147483648
        %v2115 = vmul.f32 %v2114, 1.442695
        %v2116 = vpow.pop %v2115
        %v2117 = vadd.f32 %v2116, 1.0
        %v2118 = vrcp.pop %v2117
        %v2119 = vmul.f32 1.0, %v2118
        %v2120 = vxor.u32 %v2111, 2147483648
        %v2121 = vmul.f32 %v2120, 1.442695
        %v2122 = vpow.pop %v2121
        %v2123 = vadd.f32 %v2122, 1.0
        %v2124 = vrcp.pop %v2123
        %v2125 = vmul.f32 1.0, %v2124
        %v2126 = vtanh.pop %v2112
        %v2127 = vxor.u32 %v2113, 2147483648
        %v2128 = vmul.f32 %v2127, 1.442695
        %v2129 = vpow.pop %v2128
        %v2130 = vadd.f32 %v2129, 1.0
        %v2131 = vrcp.pop %v2130
        %v2132 = vmul.f32 1.0, %v2131
        %v2133 = vmul.f32 %v2125, %v2009
        %v2134 = vmul.f32 %v2119, %v2126
        %v2135 = vadd.f32 %v2133, %v2134
        %v2136 = vtanh.pop %v2135
        %v2137 = vmul.f32 %v2132, %v2136
        %s2138 = sadd.s32 %s458, %s2016
        %v2139 = vstv %s2138
        %vm2140 = vcmp.gt.s32.totalorder %v924, %v2139
        %v2141 = vsel %vm2140, %v2137, %v2008
        %v2142 = vsel %vm2140, %v2135, %v2009
        %v2143 = vsel %vm2140, %v2137, 0.0
        %v2144 = vpack.c.bf16 %v2143, %v2143
        %s2145 = smul.addr %s2016, 4
        %s2146 = scalar_lea.vmem %s424, %s2145 [#allocation11]
        %2147 = vst [vmem:[%s2146] sm:$0xf] %v2144
        %2148 = vst [vmem:[#allocation2] sm:$0xff] %v2141
        %2149 = vst [vmem:[#allocation3] sm:$0xff] %v2142
        // Predicated region
        $region57: #{tpu_custom_call.1} parent=39 // pred_check
          %p2150 = pneg %p459
        $region58: #{tpu_custom_call.1} parent=39 // pred_check_branch
          %2152 = sbr.rel (%p2150) target = $region60
        $region59: #{tpu_custom_call.1} parent=39 // pred_region
          %2153 = vst [vmem:[%s431] sm:$0xff] %v2141
          %2154 = vst [vmem:[%s438] sm:$0xff] %v2142
        $region60: #{tpu_custom_call.1} parent=39 // pred_fallthru
          _
        %s2155 = sand.u32 %s194, 1
        %s2156 = scalar_lea.sflag [#allocation7], %s2155
        %s2157 = sand.u32 %s194, 1
        %s2158 = smul.addr %s2157, 32
        %s2159 = scalar_lea.vmem [#allocation11], %s2158
        %s2160 = sand.u32 %s31, 1
        %s2161 = scalar_lea.sflag [#allocation13], %s2160
        %s2162 = sand.u32 %s220, 1
        %s2163 = smul.addr %s2162, 8
        %s2164 = scalar_lea.vmem [#allocation12], %s2163
        %s2165 = sand.u32 %s31, 1
        %s2166 = scalar_lea.sflag [#allocation13], %s2165
        %s2167 = sand.u32 %s246, 1
        %s2168 = smul.addr %s2167, 8
        %s2169 = scalar_lea.vmem [#allocation14], %s2168
        // Predicated region
        $region61: #{tpu_custom_call.1} parent=39 // pred_check
          %p2170 = pneg %p204
        $region62: #{tpu_custom_call.1} parent=39 // pred_check_branch
          %2172 = sbr.rel (%p2170) target = $region64
        $region63: #{tpu_custom_call.1} parent=39 // pred_region
          %s2173 = smul.u32 %s36, 2
          %s2174 = ssub.s32 0, %s2173
          %s2175 = smul.u32 %s35, %s2174
          %s2176 = sadd.s32 %s36, %s2175
          %s2177 = smul.u32 8, %s2176
          %s2179 = ssub.s32 512, 512
          %2180 = vsyncadd %s2156, %s2179
          %s2181 = smul.addr %s2177, 2
          %s2182 = sadd.s32 %s35, %s2181
          %s2183 = smul.addr %s2182, 64
          %s2184 = scalar_lea.hbm %s5, %s2183
          %s2185 = sshll.u32 %s2159, 4
          %s2186 = int_to_ptr.vmem [resolvable:$true] %s2185
          %2191 = dma.vmem_to_hbm [thread:$0]  %s2186, 512, %s2184, %s2156, 64, 128, 4
        $region64: #{tpu_custom_call.1} parent=39 // pred_fallthru
          _
        // Predicated region
        $region65: #{tpu_custom_call.1} parent=39 // pred_check
          %p2192 = pneg %p230
        $region66: #{tpu_custom_call.1} parent=39 // pred_check_branch
          %2194 = sbr.rel (%p2192) target = $region68
        $region67: #{tpu_custom_call.1} parent=39 // pred_region
          %s2196 = ssub.s32 128, 128
          %2197 = vsyncadd %s2161, %s2196
          %s2198 = smul.addr %s35, 128
          %s2199 = scalar_lea.hbm %s6, %s2198
          %s2201 = sshll.u32 %s2164, 4
          %s2202 = int_to_ptr.vmem [resolvable:$true] %s2201
          %2204 = dma.vmem_to_hbm [thread:$0]  %s2202, 128, %s2199, %s2161
        $region68: #{tpu_custom_call.1} parent=39 // pred_fallthru
          _
        // Predicated region
        $region69: #{tpu_custom_call.1} parent=39 // pred_check
          %p2205 = pneg %p256
        $region70: #{tpu_custom_call.1} parent=39 // pred_check_branch
          %2207 = sbr.rel (%p2205) target = $region72
        $region71: #{tpu_custom_call.1} parent=39 // pred_region
          %s2209 = ssub.s32 128, 128
          %2210 = vsyncadd %s2166, %s2209
          %s2211 = smul.addr %s35, 128
          %s2212 = scalar_lea.hbm %s7, %s2211
          %s2214 = sshll.u32 %s2169, 4
          %s2215 = int_to_ptr.vmem [resolvable:$true] %s2214
          %2217 = dma.vmem_to_hbm [thread:$0]  %s2215, 128, %s2212, %s2166
        $region72: #{tpu_custom_call.1} parent=39 // pred_fallthru
          _
      $region40: #{tpu_custom_call.1} parent=5 // pred_fallthru
        _
      %p2218 = scmp.le.s32.totalorder 2, %s26
      // Predicated region
      $region73: #{tpu_custom_call.1} parent=5 // pred_check
        %p2219 = pneg %p2218
      $region74: #{tpu_custom_call.1} parent=5 // pred_check_branch
        %2221 = sbr.rel (%p2219) target = $region76
      $region75: #{tpu_custom_call.1} parent=5 // pred_region
        %s2222 = ssub.s32 %s26, 2
        // Predicated region
        $region77: #{tpu_custom_call.1} parent=75 // pred_check
          %p2223 = pneg %p210
        $region78: #{tpu_custom_call.1} parent=75 // pred_check_branch
          %2225 = sbr.rel (%p2223) target = $region80
        $region79: #{tpu_custom_call.1} parent=75 // pred_region
          %s2226 = sand.u32 %s195, 1
          %s2227 = scalar_lea.sflag [#allocation7], %s2226
          %s2228 = sand.u32 %s195, 1
          %s2229 = smul.addr %s2228, 32
          %s2230 = scalar_lea.vmem [#allocation11], %s2229
          %2231 = dma.done %s2227, 512
        $region80: #{tpu_custom_call.1} parent=75 // pred_fallthru
          _
        // Predicated region
        $region81: #{tpu_custom_call.1} parent=75 // pred_check
          %p2232 = pneg %p236
        $region82: #{tpu_custom_call.1} parent=75 // pred_check_branch
          %2234 = sbr.rel (%p2232) target = $region84
        $region83: #{tpu_custom_call.1} parent=75 // pred_region
          %s2235 = sand.u32 %s32, 1
          %s2236 = scalar_lea.sflag [#allocation13], %s2235
          %s2237 = sand.u32 %s221, 1
          %s2238 = smul.addr %s2237, 8
          %s2239 = scalar_lea.vmem [#allocation12], %s2238
          %2240 = dma.done %s2236, 128
        $region84: #{tpu_custom_call.1} parent=75 // pred_fallthru
          _
        // Predicated region
        $region85: #{tpu_custom_call.1} parent=75 // pred_check
          %p2241 = pneg %p262
        $region86: #{tpu_custom_call.1} parent=75 // pred_check_branch
          %2243 = sbr.rel (%p2241) target = $region88
        $region87: #{tpu_custom_call.1} parent=75 // pred_region
          %s2244 = sand.u32 %s32, 1
          %s2245 = scalar_lea.sflag [#allocation13], %s2244
          %s2246 = sand.u32 %s247, 1
          %s2247 = smul.addr %s2246, 8
          %s2248 = scalar_lea.vmem [#allocation14], %s2247
          %2249 = dma.done %s2245, 128
        $region88: #{tpu_custom_call.1} parent=75 // pred_fallthru
          _
      $region76: #{tpu_custom_call.1} parent=5 // pred_fallthru
        _
    $region6: #{tpu_custom_call.1} parent=1 // loop_footer
      %s30 = sadd.s32 1, %s26
    $region7: #{tpu_custom_call.1} parent=1 // loop_footer_branch
      %25 = sbr.rel target = $region3
    $region8: #{tpu_custom_call.1} parent=1 // loop_exit
      _
    %2250 = vsyncpa [#allocation6], 1
    %s2251 = scalar_lea.sflag [#allocation6], 1
    %2252 = vsyncpa %s2251, 1
    %2253 = vsyncpa [#allocation9], 1
    %s2254 = scalar_lea.sflag [#allocation9], 1
    %2255 = vsyncpa %s2254, 1
    %2256 = vsyncpa [#allocation7], 1
    %s2257 = scalar_lea.sflag [#allocation7], 1
    %2258 = vsyncpa %s2257, 1
    %2259 = vsyncpa [#allocation13], 1
    %s2260 = scalar_lea.sflag [#allocation13], 1
    %2261 = vsyncpa %s2260, 1

</llo_original>
